<compile_context>
chip_gen: v7x
topology: tpu7x:2x2x1
jax: 0.10.0
libtpu: 0.0.40
codegen_flags: <defaults>
</compile_context>

<pallas_src>
import numpy as np
import jax
import jax.numpy as jnp
from jax.experimental import pallas as pl
from jax.experimental.pallas import tpu as pltpu

BN_EPS = 1e-5
KS = 4                      # kernel size of every conv layer
STRIDES = (2, 2, 2, 1)
PADS = (1, 1, 1, 0)
LANE = 128


def _rup(x, m=LANE):
    return ((x + m - 1) // m) * m


# ----------------------------------------------------------------------------
# static geometry / host-side operand preparation
# ----------------------------------------------------------------------------
def _geometry(c0, hw, couts):
    """Static per-layer geometry (all Python ints).

    Activation storage layout (this layer's *input*): flattened (N, Hp*rs_in)
    where Hp includes the zero pad ROWS, each padded row stores only the
    interior columns (w, c)-interleaved in lanes [0, win*cin) and is padded to
    rs_in = roundup128(win*cin) lanes.  Pad COLUMNS are not stored (their conv
    contribution is omitted from the Toeplitz matrix => exact zero padding)."""
    geom = []
    cin, hin = c0, hw
    for li in range(4):
        s, p = STRIDES[li], PADS[li]
        hout = (hin + 2 * p - KS) // s + 1
        assert hout >= 1, "input spatial size too small for the encoder"
        geom.append(dict(
            cin=cin, cout=couts[li], stride=s, pad=p,
            win=hin, hp=hin + 2 * p,
            oh=hout, ow=hout,
            rs_in=_rup(hin * cin),          # padded flattened-row stride (input)
            owf=hout * couts[li],           # interior flattened row width (output)
        ))
        cin, hin = couts[li], hout
    return geom


def _toeplitz(w, g):
    """Expand a (F, C, 4, 4) conv weight into T of shape (4*rs_in, ow*F) so
    that (stacked 4-row slab) @ T yields one conv output row laid out (w, f).
    LHS lane kh*rs_in + wc*C + c holds padded-input element
    (row = slab row kh, padded col = wc + pad, channel c); pad columns are not
    stored, so their terms are simply absent (== zero padding)."""
    f_out, c_in, _, _ = w.shape
    t = np.zeros((KS * g['rs_in'], g['ow'] * f_out), np.float32)
    for kh in range(KS):
        for wc in range(g['win']):                       # interior input column
            for o in range(g['ow']):
                kw = wc + g['pad'] - g['stride'] * o
                if 0 <= kw < KS:
                    r0 = kh * g['rs_in'] + wc * c_in
                    t[r0:r0 + c_in, o * f_out:(o + 1) * f_out] = w[:, :, kh, kw].T
    return t


def _chan_mats(f, ow):
    """0/1 matrices: R (ow*f, f) folds the w positions of a (., ow*f) row into
    per-channel sums; Q = R^T broadcasts a per-channel vector back to (., ow*f)."""
    r = np.zeros((ow * f, f), np.float32)
    for wv in range(ow):
        r[wv * f + np.arange(f), np.arange(f)] = 1.0
    return r, np.ascontiguousarray(r.T)


def prepare_encoder_operands(params, spatial):
    """Host-side (numpy) precompute of the fused kernel's constant operands:
    Toeplitz-expanded conv weights (bf16), BN channel fold/broadcast matrices
    (f32) and the BN affine parameters.  `params` is the per-layer list of
    (w, b, gamma, beta); the conv bias b is unused because it cancels exactly
    against the training-mode BatchNorm mean subtraction."""
    ws = [np.asarray(jax.device_get(p[0]), np.float32) for p in params]
    gammas = [np.asarray(jax.device_get(p[2]), np.float32) for p in params]
    betas = [np.asarray(jax.device_get(p[3]), np.float32) for p in params]
    couts = tuple(w.shape[0] for w in ws)
    geom = _geometry(ws[0].shape[1], spatial, couts)

    tmats = [jnp.asarray(_toeplitz(ws[li], geom[li]), jnp.bfloat16)
             for li in range(4)]
    rqs = []
    for li in range(3):                                  # layer 4 has ow == 1
        r, q = _chan_mats(geom[li]['cout'], geom[li]['ow'])
        rqs += [jnp.asarray(r, jnp.float32), jnp.asarray(q, jnp.float32)]
    affs = []
    for li in range(4):
        affs += [jnp.asarray(gammas[li].reshape(1, -1), jnp.float32),
                 jnp.asarray(betas[li].reshape(1, -1), jnp.float32)]
    return (*tmats, *rqs, *affs)


# ----------------------------------------------------------------------------
# fused kernel
# ----------------------------------------------------------------------------
def _make_encoder_kernel(geom, n):
    def _bn_relu(acc, gamma_ref, beta_ref, cnt, r_ref=None, q_ref=None):
        """Training-mode BatchNorm (biased batch var) + ReLU on the f32 GEMM
        output acc (M, OWF); all statistics / sweep math in f32."""
        colsum = jnp.concatenate(
            [jnp.sum(acc, axis=0, keepdims=True),
             jnp.sum(acc * acc, axis=0, keepdims=True)], axis=0)     # (2, OWF)
        stats = (jnp.dot(colsum, r_ref[...], preferred_element_type=jnp.float32)
                 if r_ref is not None else colsum)                   # (2, F)
        stats = stats * (1.0 / cnt)
        mean = stats[0:1]
        var = jnp.maximum(stats[1:2] - mean * mean, 0.0)             # biased
        scale = gamma_ref[...] * jax.lax.rsqrt(var + BN_EPS)         # (1, F)
        shift = beta_ref[...] - mean * scale
        ss = jnp.concatenate([scale, shift], axis=0)                 # (2, F)
        if q_ref is not None:
            ss = jnp.dot(ss, q_ref[...],
                         preferred_element_type=jnp.float32)         # (2, OWF)
        return jnp.maximum(acc * ss[0:1] + ss[1:2], 0.0)

    def _unstack_store(dst_ref, y, g_out, g_next):
        """Scatter the (oh*n, owf) bf16 layer output into the next layer's flat
        padded input buffer; all stores are 128-lane aligned and owf wide."""
        rs, p = g_next['rs_in'], g_next['pad']
        owf = g_out['owf']
        for h in range(g_out['oh']):
            dst_ref[:, (h + p) * rs:(h + p) * rs + owf] = y[h * n:(h + 1) * n, :]

    def _restack(lhs_ref, src_ref, g):
        """Build the M-stacked GEMM LHS: row (o, batch) = the contiguous
        4-padded-row slab needed for output row o (lane-aligned copies)."""
        rs, s = g['rs_in'], g['stride']
        slab = KS * rs
        for o in range(g['oh']):
            lhs_ref[o * n:(o + 1) * n, 0:slab] = \
                src_ref[:, s * o * rs:s * o * rs + slab]

    def kernel(x1, t1, t2, t3, t4,
               r1, q1, r2, q2, r3, q3,
               ga1, be1, ga2, be2, ga3, be3, ga4, be4,
               o_ref, flat1, flat2, flat3, lhs):
        g1, g2, g3, g4 = geom

        # Zero the flat activation buffers once: pad rows / alignment lanes
        # must be exactly zero (interior lanes are fully overwritten).
        flat1[...] = jnp.zeros_like(flat1)
        flat2[...] = jnp.zeros_like(flat2)
        flat3[...] = jnp.zeros_like(flat3)

        # ---- layer 1: one (OH1*N, 4*rs0) x (4*rs0, OW1*F1) bf16 GEMM ----
        acc = jnp.dot(x1[...], t1[...], preferred_element_type=jnp.float32)
        y = _bn_relu(acc, ga1, be1, float(n * g1['oh'] * g1['ow']), r1, q1)
        _unstack_store(flat1, y.astype(flat1.dtype), g1, g2)

        # ---- layer 2 ----
        _restack(lhs, flat1, g2)
        acc = jnp.dot(lhs[0:g2['oh'] * n, 0:KS * g2['rs_in']], t2[...],
                      preferred_element_type=jnp.float32)
        y = _bn_relu(acc, ga2, be2, float(n * g2['oh'] * g2['ow']), r2, q2)
        _unstack_store(flat2, y.astype(flat2.dtype), g2, g3)

        # ---- layer 3 ----
        _restack(lhs, flat2, g3)
        acc = jnp.dot(lhs[0:g3['oh'] * n, 0:KS * g3['rs_in']], t3[...],
                      preferred_element_type=jnp.float32)
        y = _bn_relu(acc, ga3, be3, float(n * g3['oh'] * g3['ow']), r3, q3)
        _unstack_store(flat3, y.astype(flat3.dtype), g3, g4)

        # ---- layer 4 (valid k=4 conv -> 1x1): slab == whole flat3 buffer ----
        acc = jnp.dot(flat3[...], t4[...], preferred_element_type=jnp.float32)
        o_ref[...] = _bn_relu(acc, ga4, be4, float(n * g4['oh'] * g4['ow']))

    return kernel


# ----------------------------------------------------------------------------
# wrapper
# ----------------------------------------------------------------------------
def encoder_forward(x, ops):
    """x: (N, C, H, W) NCHW f32 (like the PyTorch module).
    ops: output of prepare_encoder_operands.  Returns (N, hidden, 1, 1)."""
    (t1, t2, t3, t4, r1, q1, r2, q2, r3, q3,
     ga1, be1, ga2, be2, ga3, be3, ga4, be4) = ops
    n, c0, h, w = x.shape
    assert h == w, "square inputs expected"
    couts = (ga1.shape[1], ga2.shape[1], ga3.shape[1], ga4.shape[1])
    geom = _geometry(c0, h, couts)
    assert geom[3]['oh'] == 1 and geom[3]['ow'] == 1, \
        "final k=4 valid conv must reduce to 1x1 (use spatial size 32)"

    g1 = geom[0]
    rs0, p1, s1, oh1 = g1['rs_in'], g1['pad'], g1['stride'], g1['oh']

    # Layout plumbing done by XLA outside the kernel:
    # NCHW -> (N, H, W*C) interior rows, lane-pad to rs0, zero-pad rows,
    # then stack the 4-row slab of every layer-1 output row into the GEMM M dim.
    xr = jnp.transpose(x, (0, 2, 3, 1)).reshape(n, h, w * c0)
    xr = jnp.pad(xr, ((0, 0), (p1, p1), (0, rs0 - w * c0)))
    slabs = jnp.stack([xr[:, s1 * o:s1 * o + KS, :] for o in range(oh1)], axis=0)
    x_stacked = slabs.reshape(oh1 * n, KS * rs0).astype(jnp.bfloat16)

    flat_shapes = [(n, geom[li]['hp'] * geom[li]['rs_in']) for li in (1, 2, 3)]
    lhs_rows = max(geom[1]['oh'], geom[2]['oh']) * n
    lhs_cols = KS * max(geom[1]['rs_in'], geom[2]['rs_in'])

    # NOTE: hidden_size < 128 makes the final o_ref store a masked partial
    # store; negligible at (N, 32).
    out = pl.pallas_call(
        _make_encoder_kernel(geom, n),
        out_shape=jax.ShapeDtypeStruct((n, couts[3]), jnp.float32),
        in_specs=[pl.BlockSpec(memory_space=pltpu.MemorySpace.VMEM)]
        * (1 + len(ops)),
        out_specs=pl.BlockSpec(memory_space=pltpu.MemorySpace.VMEM),
        scratch_shapes=[pltpu.VMEM(s, jnp.bfloat16) for s in flat_shapes]
        + [pltpu.VMEM((lhs_rows, lhs_cols), jnp.bfloat16)],
        compiler_params=pltpu.CompilerParams(
            vmem_limit_bytes=32 * 1024 * 1024),
    )(x_stacked, *ops)
    return out.reshape(n, couts[3], 1, 1)


# ----------------------------------------------------------------------------
# parameter init (mirrors the PyTorch module; deterministic)
# ----------------------------------------------------------------------------
def init_params(key, input_channels, num_filters, hidden_size):
    layer_io = [
        (num_filters, input_channels),
        (2 * num_filters, num_filters),
        (4 * num_filters, 2 * num_filters),
        (hidden_size, 4 * num_filters),
    ]
    params = []
    for i, (fout, fin) in enumerate(layer_io):
        kw_, kb, kg, kbe = jax.random.split(jax.random.fold_in(key, i), 4)
        fan_in = fin * 4 * 4
        bound = 1.0 / (fan_in ** 0.5)
        w = jax.random.uniform(kw_, (fout, fin, 4, 4), jnp.float32, -bound, bound)
        b = jax.random.uniform(kb, (fout,), jnp.float32, -bound, bound)
        gamma = jnp.ones((fout,), jnp.float32) \
            + 0.05 * jax.random.normal(kg, (fout,), jnp.float32)
        beta = 0.05 * jax.random.normal(kbe, (fout,), jnp.float32)
        params.append((w, b, gamma, beta))
    return params


# ----------------------------------------------------------------------------
# pure-JAX reference (precision-matched: bf16 conv operands, f32 elsewhere)
# ----------------------------------------------------------------------------
def reference_forward(x, params):
    act = x
    for li, (w, b, gamma, beta) in enumerate(params):
        y = jax.lax.conv_general_dilated(
            act.astype(jnp.bfloat16), w.astype(jnp.bfloat16),
            window_strides=(STRIDES[li], STRIDES[li]),
            padding=[(PADS[li], PADS[li])] * 2,
            dimension_numbers=("NCHW", "OIHW", "NCHW"),
            preferred_element_type=jnp.float32)
        y = y + b.reshape(1, -1, 1, 1)
        mean = jnp.mean(y, axis=(0, 2, 3), keepdims=True)
        var = jnp.maximum(
            jnp.mean(y * y, axis=(0, 2, 3), keepdims=True) - mean * mean, 0.0)
        y = (y - mean) * jax.lax.rsqrt(var + BN_EPS)
        y = y * gamma.reshape(1, -1, 1, 1) + beta.reshape(1, -1, 1, 1)
        act = jnp.maximum(y, 0.0)
    return act


if __name__ == "__main__":
    key = jax.random.PRNGKey(0)
    k_x, k_p = jax.random.split(key)

    # Small shapes consistent with the module: spatial 32 so the final k=4
    # valid conv (32 -> 16 -> 8 -> 4 -> 1) is well-defined.
    batch, input_channels, spatial = 2, 4, 32
    num_filters, hidden_size = 8, 32

    x = jax.random.normal(k_x, (batch, input_channels, spatial, spatial),
                          jnp.float32)
    params = init_params(k_p, input_channels, num_filters, hidden_size)
    ops = prepare_encoder_operands(params, spatial)

    fwd = jax.jit(encoder_forward)
    out = jax.block_until_ready(fwd(x, ops))

    assert out.shape == (batch, hidden_size, 1, 1), out.shape
    assert bool(jnp.all(out >= 0.0)), "ReLU output must be non-negative"

    # Sanity check against the precision-matched reference (loose thresholds:
    # a real layout/indexing bug gives O(1) errors everywhere).
    ref = reference_forward(x, params)
    diff = jnp.abs(out - ref)
    assert float(jnp.quantile(diff, 0.9)) < 2e-2, float(jnp.quantile(diff, 0.9))
    assert float(jnp.max(diff)) < 0.5, float(jnp.max(diff))

    print("KERNEL_OK")
</pallas_src>

<mosaic_0001>
module attributes {stable_mosaic.version = 11 : i64} {
  func.func @kernel(%arg0: memref<32x512xbf16, #tpu.memory_space<vmem>>, %arg1: memref<512x128xbf16, #tpu.memory_space<vmem>>, %arg2: memref<512x128xbf16, #tpu.memory_space<vmem>>, %arg3: memref<512x128xbf16, #tpu.memory_space<vmem>>, %arg4: memref<512x32xbf16, #tpu.memory_space<vmem>>, %arg5: memref<128x8xf32, #tpu.memory_space<vmem>>, %arg6: memref<8x128xf32, #tpu.memory_space<vmem>>, %arg7: memref<128x16xf32, #tpu.memory_space<vmem>>, %arg8: memref<16x128xf32, #tpu.memory_space<vmem>>, %arg9: memref<128x32xf32, #tpu.memory_space<vmem>>, %arg10: memref<32x128xf32, #tpu.memory_space<vmem>>, %arg11: memref<1x8xf32, #tpu.memory_space<vmem>>, %arg12: memref<1x8xf32, #tpu.memory_space<vmem>>, %arg13: memref<1x16xf32, #tpu.memory_space<vmem>>, %arg14: memref<1x16xf32, #tpu.memory_space<vmem>>, %arg15: memref<1x32xf32, #tpu.memory_space<vmem>>, %arg16: memref<1x32xf32, #tpu.memory_space<vmem>>, %arg17: memref<1x32xf32, #tpu.memory_space<vmem>>, %arg18: memref<1x32xf32, #tpu.memory_space<vmem>>, %arg19: memref<2x32xf32, #tpu.memory_space<vmem>>, %arg20: memref<2x2304xbf16, #tpu.memory_space<vmem>>, %arg21: memref<2x1280xbf16, #tpu.memory_space<vmem>>, %arg22: memref<2x512xbf16, #tpu.memory_space<vmem>>, %arg23: memref<16x512xbf16, #tpu.memory_space<vmem>>) attributes {dimension_semantics = [], scalar_prefetch = 0 : i64, scratch_operands = 4 : i64, tpu.core_type = #tpu.core_type<tc>} {
    %cst = arith.constant 0.000000e+00 : bf16
    %0 = vector.broadcast %cst : bf16 to vector<2x2304xbf16>
    %c0 = arith.constant 0 : index
    %c0_0 = arith.constant 0 : index
    %1 = vector.load %arg20[%c0, %c0_0] : memref<2x2304xbf16, #tpu.memory_space<vmem>>, vector<2x2304xbf16>
    tpu.vector_store %arg20[%c0, %c0_0], %0 {strides = array<i32>} : memref<2x2304xbf16, #tpu.memory_space<vmem>>, vector<2x2304xbf16>,
    %cst_1 = arith.constant 0.000000e+00 : bf16
    %2 = vector.broadcast %cst_1 : bf16 to vector<2x1280xbf16>
    %c0_2 = arith.constant 0 : index
    %c0_3 = arith.constant 0 : index
    %3 = vector.load %arg21[%c0_2, %c0_3] : memref<2x1280xbf16, #tpu.memory_space<vmem>>, vector<2x1280xbf16>
    tpu.vector_store %arg21[%c0_2, %c0_3], %2 {strides = array<i32>} : memref<2x1280xbf16, #tpu.memory_space<vmem>>, vector<2x1280xbf16>,
    %cst_4 = arith.constant 0.000000e+00 : bf16
    %4 = vector.broadcast %cst_4 : bf16 to vector<2x512xbf16>
    %c0_5 = arith.constant 0 : index
    %c0_6 = arith.constant 0 : index
    %5 = vector.load %arg22[%c0_5, %c0_6] : memref<2x512xbf16, #tpu.memory_space<vmem>>, vector<2x512xbf16>
    tpu.vector_store %arg22[%c0_5, %c0_6], %4 {strides = array<i32>} : memref<2x512xbf16, #tpu.memory_space<vmem>>, vector<2x512xbf16>,
    %c0_7 = arith.constant 0 : index
    %c0_8 = arith.constant 0 : index
    %6 = vector.load %arg0[%c0_7, %c0_8] : memref<32x512xbf16, #tpu.memory_space<vmem>>, vector<32x512xbf16>
    %c0_9 = arith.constant 0 : index
    %c0_10 = arith.constant 0 : index
    %7 = vector.load %arg1[%c0_9, %c0_10] : memref<512x128xbf16, #tpu.memory_space<vmem>>, vector<512x128xbf16>
    %cst_11 = arith.constant dense<0.000000e+00> : vector<32x128xf32>
    %8 = tpu.matmul %6, %7, %cst_11 {dimension_numbers = #tpu.dot_dimension_numbers<[1], [0], [0], [1], [0, 0, 1, 1], [], []>} : vector<32x512xbf16>, vector<512x128xbf16>, vector<32x128xf32> -> vector<32x128xf32>
    %cst_12 = arith.constant dense<0.000000e+00> : vector<128xf32>
    %9 = vector.multi_reduction <add>, %8, %cst_12 [0] : vector<32x128xf32> to vector<128xf32>
    %10 = vector.shape_cast %9 : vector<128xf32> to vector<1x128xf32>
    %11 = arith.mulf %8, %8 : vector<32x128xf32>
    %cst_13 = arith.constant dense<0.000000e+00> : vector<128xf32>
    %12 = vector.multi_reduction <add>, %11, %cst_13 [0] : vector<32x128xf32> to vector<128xf32>
    %13 = vector.shape_cast %12 : vector<128xf32> to vector<1x128xf32>
    %14 = tpu.concatenate %10, %13 in 0 : vector<1x128xf32>, vector<1x128xf32> -> vector<2x128xf32>
    %c0_14 = arith.constant 0 : index
    %c0_15 = arith.constant 0 : index
    %15 = vector.load %arg5[%c0_14, %c0_15] : memref<128x8xf32, #tpu.memory_space<vmem>>, vector<128x8xf32>
    %cst_16 = arith.constant dense<0.000000e+00> : vector<2x8xf32>
    %16 = tpu.matmul %14, %15, %cst_16 {dimension_numbers = #tpu.dot_dimension_numbers<[1], [0], [0], [1], [0, 0, 1, 1], [], []>} : vector<2x128xf32>, vector<128x8xf32>, vector<2x8xf32> -> vector<2x8xf32>
    %cst_17 = arith.constant 0.001953125 : f32
    %17 = vector.broadcast %cst_17 : f32 to vector<2x8xf32>
    %18 = arith.mulf %16, %17 : vector<2x8xf32>
    %19 = vector.extract_strided_slice %18 {offsets = [0, 0], sizes = [1, 8], strides = [1, 1]} : vector<2x8xf32> to vector<1x8xf32>
    %20 = vector.extract_strided_slice %18 {offsets = [1, 0], sizes = [1, 8], strides = [1, 1]} : vector<2x8xf32> to vector<1x8xf32>
    %21 = arith.mulf %19, %19 : vector<1x8xf32>
    %22 = arith.subf %20, %21 : vector<1x8xf32>
    %cst_18 = arith.constant 0.000000e+00 : f32
    %23 = vector.broadcast %cst_18 : f32 to vector<1x8xf32>
    %24 = arith.maximumf %22, %23 : vector<1x8xf32>
    %c0_19 = arith.constant 0 : index
    %c0_20 = arith.constant 0 : index
    %25 = vector.load %arg11[%c0_19, %c0_20] : memref<1x8xf32, #tpu.memory_space<vmem>>, vector<1x8xf32>
    %cst_21 = arith.constant 9.99999974E-6 : f32
    %26 = vector.broadcast %cst_21 : f32 to vector<1x8xf32>
    %27 = arith.addf %24, %26 : vector<1x8xf32>
    %28 = math.rsqrt %27 : vector<1x8xf32>
    %29 = arith.mulf %25, %28 : vector<1x8xf32>
    %c0_22 = arith.constant 0 : index
    %c0_23 = arith.constant 0 : index
    %30 = vector.load %arg12[%c0_22, %c0_23] : memref<1x8xf32, #tpu.memory_space<vmem>>, vector<1x8xf32>
    %31 = arith.mulf %19, %29 : vector<1x8xf32>
    %32 = arith.subf %30, %31 : vector<1x8xf32>
    %33 = tpu.concatenate %29, %32 in 0 : vector<1x8xf32>, vector<1x8xf32> -> vector<2x8xf32>
    %c0_24 = arith.constant 0 : index
    %c0_25 = arith.constant 0 : index
    %34 = vector.load %arg6[%c0_24, %c0_25] : memref<8x128xf32, #tpu.memory_space<vmem>>, vector<8x128xf32>
    %cst_26 = arith.constant dense<0.000000e+00> : vector<2x128xf32>
    %35 = tpu.matmul %33, %34, %cst_26 {dimension_numbers = #tpu.dot_dimension_numbers<[1], [0], [0], [1], [0, 0, 1, 1], [], []>} : vector<2x8xf32>, vector<8x128xf32>, vector<2x128xf32> -> vector<2x128xf32>
    %36 = vector.extract_strided_slice %35 {offsets = [0, 0], sizes = [1, 128], strides = [1, 1]} : vector<2x128xf32> to vector<1x128xf32>
    %37 = vector.broadcast %36 : vector<1x128xf32> to vector<32x128xf32>
    %38 = arith.mulf %8, %37 : vector<32x128xf32>
    %39 = vector.extract_strided_slice %35 {offsets = [1, 0], sizes = [1, 128], strides = [1, 1]} : vector<2x128xf32> to vector<1x128xf32>
    %40 = vector.broadcast %39 : vector<1x128xf32> to vector<32x128xf32>
    %41 = arith.addf %38, %40 : vector<32x128xf32>
    %cst_27 = arith.constant 0.000000e+00 : f32
    %42 = vector.broadcast %cst_27 : f32 to vector<32x128xf32>
    %43 = arith.maximumf %41, %42 : vector<32x128xf32>
    %44 = arith.truncf %43 : vector<32x128xf32> to vector<32x128xbf16>
    %45 = vector.extract_strided_slice %44 {offsets = [0, 0], sizes = [2, 128], strides = [1, 1]} : vector<32x128xbf16> to vector<2x128xbf16>
    %c0_28 = arith.constant 0 : index
    %c128 = arith.constant 128 : index
    %46 = vector.load %arg20[%c0_28, %c128] : memref<2x2304xbf16, #tpu.memory_space<vmem>>, vector<2x128xbf16>
    tpu.vector_store %arg20[%c0_28, %c128], %45 {strides = array<i32>} : memref<2x2304xbf16, #tpu.memory_space<vmem>>, vector<2x128xbf16>,
    %47 = vector.extract_strided_slice %44 {offsets = [2, 0], sizes = [2, 128], strides = [1, 1]} : vector<32x128xbf16> to vector<2x128xbf16>
    %c0_29 = arith.constant 0 : index
    %c256 = arith.constant 256 : index
    %48 = vector.load %arg20[%c0_29, %c256] : memref<2x2304xbf16, #tpu.memory_space<vmem>>, vector<2x128xbf16>
    tpu.vector_store %arg20[%c0_29, %c256], %47 {strides = array<i32>} : memref<2x2304xbf16, #tpu.memory_space<vmem>>, vector<2x128xbf16>,
    %49 = vector.extract_strided_slice %44 {offsets = [4, 0], sizes = [2, 128], strides = [1, 1]} : vector<32x128xbf16> to vector<2x128xbf16>
    %c0_30 = arith.constant 0 : index
    %c384 = arith.constant 384 : index
    %50 = vector.load %arg20[%c0_30, %c384] : memref<2x2304xbf16, #tpu.memory_space<vmem>>, vector<2x128xbf16>
    tpu.vector_store %arg20[%c0_30, %c384], %49 {strides = array<i32>} : memref<2x2304xbf16, #tpu.memory_space<vmem>>, vector<2x128xbf16>,
    %51 = vector.extract_strided_slice %44 {offsets = [6, 0], sizes = [2, 128], strides = [1, 1]} : vector<32x128xbf16> to vector<2x128xbf16>
    %c0_31 = arith.constant 0 : index
    %c512 = arith.constant 512 : index
    %52 = vector.load %arg20[%c0_31, %c512] : memref<2x2304xbf16, #tpu.memory_space<vmem>>, vector<2x128xbf16>
    tpu.vector_store %arg20[%c0_31, %c512], %51 {strides = array<i32>} : memref<2x2304xbf16, #tpu.memory_space<vmem>>, vector<2x128xbf16>,
    %53 = vector.extract_strided_slice %44 {offsets = [8, 0], sizes = [2, 128], strides = [1, 1]} : vector<32x128xbf16> to vector<2x128xbf16>
    %c0_32 = arith.constant 0 : index
    %c640 = arith.constant 640 : index
    %54 = vector.load %arg20[%c0_32, %c640] : memref<2x2304xbf16, #tpu.memory_space<vmem>>, vector<2x128xbf16>
    tpu.vector_store %arg20[%c0_32, %c640], %53 {strides = array<i32>} : memref<2x2304xbf16, #tpu.memory_space<vmem>>, vector<2x128xbf16>,
    %55 = vector.extract_strided_slice %44 {offsets = [10, 0], sizes = [2, 128], strides = [1, 1]} : vector<32x128xbf16> to vector<2x128xbf16>
    %c0_33 = arith.constant 0 : index
    %c768 = arith.constant 768 : index
    %56 = vector.load %arg20[%c0_33, %c768] : memref<2x2304xbf16, #tpu.memory_space<vmem>>, vector<2x128xbf16>
    tpu.vector_store %arg20[%c0_33, %c768], %55 {strides = array<i32>} : memref<2x2304xbf16, #tpu.memory_space<vmem>>, vector<2x128xbf16>,
    %57 = vector.extract_strided_slice %44 {offsets = [12, 0], sizes = [2, 128], strides = [1, 1]} : vector<32x128xbf16> to vector<2x128xbf16>
    %c0_34 = arith.constant 0 : index
    %c896 = arith.constant 896 : index
    %58 = vector.load %arg20[%c0_34, %c896] : memref<2x2304xbf16, #tpu.memory_space<vmem>>, vector<2x128xbf16>
    tpu.vector_store %arg20[%c0_34, %c896], %57 {strides = array<i32>} : memref<2x2304xbf16, #tpu.memory_space<vmem>>, vector<2x128xbf16>,
    %59 = vector.extract_strided_slice %44 {offsets = [14, 0], sizes = [2, 128], strides = [1, 1]} : vector<32x128xbf16> to vector<2x128xbf16>
    %c0_35 = arith.constant 0 : index
    %c1024 = arith.constant 1024 : index
    %60 = vector.load %arg20[%c0_35, %c1024] : memref<2x2304xbf16, #tpu.memory_space<vmem>>, vector<2x128xbf16>
    tpu.vector_store %arg20[%c0_35, %c1024], %59 {strides = array<i32>} : memref<2x2304xbf16, #tpu.memory_space<vmem>>, vector<2x128xbf16>,
    %61 = vector.extract_strided_slice %44 {offsets = [16, 0], sizes = [2, 128], strides = [1, 1]} : vector<32x128xbf16> to vector<2x128xbf16>
    %c0_36 = arith.constant 0 : index
    %c1152 = arith.constant 1152 : index
    %62 = vector.load %arg20[%c0_36, %c1152] : memref<2x2304xbf16, #tpu.memory_space<vmem>>, vector<2x128xbf16>
    tpu.vector_store %arg20[%c0_36, %c1152], %61 {strides = array<i32>} : memref<2x2304xbf16, #tpu.memory_space<vmem>>, vector<2x128xbf16>,
    %63 = vector.extract_strided_slice %44 {offsets = [18, 0], sizes = [2, 128], strides = [1, 1]} : vector<32x128xbf16> to vector<2x128xbf16>
    %c0_37 = arith.constant 0 : index
    %c1280 = arith.constant 1280 : index
    %64 = vector.load %arg20[%c0_37, %c1280] : memref<2x2304xbf16, #tpu.memory_space<vmem>>, vector<2x128xbf16>
    tpu.vector_store %arg20[%c0_37, %c1280], %63 {strides = array<i32>} : memref<2x2304xbf16, #tpu.memory_space<vmem>>, vector<2x128xbf16>,
    %65 = vector.extract_strided_slice %44 {offsets = [20, 0], sizes = [2, 128], strides = [1, 1]} : vector<32x128xbf16> to vector<2x128xbf16>
    %c0_38 = arith.constant 0 : index
    %c1408 = arith.constant 1408 : index
    %66 = vector.load %arg20[%c0_38, %c1408] : memref<2x2304xbf16, #tpu.memory_space<vmem>>, vector<2x128xbf16>
    tpu.vector_store %arg20[%c0_38, %c1408], %65 {strides = array<i32>} : memref<2x2304xbf16, #tpu.memory_space<vmem>>, vector<2x128xbf16>,
    %67 = vector.extract_strided_slice %44 {offsets = [22, 0], sizes = [2, 128], strides = [1, 1]} : vector<32x128xbf16> to vector<2x128xbf16>
    %c0_39 = arith.constant 0 : index
    %c1536 = arith.constant 1536 : index
    %68 = vector.load %arg20[%c0_39, %c1536] : memref<2x2304xbf16, #tpu.memory_space<vmem>>, vector<2x128xbf16>
    tpu.vector_store %arg20[%c0_39, %c1536], %67 {strides = array<i32>} : memref<2x2304xbf16, #tpu.memory_space<vmem>>, vector<2x128xbf16>,
    %69 = vector.extract_strided_slice %44 {offsets = [24, 0], sizes = [2, 128], strides = [1, 1]} : vector<32x128xbf16> to vector<2x128xbf16>
    %c0_40 = arith.constant 0 : index
    %c1664 = arith.constant 1664 : index
    %70 = vector.load %arg20[%c0_40, %c1664] : memref<2x2304xbf16, #tpu.memory_space<vmem>>, vector<2x128xbf16>
    tpu.vector_store %arg20[%c0_40, %c1664], %69 {strides = array<i32>} : memref<2x2304xbf16, #tpu.memory_space<vmem>>, vector<2x128xbf16>,
    %71 = vector.extract_strided_slice %44 {offsets = [26, 0], sizes = [2, 128], strides = [1, 1]} : vector<32x128xbf16> to vector<2x128xbf16>
    %c0_41 = arith.constant 0 : index
    %c1792 = arith.constant 1792 : index
    %72 = vector.load %arg20[%c0_41, %c1792] : memref<2x2304xbf16, #tpu.memory_space<vmem>>, vector<2x128xbf16>
    tpu.vector_store %arg20[%c0_41, %c1792], %71 {strides = array<i32>} : memref<2x2304xbf16, #tpu.memory_space<vmem>>, vector<2x128xbf16>,
    %73 = vector.extract_strided_slice %44 {offsets = [28, 0], sizes = [2, 128], strides = [1, 1]} : vector<32x128xbf16> to vector<2x128xbf16>
    %c0_42 = arith.constant 0 : index
    %c1920 = arith.constant 1920 : index
    %74 = vector.load %arg20[%c0_42, %c1920] : memref<2x2304xbf16, #tpu.memory_space<vmem>>, vector<2x128xbf16>
    tpu.vector_store %arg20[%c0_42, %c1920], %73 {strides = array<i32>} : memref<2x2304xbf16, #tpu.memory_space<vmem>>, vector<2x128xbf16>,
    %75 = vector.extract_strided_slice %44 {offsets = [30, 0], sizes = [2, 128], strides = [1, 1]} : vector<32x128xbf16> to vector<2x128xbf16>
    %c0_43 = arith.constant 0 : index
    %c2048 = arith.constant 2048 : index
    %76 = vector.load %arg20[%c0_43, %c2048] : memref<2x2304xbf16, #tpu.memory_space<vmem>>, vector<2x128xbf16>
    tpu.vector_store %arg20[%c0_43, %c2048], %75 {strides = array<i32>} : memref<2x2304xbf16, #tpu.memory_space<vmem>>, vector<2x128xbf16>,
    %c0_44 = arith.constant 0 : index
    %c0_45 = arith.constant 0 : index
    %77 = vector.load %arg20[%c0_44, %c0_45] : memref<2x2304xbf16, #tpu.memory_space<vmem>>, vector<2x512xbf16>
    %c0_46 = arith.constant 0 : index
    %c0_47 = arith.constant 0 : index
    %78 = vector.load %arg23[%c0_46, %c0_47] : memref<16x512xbf16, #tpu.memory_space<vmem>>, vector<2x512xbf16>
    tpu.vector_store %arg23[%c0_46, %c0_47], %77 {strides = array<i32>} : memref<16x512xbf16, #tpu.memory_space<vmem>>, vector<2x512xbf16>,
    %c0_48 = arith.constant 0 : index
    %c256_49 = arith.constant 256 : index
    %79 = vector.load %arg20[%c0_48, %c256_49] : memref<2x2304xbf16, #tpu.memory_space<vmem>>, vector<2x512xbf16>
    %c2 = arith.constant 2 : index
    %c0_50 = arith.constant 0 : index
    %80 = vector.load %arg23[%c2, %c0_50] : memref<16x512xbf16, #tpu.memory_space<vmem>>, vector<2x512xbf16>
    tpu.vector_store %arg23[%c2, %c0_50], %79 {strides = array<i32>} : memref<16x512xbf16, #tpu.memory_space<vmem>>, vector<2x512xbf16>,
    %c0_51 = arith.constant 0 : index
    %c512_52 = arith.constant 512 : index
    %81 = vector.load %arg20[%c0_51, %c512_52] : memref<2x2304xbf16, #tpu.memory_space<vmem>>, vector<2x512xbf16>
    %c4 = arith.constant 4 : index
    %c0_53 = arith.constant 0 : index
    %82 = vector.load %arg23[%c4, %c0_53] : memref<16x512xbf16, #tpu.memory_space<vmem>>, vector<2x512xbf16>
    tpu.vector_store %arg23[%c4, %c0_53], %81 {strides = array<i32>} : memref<16x512xbf16, #tpu.memory_space<vmem>>, vector<2x512xbf16>,
    %c0_54 = arith.constant 0 : index
    %c768_55 = arith.constant 768 : index
    %83 = vector.load %arg20[%c0_54, %c768_55] : memref<2x2304xbf16, #tpu.memory_space<vmem>>, vector<2x512xbf16>
    %c6 = arith.constant 6 : index
    %c0_56 = arith.constant 0 : index
    %84 = vector.load %arg23[%c6, %c0_56] : memref<16x512xbf16, #tpu.memory_space<vmem>>, vector<2x512xbf16>
    tpu.vector_store %arg23[%c6, %c0_56], %83 {strides = array<i32>} : memref<16x512xbf16, #tpu.memory_space<vmem>>, vector<2x512xbf16>,
    %c0_57 = arith.constant 0 : index
    %c1024_58 = arith.constant 1024 : index
    %85 = vector.load %arg20[%c0_57, %c1024_58] : memref<2x2304xbf16, #tpu.memory_space<vmem>>, vector<2x512xbf16>
    %c8 = arith.constant 8 : index
    %c0_59 = arith.constant 0 : index
    %86 = vector.load %arg23[%c8, %c0_59] : memref<16x512xbf16, #tpu.memory_space<vmem>>, vector<2x512xbf16>
    tpu.vector_store %arg23[%c8, %c0_59], %85 {strides = array<i32>} : memref<16x512xbf16, #tpu.memory_space<vmem>>, vector<2x512xbf16>,
    %c0_60 = arith.constant 0 : index
    %c1280_61 = arith.constant 1280 : index
    %87 = vector.load %arg20[%c0_60, %c1280_61] : memref<2x2304xbf16, #tpu.memory_space<vmem>>, vector<2x512xbf16>
    %c10 = arith.constant 10 : index
    %c0_62 = arith.constant 0 : index
    %88 = vector.load %arg23[%c10, %c0_62] : memref<16x512xbf16, #tpu.memory_space<vmem>>, vector<2x512xbf16>
    tpu.vector_store %arg23[%c10, %c0_62], %87 {strides = array<i32>} : memref<16x512xbf16, #tpu.memory_space<vmem>>, vector<2x512xbf16>,
    %c0_63 = arith.constant 0 : index
    %c1536_64 = arith.constant 1536 : index
    %89 = vector.load %arg20[%c0_63, %c1536_64] : memref<2x2304xbf16, #tpu.memory_space<vmem>>, vector<2x512xbf16>
    %c12 = arith.constant 12 : index
    %c0_65 = arith.constant 0 : index
    %90 = vector.load %arg23[%c12, %c0_65] : memref<16x512xbf16, #tpu.memory_space<vmem>>, vector<2x512xbf16>
    tpu.vector_store %arg23[%c12, %c0_65], %89 {strides = array<i32>} : memref<16x512xbf16, #tpu.memory_space<vmem>>, vector<2x512xbf16>,
    %c0_66 = arith.constant 0 : index
    %c1792_67 = arith.constant 1792 : index
    %91 = vector.load %arg20[%c0_66, %c1792_67] : memref<2x2304xbf16, #tpu.memory_space<vmem>>, vector<2x512xbf16>
    %c14 = arith.constant 14 : index
    %c0_68 = arith.constant 0 : index
    %92 = vector.load %arg23[%c14, %c0_68] : memref<16x512xbf16, #tpu.memory_space<vmem>>, vector<2x512xbf16>
    tpu.vector_store %arg23[%c14, %c0_68], %91 {strides = array<i32>} : memref<16x512xbf16, #tpu.memory_space<vmem>>, vector<2x512xbf16>,
    %c0_69 = arith.constant 0 : index
    %c0_70 = arith.constant 0 : index
    %93 = vector.load %arg23[%c0_69, %c0_70] : memref<16x512xbf16, #tpu.memory_space<vmem>>, vector<16x512xbf16>
    %c0_71 = arith.constant 0 : index
    %c0_72 = arith.constant 0 : index
    %94 = vector.load %arg2[%c0_71, %c0_72] : memref<512x128xbf16, #tpu.memory_space<vmem>>, vector<512x128xbf16>
    %cst_73 = arith.constant dense<0.000000e+00> : vector<16x128xf32>
    %95 = tpu.matmul %93, %94, %cst_73 {dimension_numbers = #tpu.dot_dimension_numbers<[1], [0], [0], [1], [0, 0, 1, 1], [], []>} : vector<16x512xbf16>, vector<512x128xbf16>, vector<16x128xf32> -> vector<16x128xf32>
    %cst_74 = arith.constant dense<0.000000e+00> : vector<128xf32>
    %96 = vector.multi_reduction <add>, %95, %cst_74 [0] : vector<16x128xf32> to vector<128xf32>
    %97 = vector.shape_cast %96 : vector<128xf32> to vector<1x128xf32>
    %98 = arith.mulf %95, %95 : vector<16x128xf32>
    %cst_75 = arith.constant dense<0.000000e+00> : vector<128xf32>
    %99 = vector.multi_reduction <add>, %98, %cst_75 [0] : vector<16x128xf32> to vector<128xf32>
    %100 = vector.shape_cast %99 : vector<128xf32> to vector<1x128xf32>
    %101 = tpu.concatenate %97, %100 in 0 : vector<1x128xf32>, vector<1x128xf32> -> vector<2x128xf32>
    %c0_76 = arith.constant 0 : index
    %c0_77 = arith.constant 0 : index
    %102 = vector.load %arg7[%c0_76, %c0_77] : memref<128x16xf32, #tpu.memory_space<vmem>>, vector<128x16xf32>
    %cst_78 = arith.constant dense<0.000000e+00> : vector<2x16xf32>
    %103 = tpu.matmul %101, %102, %cst_78 {dimension_numbers = #tpu.dot_dimension_numbers<[1], [0], [0], [1], [0, 0, 1, 1], [], []>} : vector<2x128xf32>, vector<128x16xf32>, vector<2x16xf32> -> vector<2x16xf32>
    %cst_79 = arith.constant 7.812500e-03 : f32
    %104 = vector.broadcast %cst_79 : f32 to vector<2x16xf32>
    %105 = arith.mulf %103, %104 : vector<2x16xf32>
    %106 = vector.extract_strided_slice %105 {offsets = [0, 0], sizes = [1, 16], strides = [1, 1]} : vector<2x16xf32> to vector<1x16xf32>
    %107 = vector.extract_strided_slice %105 {offsets = [1, 0], sizes = [1, 16], strides = [1, 1]} : vector<2x16xf32> to vector<1x16xf32>
    %108 = arith.mulf %106, %106 : vector<1x16xf32>
    %109 = arith.subf %107, %108 : vector<1x16xf32>
    %cst_80 = arith.constant 0.000000e+00 : f32
    %110 = vector.broadcast %cst_80 : f32 to vector<1x16xf32>
    %111 = arith.maximumf %109, %110 : vector<1x16xf32>
    %c0_81 = arith.constant 0 : index
    %c0_82 = arith.constant 0 : index
    %112 = vector.load %arg13[%c0_81, %c0_82] : memref<1x16xf32, #tpu.memory_space<vmem>>, vector<1x16xf32>
    %cst_83 = arith.constant 9.99999974E-6 : f32
    %113 = vector.broadcast %cst_83 : f32 to vector<1x16xf32>
    %114 = arith.addf %111, %113 : vector<1x16xf32>
    %115 = math.rsqrt %114 : vector<1x16xf32>
    %116 = arith.mulf %112, %115 : vector<1x16xf32>
    %c0_84 = arith.constant 0 : index
    %c0_85 = arith.constant 0 : index
    %117 = vector.load %arg14[%c0_84, %c0_85] : memref<1x16xf32, #tpu.memory_space<vmem>>, vector<1x16xf32>
    %118 = arith.mulf %106, %116 : vector<1x16xf32>
    %119 = arith.subf %117, %118 : vector<1x16xf32>
    %120 = tpu.concatenate %116, %119 in 0 : vector<1x16xf32>, vector<1x16xf32> -> vector<2x16xf32>
    %c0_86 = arith.constant 0 : index
    %c0_87 = arith.constant 0 : index
    %121 = vector.load %arg8[%c0_86, %c0_87] : memref<16x128xf32, #tpu.memory_space<vmem>>, vector<16x128xf32>
    %cst_88 = arith.constant dense<0.000000e+00> : vector<2x128xf32>
    %122 = tpu.matmul %120, %121, %cst_88 {dimension_numbers = #tpu.dot_dimension_numbers<[1], [0], [0], [1], [0, 0, 1, 1], [], []>} : vector<2x16xf32>, vector<16x128xf32>, vector<2x128xf32> -> vector<2x128xf32>
    %123 = vector.extract_strided_slice %122 {offsets = [0, 0], sizes = [1, 128], strides = [1, 1]} : vector<2x128xf32> to vector<1x128xf32>
    %124 = vector.broadcast %123 : vector<1x128xf32> to vector<16x128xf32>
    %125 = arith.mulf %95, %124 : vector<16x128xf32>
    %126 = vector.extract_strided_slice %122 {offsets = [1, 0], sizes = [1, 128], strides = [1, 1]} : vector<2x128xf32> to vector<1x128xf32>
    %127 = vector.broadcast %126 : vector<1x128xf32> to vector<16x128xf32>
    %128 = arith.addf %125, %127 : vector<16x128xf32>
    %cst_89 = arith.constant 0.000000e+00 : f32
    %129 = vector.broadcast %cst_89 : f32 to vector<16x128xf32>
    %130 = arith.maximumf %128, %129 : vector<16x128xf32>
    %131 = arith.truncf %130 : vector<16x128xf32> to vector<16x128xbf16>
    %132 = vector.extract_strided_slice %131 {offsets = [0, 0], sizes = [2, 128], strides = [1, 1]} : vector<16x128xbf16> to vector<2x128xbf16>
    %c0_90 = arith.constant 0 : index
    %c128_91 = arith.constant 128 : index
    %133 = vector.load %arg21[%c0_90, %c128_91] : memref<2x1280xbf16, #tpu.memory_space<vmem>>, vector<2x128xbf16>
    tpu.vector_store %arg21[%c0_90, %c128_91], %132 {strides = array<i32>} : memref<2x1280xbf16, #tpu.memory_space<vmem>>, vector<2x128xbf16>,
    %134 = vector.extract_strided_slice %131 {offsets = [2, 0], sizes = [2, 128], strides = [1, 1]} : vector<16x128xbf16> to vector<2x128xbf16>
    %c0_92 = arith.constant 0 : index
    %c256_93 = arith.constant 256 : index
    %135 = vector.load %arg21[%c0_92, %c256_93] : memref<2x1280xbf16, #tpu.memory_space<vmem>>, vector<2x128xbf16>
    tpu.vector_store %arg21[%c0_92, %c256_93], %134 {strides = array<i32>} : memref<2x1280xbf16, #tpu.memory_space<vmem>>, vector<2x128xbf16>,
    %136 = vector.extract_strided_slice %131 {offsets = [4, 0], sizes = [2, 128], strides = [1, 1]} : vector<16x128xbf16> to vector<2x128xbf16>
    %c0_94 = arith.constant 0 : index
    %c384_95 = arith.constant 384 : index
    %137 = vector.load %arg21[%c0_94, %c384_95] : memref<2x1280xbf16, #tpu.memory_space<vmem>>, vector<2x128xbf16>
    tpu.vector_store %arg21[%c0_94, %c384_95], %136 {strides = array<i32>} : memref<2x1280xbf16, #tpu.memory_space<vmem>>, vector<2x128xbf16>,
    %138 = vector.extract_strided_slice %131 {offsets = [6, 0], sizes = [2, 128], strides = [1, 1]} : vector<16x128xbf16> to vector<2x128xbf16>
    %c0_96 = arith.constant 0 : index
    %c512_97 = arith.constant 512 : index
    %139 = vector.load %arg21[%c0_96, %c512_97] : memref<2x1280xbf16, #tpu.memory_space<vmem>>, vector<2x128xbf16>
    tpu.vector_store %arg21[%c0_96, %c512_97], %138 {strides = array<i32>} : memref<2x1280xbf16, #tpu.memory_space<vmem>>, vector<2x128xbf16>,
    %140 = vector.extract_strided_slice %131 {offsets = [8, 0], sizes = [2, 128], strides = [1, 1]} : vector<16x128xbf16> to vector<2x128xbf16>
    %c0_98 = arith.constant 0 : index
    %c640_99 = arith.constant 640 : index
    %141 = vector.load %arg21[%c0_98, %c640_99] : memref<2x1280xbf16, #tpu.memory_space<vmem>>, vector<2x128xbf16>
    tpu.vector_store %arg21[%c0_98, %c640_99], %140 {strides = array<i32>} : memref<2x1280xbf16, #tpu.memory_space<vmem>>, vector<2x128xbf16>,
    %142 = vector.extract_strided_slice %131 {offsets = [10, 0], sizes = [2, 128], strides = [1, 1]} : vector<16x128xbf16> to vector<2x128xbf16>
    %c0_100 = arith.constant 0 : index
    %c768_101 = arith.constant 768 : index
    %143 = vector.load %arg21[%c0_100, %c768_101] : memref<2x1280xbf16, #tpu.memory_space<vmem>>, vector<2x128xbf16>
    tpu.vector_store %arg21[%c0_100, %c768_101], %142 {strides = array<i32>} : memref<2x1280xbf16, #tpu.memory_space<vmem>>, vector<2x128xbf16>,
    %144 = vector.extract_strided_slice %131 {offsets = [12, 0], sizes = [2, 128], strides = [1, 1]} : vector<16x128xbf16> to vector<2x128xbf16>
    %c0_102 = arith.constant 0 : index
    %c896_103 = arith.constant 896 : index
    %145 = vector.load %arg21[%c0_102, %c896_103] : memref<2x1280xbf16, #tpu.memory_space<vmem>>, vector<2x128xbf16>
    tpu.vector_store %arg21[%c0_102, %c896_103], %144 {strides = array<i32>} : memref<2x1280xbf16, #tpu.memory_space<vmem>>, vector<2x128xbf16>,
    %146 = vector.extract_strided_slice %131 {offsets = [14, 0], sizes = [2, 128], strides = [1, 1]} : vector<16x128xbf16> to vector<2x128xbf16>
    %c0_104 = arith.constant 0 : index
    %c1024_105 = arith.constant 1024 : index
    %147 = vector.load %arg21[%c0_104, %c1024_105] : memref<2x1280xbf16, #tpu.memory_space<vmem>>, vector<2x128xbf16>
    tpu.vector_store %arg21[%c0_104, %c1024_105], %146 {strides = array<i32>} : memref<2x1280xbf16, #tpu.memory_space<vmem>>, vector<2x128xbf16>,
    %c0_106 = arith.constant 0 : index
    %c0_107 = arith.constant 0 : index
    %148 = vector.load %arg21[%c0_106, %c0_107] : memref<2x1280xbf16, #tpu.memory_space<vmem>>, vector<2x512xbf16>
    %c0_108 = arith.constant 0 : index
    %c0_109 = arith.constant 0 : index
    %149 = vector.load %arg23[%c0_108, %c0_109] : memref<16x512xbf16, #tpu.memory_space<vmem>>, vector<2x512xbf16>
    tpu.vector_store %arg23[%c0_108, %c0_109], %148 {strides = array<i32>} : memref<16x512xbf16, #tpu.memory_space<vmem>>, vector<2x512xbf16>,
    %c0_110 = arith.constant 0 : index
    %c256_111 = arith.constant 256 : index
    %150 = vector.load %arg21[%c0_110, %c256_111] : memref<2x1280xbf16, #tpu.memory_space<vmem>>, vector<2x512xbf16>
    %c2_112 = arith.constant 2 : index
    %c0_113 = arith.constant 0 : index
    %151 = vector.load %arg23[%c2_112, %c0_113] : memref<16x512xbf16, #tpu.memory_space<vmem>>, vector<2x512xbf16>
    tpu.vector_store %arg23[%c2_112, %c0_113], %150 {strides = array<i32>} : memref<16x512xbf16, #tpu.memory_space<vmem>>, vector<2x512xbf16>,
    %c0_114 = arith.constant 0 : index
    %c512_115 = arith.constant 512 : index
    %152 = vector.load %arg21[%c0_114, %c512_115] : memref<2x1280xbf16, #tpu.memory_space<vmem>>, vector<2x512xbf16>
    %c4_116 = arith.constant 4 : index
    %c0_117 = arith.constant 0 : index
    %153 = vector.load %arg23[%c4_116, %c0_117] : memref<16x512xbf16, #tpu.memory_space<vmem>>, vector<2x512xbf16>
    tpu.vector_store %arg23[%c4_116, %c0_117], %152 {strides = array<i32>} : memref<16x512xbf16, #tpu.memory_space<vmem>>, vector<2x512xbf16>,
    %c0_118 = arith.constant 0 : index
    %c768_119 = arith.constant 768 : index
    %154 = vector.load %arg21[%c0_118, %c768_119] : memref<2x1280xbf16, #tpu.memory_space<vmem>>, vector<2x512xbf16>
    %c6_120 = arith.constant 6 : index
    %c0_121 = arith.constant 0 : index
    %155 = vector.load %arg23[%c6_120, %c0_121] : memref<16x512xbf16, #tpu.memory_space<vmem>>, vector<2x512xbf16>
    tpu.vector_store %arg23[%c6_120, %c0_121], %154 {strides = array<i32>} : memref<16x512xbf16, #tpu.memory_space<vmem>>, vector<2x512xbf16>,
    %c0_122 = arith.constant 0 : index
    %c0_123 = arith.constant 0 : index
    %156 = vector.load %arg23[%c0_122, %c0_123] : memref<16x512xbf16, #tpu.memory_space<vmem>>, vector<8x512xbf16>
    %c0_124 = arith.constant 0 : index
    %c0_125 = arith.constant 0 : index
    %157 = vector.load %arg3[%c0_124, %c0_125] : memref<512x128xbf16, #tpu.memory_space<vmem>>, vector<512x128xbf16>
    %cst_126 = arith.constant dense<0.000000e+00> : vector<8x128xf32>
    %158 = tpu.matmul %156, %157, %cst_126 {dimension_numbers = #tpu.dot_dimension_numbers<[1], [0], [0], [1], [0, 0, 1, 1], [], []>} : vector<8x512xbf16>, vector<512x128xbf16>, vector<8x128xf32> -> vector<8x128xf32>
    %cst_127 = arith.constant dense<0.000000e+00> : vector<128xf32>
    %159 = vector.multi_reduction <add>, %158, %cst_127 [0] : vector<8x128xf32> to vector<128xf32>
    %160 = vector.shape_cast %159 : vector<128xf32> to vector<1x128xf32>
    %161 = arith.mulf %158, %158 : vector<8x128xf32>
    %cst_128 = arith.constant dense<0.000000e+00> : vector<128xf32>
    %162 = vector.multi_reduction <add>, %161, %cst_128 [0] : vector<8x128xf32> to vector<128xf32>
    %163 = vector.shape_cast %162 : vector<128xf32> to vector<1x128xf32>
    %164 = tpu.concatenate %160, %163 in 0 : vector<1x128xf32>, vector<1x128xf32> -> vector<2x128xf32>
    %c0_129 = arith.constant 0 : index
    %c0_130 = arith.constant 0 : index
    %165 = vector.load %arg9[%c0_129, %c0_130] : memref<128x32xf32, #tpu.memory_space<vmem>>, vector<128x32xf32>
    %cst_131 = arith.constant dense<0.000000e+00> : vector<2x32xf32>
    %166 = tpu.matmul %164, %165, %cst_131 {dimension_numbers = #tpu.dot_dimension_numbers<[1], [0], [0], [1], [0, 0, 1, 1], [], []>} : vector<2x128xf32>, vector<128x32xf32>, vector<2x32xf32> -> vector<2x32xf32>
    %cst_132 = arith.constant 3.125000e-02 : f32
    %167 = vector.broadcast %cst_132 : f32 to vector<2x32xf32>
    %168 = arith.mulf %166, %167 : vector<2x32xf32>
    %169 = vector.extract_strided_slice %168 {offsets = [0, 0], sizes = [1, 32], strides = [1, 1]} : vector<2x32xf32> to vector<1x32xf32>
    %170 = vector.extract_strided_slice %168 {offsets = [1, 0], sizes = [1, 32], strides = [1, 1]} : vector<2x32xf32> to vector<1x32xf32>
    %171 = arith.mulf %169, %169 : vector<1x32xf32>
    %172 = arith.subf %170, %171 : vector<1x32xf32>
    %cst_133 = arith.constant 0.000000e+00 : f32
    %173 = vector.broadcast %cst_133 : f32 to vector<1x32xf32>
    %174 = arith.maximumf %172, %173 : vector<1x32xf32>
    %c0_134 = arith.constant 0 : index
    %c0_135 = arith.constant 0 : index
    %175 = vector.load %arg15[%c0_134, %c0_135] : memref<1x32xf32, #tpu.memory_space<vmem>>, vector<1x32xf32>
    %cst_136 = arith.constant 9.99999974E-6 : f32
    %176 = vector.broadcast %cst_136 : f32 to vector<1x32xf32>
    %177 = arith.addf %174, %176 : vector<1x32xf32>
    %178 = math.rsqrt %177 : vector<1x32xf32>
    %179 = arith.mulf %175, %178 : vector<1x32xf32>
    %c0_137 = arith.constant 0 : index
    %c0_138 = arith.constant 0 : index
    %180 = vector.load %arg16[%c0_137, %c0_138] : memref<1x32xf32, #tpu.memory_space<vmem>>, vector<1x32xf32>
    %181 = arith.mulf %169, %179 : vector<1x32xf32>
    %182 = arith.subf %180, %181 : vector<1x32xf32>
    %183 = tpu.concatenate %179, %182 in 0 : vector<1x32xf32>, vector<1x32xf32> -> vector<2x32xf32>
    %c0_139 = arith.constant 0 : index
    %c0_140 = arith.constant 0 : index
    %184 = vector.load %arg10[%c0_139, %c0_140] : memref<32x128xf32, #tpu.memory_space<vmem>>, vector<32x128xf32>
    %cst_141 = arith.constant dense<0.000000e+00> : vector<2x128xf32>
    %185 = tpu.matmul %183, %184, %cst_141 {dimension_numbers = #tpu.dot_dimension_numbers<[1], [0], [0], [1], [0, 0, 1, 1], [], []>} : vector<2x32xf32>, vector<32x128xf32>, vector<2x128xf32> -> vector<2x128xf32>
    %186 = vector.extract_strided_slice %185 {offsets = [0, 0], sizes = [1, 128], strides = [1, 1]} : vector<2x128xf32> to vector<1x128xf32>
    %187 = vector.broadcast %186 : vector<1x128xf32> to vector<8x128xf32>
    %188 = arith.mulf %158, %187 : vector<8x128xf32>
    %189 = vector.extract_strided_slice %185 {offsets = [1, 0], sizes = [1, 128], strides = [1, 1]} : vector<2x128xf32> to vector<1x128xf32>
    %190 = vector.broadcast %189 : vector<1x128xf32> to vector<8x128xf32>
    %191 = arith.addf %188, %190 : vector<8x128xf32>
    %cst_142 = arith.constant 0.000000e+00 : f32
    %192 = vector.broadcast %cst_142 : f32 to vector<8x128xf32>
    %193 = arith.maximumf %191, %192 : vector<8x128xf32>
    %194 = arith.truncf %193 : vector<8x128xf32> to vector<8x128xbf16>
    %195 = vector.extract_strided_slice %194 {offsets = [0, 0], sizes = [2, 128], strides = [1, 1]} : vector<8x128xbf16> to vector<2x128xbf16>
    %c0_143 = arith.constant 0 : index
    %c0_144 = arith.constant 0 : index
    %196 = vector.load %arg22[%c0_143, %c0_144] : memref<2x512xbf16, #tpu.memory_space<vmem>>, vector<2x128xbf16>
    tpu.vector_store %arg22[%c0_143, %c0_144], %195 {strides = array<i32>} : memref<2x512xbf16, #tpu.memory_space<vmem>>, vector<2x128xbf16>,
    %197 = vector.extract_strided_slice %194 {offsets = [2, 0], sizes = [2, 128], strides = [1, 1]} : vector<8x128xbf16> to vector<2x128xbf16>
    %c0_145 = arith.constant 0 : index
    %c128_146 = arith.constant 128 : index
    %198 = vector.load %arg22[%c0_145, %c128_146] : memref<2x512xbf16, #tpu.memory_space<vmem>>, vector<2x128xbf16>
    tpu.vector_store %arg22[%c0_145, %c128_146], %197 {strides = array<i32>} : memref<2x512xbf16, #tpu.memory_space<vmem>>, vector<2x128xbf16>,
    %199 = vector.extract_strided_slice %194 {offsets = [4, 0], sizes = [2, 128], strides = [1, 1]} : vector<8x128xbf16> to vector<2x128xbf16>
    %c0_147 = arith.constant 0 : index
    %c256_148 = arith.constant 256 : index
    %200 = vector.load %arg22[%c0_147, %c256_148] : memref<2x512xbf16, #tpu.memory_space<vmem>>, vector<2x128xbf16>
    tpu.vector_store %arg22[%c0_147, %c256_148], %199 {strides = array<i32>} : memref<2x512xbf16, #tpu.memory_space<vmem>>, vector<2x128xbf16>,
    %201 = vector.extract_strided_slice %194 {offsets = [6, 0], sizes = [2, 128], strides = [1, 1]} : vector<8x128xbf16> to vector<2x128xbf16>
    %c0_149 = arith.constant 0 : index
    %c384_150 = arith.constant 384 : index
    %202 = vector.load %arg22[%c0_149, %c384_150] : memref<2x512xbf16, #tpu.memory_space<vmem>>, vector<2x128xbf16>
    tpu.vector_store %arg22[%c0_149, %c384_150], %201 {strides = array<i32>} : memref<2x512xbf16, #tpu.memory_space<vmem>>, vector<2x128xbf16>,
    %c0_151 = arith.constant 0 : index
    %c0_152 = arith.constant 0 : index
    %203 = vector.load %arg22[%c0_151, %c0_152] : memref<2x512xbf16, #tpu.memory_space<vmem>>, vector<2x512xbf16>
    %c0_153 = arith.constant 0 : index
    %c0_154 = arith.constant 0 : index
    %204 = vector.load %arg4[%c0_153, %c0_154] : memref<512x32xbf16, #tpu.memory_space<vmem>>, vector<512x32xbf16>
    %cst_155 = arith.constant dense<0.000000e+00> : vector<2x32xf32>
    %205 = tpu.matmul %203, %204, %cst_155 {dimension_numbers = #tpu.dot_dimension_numbers<[1], [0], [0], [1], [0, 0, 1, 1], [], []>} : vector<2x512xbf16>, vector<512x32xbf16>, vector<2x32xf32> -> vector<2x32xf32>
    %cst_156 = arith.constant dense<0.000000e+00> : vector<32xf32>
    %206 = vector.multi_reduction <add>, %205, %cst_156 [0] : vector<2x32xf32> to vector<32xf32>
    %207 = vector.shape_cast %206 : vector<32xf32> to vector<1x32xf32>
    %208 = arith.mulf %205, %205 : vector<2x32xf32>
    %cst_157 = arith.constant dense<0.000000e+00> : vector<32xf32>
    %209 = vector.multi_reduction <add>, %208, %cst_157 [0] : vector<2x32xf32> to vector<32xf32>
    %210 = vector.shape_cast %209 : vector<32xf32> to vector<1x32xf32>
    %211 = tpu.concatenate %207, %210 in 0 : vector<1x32xf32>, vector<1x32xf32> -> vector<2x32xf32>
    %cst_158 = arith.constant 5.000000e-01 : f32
    %212 = vector.broadcast %cst_158 : f32 to vector<2x32xf32>
    %213 = arith.mulf %211, %212 : vector<2x32xf32>
    %214 = vector.extract_strided_slice %213 {offsets = [0, 0], sizes = [1, 32], strides = [1, 1]} : vector<2x32xf32> to vector<1x32xf32>
    %215 = vector.extract_strided_slice %213 {offsets = [1, 0], sizes = [1, 32], strides = [1, 1]} : vector<2x32xf32> to vector<1x32xf32>
    %216 = arith.mulf %214, %214 : vector<1x32xf32>
    %217 = arith.subf %215, %216 : vector<1x32xf32>
    %cst_159 = arith.constant 0.000000e+00 : f32
    %218 = vector.broadcast %cst_159 : f32 to vector<1x32xf32>
    %219 = arith.maximumf %217, %218 : vector<1x32xf32>
    %c0_160 = arith.constant 0 : index
    %c0_161 = arith.constant 0 : index
    %220 = vector.load %arg17[%c0_160, %c0_161] : memref<1x32xf32, #tpu.memory_space<vmem>>, vector<1x32xf32>
    %cst_162 = arith.constant 9.99999974E-6 : f32
    %221 = vector.broadcast %cst_162 : f32 to vector<1x32xf32>
    %222 = arith.addf %219, %221 : vector<1x32xf32>
    %223 = math.rsqrt %222 : vector<1x32xf32>
    %224 = arith.mulf %220, %223 : vector<1x32xf32>
    %c0_163 = arith.constant 0 : index
    %c0_164 = arith.constant 0 : index
    %225 = vector.load %arg18[%c0_163, %c0_164] : memref<1x32xf32, #tpu.memory_space<vmem>>, vector<1x32xf32>
    %226 = arith.mulf %214, %224 : vector<1x32xf32>
    %227 = arith.subf %225, %226 : vector<1x32xf32>
    %228 = tpu.concatenate %224, %227 in 0 : vector<1x32xf32>, vector<1x32xf32> -> vector<2x32xf32>
    %229 = vector.extract_strided_slice %228 {offsets = [0, 0], sizes = [1, 32], strides = [1, 1]} : vector<2x32xf32> to vector<1x32xf32>
    %230 = vector.broadcast %229 : vector<1x32xf32> to vector<2x32xf32>
    %231 = arith.mulf %205, %230 : vector<2x32xf32>
    %232 = vector.extract_strided_slice %228 {offsets = [1, 0], sizes = [1, 32], strides = [1, 1]} : vector<2x32xf32> to vector<1x32xf32>
    %233 = vector.broadcast %232 : vector<1x32xf32> to vector<2x32xf32>
    %234 = arith.addf %231, %233 : vector<2x32xf32>
    %cst_165 = arith.constant 0.000000e+00 : f32
    %235 = vector.broadcast %cst_165 : f32 to vector<2x32xf32>
    %236 = arith.maximumf %234, %235 : vector<2x32xf32>
    %c0_166 = arith.constant 0 : index
    %c0_167 = arith.constant 0 : index
    %237 = vector.load %arg19[%c0_166, %c0_167] : memref<2x32xf32, #tpu.memory_space<vmem>>, vector<2x32xf32>
    tpu.vector_store %arg19[%c0_166, %c0_167], %236 {strides = array<i32>} : memref<2x32xf32, #tpu.memory_space<vmem>>, vector<2x32xf32>,
    return
  }
}

</mosaic_0001>

<llo_original>
// kernel: encoder_forward.1
$region0: #{encoder_forward.1}
  #allocation0 [shape = 'u32[]', space=smem, size = 0x4, offset = 0x4, fixed_abs, tag = 'smem constant byte address 0x4 - core index']
  #allocation1 [shape = 'u32[144,128]{1,0:T(1,128)}', space=vmem, size = 0x12000, scoped, tag = 'internal scratch']
  #allocation2 [shape = 'bf16[2,2304]{1,0:T(2,128)(2,1)}', space=vmem, size = 0x2400, scoped, tag = 'scratch operand']
  #allocation3 [shape = 'bf16[2,1280]{1,0:T(2,128)(2,1)}', space=vmem, size = 0x1400, scoped, tag = 'scratch operand']
  #allocation4 [shape = 'bf16[2,512]{1,0:T(2,128)(2,1)}', space=vmem, size = 0x800, scoped, tag = 'scratch operand']
  #allocation5 [shape = 'bf16[16,512]{1,0:T(16,128)(2,1)}', space=vmem, size = 0x4000, scoped, tag = 'scratch operand']
  %s0 = inlined_call_operand.vmem [shape: bf16[32,512], index: 0, kind: input, shape index: {}]
  %s1 = inlined_call_operand.vmem [shape: bf16[512,128], index: 1, kind: input, shape index: {}]
  %s2 = inlined_call_operand.vmem [shape: bf16[512,128], index: 2, kind: input, shape index: {}]
  %s3 = inlined_call_operand.vmem [shape: bf16[512,128], index: 3, kind: input, shape index: {}]
  %s4 = inlined_call_operand.vmem [shape: bf16[512,32], index: 4, kind: input, shape index: {}]
  %s5 = inlined_call_operand.vmem [shape: f32[128,8], index: 5, kind: input, shape index: {}]
  %s6 = inlined_call_operand.vmem [shape: f32[8,128], index: 6, kind: input, shape index: {}]
  %s7 = inlined_call_operand.vmem [shape: f32[128,16], index: 7, kind: input, shape index: {}]
  %s8 = inlined_call_operand.vmem [shape: f32[16,128], index: 8, kind: input, shape index: {}]
  %s9 = inlined_call_operand.vmem [shape: f32[128,32], index: 9, kind: input, shape index: {}]
  %s10 = inlined_call_operand.vmem [shape: f32[32,128], index: 10, kind: input, shape index: {}]
  %s11 = inlined_call_operand.vmem [shape: f32[1,8], index: 11, kind: input, shape index: {}]
  %s12 = inlined_call_operand.vmem [shape: f32[1,8], index: 12, kind: input, shape index: {}]
  %s13 = inlined_call_operand.vmem [shape: f32[1,16], index: 13, kind: input, shape index: {}]
  %s14 = inlined_call_operand.vmem [shape: f32[1,16], index: 14, kind: input, shape index: {}]
  %s15 = inlined_call_operand.vmem [shape: f32[1,32], index: 15, kind: input, shape index: {}]
  %s16 = inlined_call_operand.vmem [shape: f32[1,32], index: 16, kind: input, shape index: {}]
  %s17 = inlined_call_operand.vmem [shape: f32[1,32], index: 17, kind: input, shape index: {}]
  %s18 = inlined_call_operand.vmem [shape: f32[1,32], index: 18, kind: input, shape index: {}]
  %s19 = inlined_call_operand.hbm [shape: f32[2,32], index: 19, kind: output, shape index: {}]
  %s20 = sld [smem:[#allocation0]]
  $region86: #{encoder_forward.1} parent=0
    _
  %s22 = ssub.s32 1, %s20
  %s23 = scalar_select 0, %s22, %s20
  $region1: #{encoder_forward.1} parent=0
    #allocation6 [shape = 'u8[1024]{0}', space=vmem, size = 0x400, scoped, tag = 'output window, operand 0, single buffered']
    #allocation7 [shape = 's32[1]{0}', space=sflag, size = 0x4, scoped, tag = 'scoped memory for encoder_forward.1']
    %24 = vsyncpa [#allocation7], 0
    // Predicated region
    $region2: #{encoder_forward.1} parent=1 // pred_check
      _
    $region3: #{encoder_forward.1} parent=1 // pred_check_branch
      %26 = sbr.rel (0) target = $region5
    $region4: #{encoder_forward.1} parent=1 // pred_region
      _
    $region5: #{encoder_forward.1} parent=1 // pred_fallthru
      _
    // Predicated region
    $region6: #{encoder_forward.1} parent=1 // pred_check
      _
    $region7: #{encoder_forward.1} parent=1 // pred_check_branch
      %28 = sbr.rel (0) target = $region9
    $region8: #{encoder_forward.1} parent=1 // pred_region
      _
    $region9: #{encoder_forward.1} parent=1 // pred_fallthru
      _
    // Predicated region
    $region10: #{encoder_forward.1} parent=1 // pred_check
      _
    $region11: #{encoder_forward.1} parent=1 // pred_check_branch
      %30 = sbr.rel (0) target = $region13
    $region12: #{encoder_forward.1} parent=1 // pred_region
      _
    $region13: #{encoder_forward.1} parent=1 // pred_fallthru
      _
    // Predicated region
    $region14: #{encoder_forward.1} parent=1 // pred_check
      _
    $region15: #{encoder_forward.1} parent=1 // pred_check_branch
      %32 = sbr.rel (0) target = $region17
    $region16: #{encoder_forward.1} parent=1 // pred_region
      _
    $region17: #{encoder_forward.1} parent=1 // pred_fallthru
      _
    // Predicated region
    $region18: #{encoder_forward.1} parent=1 // pred_check
      _
    $region19: #{encoder_forward.1} parent=1 // pred_check_branch
      %34 = sbr.rel (0) target = $region21
    $region20: #{encoder_forward.1} parent=1 // pred_region
      _
    $region21: #{encoder_forward.1} parent=1 // pred_fallthru
      _
    // Predicated region
    $region22: #{encoder_forward.1} parent=1 // pred_check
      _
    $region23: #{encoder_forward.1} parent=1 // pred_check_branch
      %36 = sbr.rel (0) target = $region25
    $region24: #{encoder_forward.1} parent=1 // pred_region
      _
    $region25: #{encoder_forward.1} parent=1 // pred_fallthru
      _
    // Predicated region
    $region26: #{encoder_forward.1} parent=1 // pred_check
      _
    $region27: #{encoder_forward.1} parent=1 // pred_check_branch
      %38 = sbr.rel (0) target = $region29
    $region28: #{encoder_forward.1} parent=1 // pred_region
      _
    $region29: #{encoder_forward.1} parent=1 // pred_fallthru
      _
    // Predicated region
    $region30: #{encoder_forward.1} parent=1 // pred_check
      _
    $region31: #{encoder_forward.1} parent=1 // pred_check_branch
      %40 = sbr.rel (0) target = $region33
    $region32: #{encoder_forward.1} parent=1 // pred_region
      _
    $region33: #{encoder_forward.1} parent=1 // pred_fallthru
      _
    // Predicated region
    $region34: #{encoder_forward.1} parent=1 // pred_check
      _
    $region35: #{encoder_forward.1} parent=1 // pred_check_branch
      %42 = sbr.rel (0) target = $region37
    $region36: #{encoder_forward.1} parent=1 // pred_region
      _
    $region37: #{encoder_forward.1} parent=1 // pred_fallthru
      _
    // Predicated region
    $region38: #{encoder_forward.1} parent=1 // pred_check
      _
    $region39: #{encoder_forward.1} parent=1 // pred_check_branch
      %44 = sbr.rel (0) target = $region41
    $region40: #{encoder_forward.1} parent=1 // pred_region
      _
    $region41: #{encoder_forward.1} parent=1 // pred_fallthru
      _
    // Predicated region
    $region42: #{encoder_forward.1} parent=1 // pred_check
      _
    $region43: #{encoder_forward.1} parent=1 // pred_check_branch
      %46 = sbr.rel (0) target = $region45
    $region44: #{encoder_forward.1} parent=1 // pred_region
      _
    $region45: #{encoder_forward.1} parent=1 // pred_fallthru
      _
    // Predicated region
    $region46: #{encoder_forward.1} parent=1 // pred_check
      _
    $region47: #{encoder_forward.1} parent=1 // pred_check_branch
      %48 = sbr.rel (0) target = $region49
    $region48: #{encoder_forward.1} parent=1 // pred_region
      _
    $region49: #{encoder_forward.1} parent=1 // pred_fallthru
      _
    // Predicated region
    $region50: #{encoder_forward.1} parent=1 // pred_check
      _
    $region51: #{encoder_forward.1} parent=1 // pred_check_branch
      %50 = sbr.rel (0) target = $region53
    $region52: #{encoder_forward.1} parent=1 // pred_region
      _
    $region53: #{encoder_forward.1} parent=1 // pred_fallthru
      _
    // Predicated region
    $region54: #{encoder_forward.1} parent=1 // pred_check
      _
    $region55: #{encoder_forward.1} parent=1 // pred_check_branch
      %52 = sbr.rel (0) target = $region57
    $region56: #{encoder_forward.1} parent=1 // pred_region
      _
    $region57: #{encoder_forward.1} parent=1 // pred_fallthru
      _
    // Predicated region
    $region58: #{encoder_forward.1} parent=1 // pred_check
      _
    $region59: #{encoder_forward.1} parent=1 // pred_check_branch
      %54 = sbr.rel (0) target = $region61
    $region60: #{encoder_forward.1} parent=1 // pred_region
      _
    $region61: #{encoder_forward.1} parent=1 // pred_fallthru
      _
    // Predicated region
    $region62: #{encoder_forward.1} parent=1 // pred_check
      _
    $region63: #{encoder_forward.1} parent=1 // pred_check_branch
      %56 = sbr.rel (0) target = $region65
    $region64: #{encoder_forward.1} parent=1 // pred_region
      _
    $region65: #{encoder_forward.1} parent=1 // pred_fallthru
      _
    // Predicated region
    $region66: #{encoder_forward.1} parent=1 // pred_check
      _
    $region67: #{encoder_forward.1} parent=1 // pred_check_branch
      %58 = sbr.rel (0) target = $region69
    $region68: #{encoder_forward.1} parent=1 // pred_region
      _
    $region69: #{encoder_forward.1} parent=1 // pred_fallthru
      _
    // Predicated region
    $region70: #{encoder_forward.1} parent=1 // pred_check
      _
    $region71: #{encoder_forward.1} parent=1 // pred_check_branch
      %60 = sbr.rel (0) target = $region73
    $region72: #{encoder_forward.1} parent=1 // pred_region
      _
    $region73: #{encoder_forward.1} parent=1 // pred_fallthru
      _
    // Predicated region
    $region74: #{encoder_forward.1} parent=1 // pred_check
      _
    $region75: #{encoder_forward.1} parent=1 // pred_check_branch
      %62 = sbr.rel (0) target = $region77
    $region76: #{encoder_forward.1} parent=1 // pred_region
      _
    $region77: #{encoder_forward.1} parent=1 // pred_fallthru
      _
    %64 = vst [vmem:[#allocation2] sm:$0xff] 0
    %65 = vst [vmem:[#allocation2 + $0x8] sm:$0xff] 0
    %66 = vst [vmem:[#allocation2 + $0x10] sm:$0x3] 0
    %67 = vst [vmem:[#allocation3] sm:$0xff] 0
    %68 = vst [vmem:[#allocation3 + $0x8] sm:$0x3] 0
    %69 = vst [vmem:[#allocation4] sm:$0xf] 0
    %v70 = vld [vmem:[%s0] sm:$0xff]
    %v71 = vld [vmem:[%s0 + $0x8] sm:$0xff]
    %v72 = vld [vmem:[%s0 + $0x10] sm:$0xff]
    %v73 = vld [vmem:[%s0 + $0x18] sm:$0xff]
    %v74 = vld [vmem:[%s0 + $0x20] sm:$0xff]
    %v75 = vld [vmem:[%s0 + $0x28] sm:$0xff]
    %v76 = vld [vmem:[%s0 + $0x30] sm:$0xff]
    %v77 = vld [vmem:[%s0 + $0x38] sm:$0xff]
    %v78 = vld [vmem:[%s1] sm:$0xf]
    %v79 = vld [vmem:[%s1 + $0x4] sm:$0xf]
    %v80 = vld [vmem:[%s1 + $0x8] sm:$0xf]
    %v81 = vld [vmem:[%s1 + $0xc] sm:$0xf]
    %v82 = vld [vmem:[%s1 + $0x10] sm:$0xf]
    %v83 = vld [vmem:[%s1 + $0x14] sm:$0xf]
    %v84 = vld [vmem:[%s1 + $0x18] sm:$0xf]
    %v85 = vld [vmem:[%s1 + $0x1c] sm:$0xf]
    %v86 = vld [vmem:[%s1 + $0x20] sm:$0xf]
    %v87 = vld [vmem:[%s1 + $0x24] sm:$0xf]
    %v88 = vld [vmem:[%s1 + $0x28] sm:$0xf]
    %v89 = vld [vmem:[%s1 + $0x2c] sm:$0xf]
    %v90 = vld [vmem:[%s1 + $0x30] sm:$0xf]
    %v91 = vld [vmem:[%s1 + $0x34] sm:$0xf]
    %v92 = vld [vmem:[%s1 + $0x38] sm:$0xf]
    %v93 = vld [vmem:[%s1 + $0x3c] sm:$0xf]
    %v94 = vld [vmem:[%s1 + $0x40] sm:$0xf]
    %v95 = vld [vmem:[%s1 + $0x44] sm:$0xf]
    %v96 = vld [vmem:[%s1 + $0x48] sm:$0xf]
    %v97 = vld [vmem:[%s1 + $0x4c] sm:$0xf]
    %v98 = vld [vmem:[%s1 + $0x50] sm:$0xf]
    %v99 = vld [vmem:[%s1 + $0x54] sm:$0xf]
    %v100 = vld [vmem:[%s1 + $0x58] sm:$0xf]
    %v101 = vld [vmem:[%s1 + $0x5c] sm:$0xf]
    %v102 = vld [vmem:[%s1 + $0x60] sm:$0xf]
    %v103 = vld [vmem:[%s1 + $0x64] sm:$0xf]
    %v104 = vld [vmem:[%s1 + $0x68] sm:$0xf]
    %v105 = vld [vmem:[%s1 + $0x6c] sm:$0xf]
    %v106 = vld [vmem:[%s1 + $0x70] sm:$0xf]
    %v107 = vld [vmem:[%s1 + $0x74] sm:$0xf]
    %v108 = vld [vmem:[%s1 + $0x78] sm:$0xf]
    %v109 = vld [vmem:[%s1 + $0x7c] sm:$0xf]
    %v110 = vld [vmem:[%s1 + $0x80] sm:$0xf]
    %v111 = vld [vmem:[%s1 + $0x84] sm:$0xf]
    %v112 = vld [vmem:[%s1 + $0x88] sm:$0xf]
    %v113 = vld [vmem:[%s1 + $0x8c] sm:$0xf]
    %v114 = vld [vmem:[%s1 + $0x90] sm:$0xf]
    %v115 = vld [vmem:[%s1 + $0x94] sm:$0xf]
    %v116 = vld [vmem:[%s1 + $0x98] sm:$0xf]
    %v117 = vld [vmem:[%s1 + $0x9c] sm:$0xf]
    %v118 = vld [vmem:[%s1 + $0xa0] sm:$0xf]
    %v119 = vld [vmem:[%s1 + $0xa4] sm:$0xf]
    %v120 = vld [vmem:[%s1 + $0xa8] sm:$0xf]
    %v121 = vld [vmem:[%s1 + $0xac] sm:$0xf]
    %v122 = vld [vmem:[%s1 + $0xb0] sm:$0xf]
    %v123 = vld [vmem:[%s1 + $0xb4] sm:$0xf]
    %v124 = vld [vmem:[%s1 + $0xb8] sm:$0xf]
    %v125 = vld [vmem:[%s1 + $0xbc] sm:$0xf]
    %v126 = vld [vmem:[%s1 + $0xc0] sm:$0xf]
    %v127 = vld [vmem:[%s1 + $0xc4] sm:$0xf]
    %v128 = vld [vmem:[%s1 + $0xc8] sm:$0xf]
    %v129 = vld [vmem:[%s1 + $0xcc] sm:$0xf]
    %v130 = vld [vmem:[%s1 + $0xd0] sm:$0xf]
    %v131 = vld [vmem:[%s1 + $0xd4] sm:$0xf]
    %v132 = vld [vmem:[%s1 + $0xd8] sm:$0xf]
    %v133 = vld [vmem:[%s1 + $0xdc] sm:$0xf]
    %v134 = vld [vmem:[%s1 + $0xe0] sm:$0xf]
    %v135 = vld [vmem:[%s1 + $0xe4] sm:$0xf]
    %v136 = vld [vmem:[%s1 + $0xe8] sm:$0xf]
    %v137 = vld [vmem:[%s1 + $0xec] sm:$0xf]
    %v138 = vld [vmem:[%s1 + $0xf0] sm:$0xf]
    %v139 = vld [vmem:[%s1 + $0xf4] sm:$0xf]
    %v140 = vld [vmem:[%s1 + $0xf8] sm:$0xf]
    %v141 = vld [vmem:[%s1 + $0xfc] sm:$0xf]
    %v150 = vunpack.c.l.b16 %v70
    %v151 = vunpack.c.h.b16 %v70
    %v152 = vunpack.c.l.b16 %v71
    %v153 = vunpack.c.h.b16 %v71
    %v154 = vunpack.c.l.b16 %v72
    %v155 = vunpack.c.h.b16 %v72
    %v156 = vunpack.c.l.b16 %v73
    %v157 = vunpack.c.h.b16 %v73
    %v158 = vunpack.c.l.b16 %v74
    %v159 = vunpack.c.h.b16 %v74
    %v160 = vunpack.c.l.b16 %v75
    %v161 = vunpack.c.h.b16 %v75
    %v162 = vunpack.c.l.b16 %v76
    %v163 = vunpack.c.h.b16 %v76
    %v164 = vunpack.c.l.b16 %v77
    %v165 = vunpack.c.h.b16 %v77
    %v166 = vpack.c.b16 %v154, %v150
    %v167 = vpack.c.b16 %v155, %v151
    %v168 = vpack.c.b16 %v156, %v152
    %v169 = vpack.c.b16 %v157, %v153
    %v170 = vpack.c.b16 %v162, %v158
    %v171 = vpack.c.b16 %v163, %v159
    %v172 = vpack.c.b16 %v164, %v160
    %v173 = vpack.c.b16 %v165, %v161
    %v246 = vunpack.c.l.b16 %v78
    %v247 = vunpack.c.l.b16 %v79
    %v248 = vunpack.c.l.b16 %v80
    %v249 = vunpack.c.l.b16 %v81
    %v250 = vunpack.c.l.b16 %v82
    %v251 = vunpack.c.l.b16 %v83
    %v252 = vunpack.c.l.b16 %v84
    %v253 = vunpack.c.l.b16 %v85
    %v254 = vunpack.c.l.b16 %v86
    %v255 = vunpack.c.l.b16 %v87
    %v256 = vunpack.c.l.b16 %v88
    %v257 = vunpack.c.l.b16 %v89
    %v258 = vunpack.c.l.b16 %v90
    %v259 = vunpack.c.l.b16 %v91
    %v260 = vunpack.c.l.b16 %v92
    %v261 = vunpack.c.l.b16 %v93
    %v262 = vunpack.c.l.b16 %v94
    %v263 = vunpack.c.l.b16 %v95
    %v264 = vunpack.c.l.b16 %v96
    %v265 = vunpack.c.l.b16 %v97
    %v266 = vunpack.c.l.b16 %v98
    %v267 = vunpack.c.l.b16 %v99
    %v268 = vunpack.c.l.b16 %v100
    %v269 = vunpack.c.l.b16 %v101
    %v270 = vunpack.c.l.b16 %v102
    %v271 = vunpack.c.l.b16 %v103
    %v272 = vunpack.c.l.b16 %v104
    %v273 = vunpack.c.l.b16 %v105
    %v274 = vunpack.c.l.b16 %v106
    %v275 = vunpack.c.l.b16 %v107
    %v276 = vunpack.c.l.b16 %v108
    %v277 = vunpack.c.l.b16 %v109
    %v278 = vunpack.c.l.b16 %v110
    %v279 = vunpack.c.l.b16 %v111
    %v280 = vunpack.c.l.b16 %v112
    %v281 = vunpack.c.l.b16 %v113
    %v282 = vunpack.c.l.b16 %v114
    %v283 = vunpack.c.l.b16 %v115
    %v284 = vunpack.c.l.b16 %v116
    %v285 = vunpack.c.l.b16 %v117
    %v286 = vunpack.c.l.b16 %v118
    %v287 = vunpack.c.l.b16 %v119
    %v288 = vunpack.c.l.b16 %v120
    %v289 = vunpack.c.l.b16 %v121
    %v290 = vunpack.c.l.b16 %v122
    %v291 = vunpack.c.l.b16 %v123
    %v292 = vunpack.c.l.b16 %v124
    %v293 = vunpack.c.l.b16 %v125
    %v294 = vunpack.c.l.b16 %v126
    %v295 = vunpack.c.l.b16 %v127
    %v296 = vunpack.c.l.b16 %v128
    %v297 = vunpack.c.l.b16 %v129
    %v298 = vunpack.c.l.b16 %v130
    %v299 = vunpack.c.l.b16 %v131
    %v300 = vunpack.c.l.b16 %v132
    %v301 = vunpack.c.l.b16 %v133
    %v302 = vunpack.c.l.b16 %v134
    %v303 = vunpack.c.l.b16 %v135
    %v304 = vunpack.c.l.b16 %v136
    %v305 = vunpack.c.l.b16 %v137
    %v306 = vunpack.c.l.b16 %v138
    %v307 = vunpack.c.l.b16 %v139
    %v308 = vunpack.c.l.b16 %v140
    %v309 = vunpack.c.l.b16 %v141
    %v310 = vpack.c.b16 %v247, %v246
    %v311 = vpack.c.b16 %v249, %v248
    %v312 = vpack.c.b16 %v251, %v250
    %v313 = vpack.c.b16 %v253, %v252
    %v314 = vpack.c.b16 %v255, %v254
    %v315 = vpack.c.b16 %v257, %v256
    %v316 = vpack.c.b16 %v259, %v258
    %v317 = vpack.c.b16 %v261, %v260
    %v318 = vpack.c.b16 %v263, %v262
    %v319 = vpack.c.b16 %v265, %v264
    %v320 = vpack.c.b16 %v267, %v266
    %v321 = vpack.c.b16 %v269, %v268
    %v322 = vpack.c.b16 %v271, %v270
    %v323 = vpack.c.b16 %v273, %v272
    %v324 = vpack.c.b16 %v275, %v274
    %v325 = vpack.c.b16 %v277, %v276
    %v326 = vpack.c.b16 %v279, %v278
    %v327 = vpack.c.b16 %v281, %v280
    %v328 = vpack.c.b16 %v283, %v282
    %v329 = vpack.c.b16 %v285, %v284
    %v330 = vpack.c.b16 %v287, %v286
    %v331 = vpack.c.b16 %v289, %v288
    %v332 = vpack.c.b16 %v291, %v290
    %v333 = vpack.c.b16 %v293, %v292
    %v334 = vpack.c.b16 %v295, %v294
    %v335 = vpack.c.b16 %v297, %v296
    %v336 = vpack.c.b16 %v299, %v298
    %v337 = vpack.c.b16 %v301, %v300
    %v338 = vpack.c.b16 %v303, %v302
    %v339 = vpack.c.b16 %v305, %v304
    %v340 = vpack.c.b16 %v307, %v306
    %v341 = vpack.c.b16 %v309, %v308
    %374 = vmatprep.subr.bf16.mxu0 0
    %375 = vmatpush1.bf16.msra.mxu0 %v310
    %376 = vmatprep.subr.bf16.mxu0 0
    %377 = vmatpush1.bf16.msra.mxu0 %v311
    %378 = vmatprep.subr.bf16.mxu0 0
    %379 = vmatpush1.bf16.msra.mxu0 %v312
    %380 = vmatprep.subr.bf16.mxu0 0
    %381 = vmatpush1.bf16.msra.mxu0 %v313
    %382 = vmatprep.subr.bf16.mxu0 0
    %383 = vmatpush1.bf16.msra.mxu0 %v314
    %384 = vmatprep.subr.bf16.mxu0 0
    %385 = vmatpush1.bf16.msra.mxu0 %v315
    %386 = vmatprep.subr.bf16.mxu0 0
    %387 = vmatpush1.bf16.msra.mxu0 %v316
    %388 = vmatprep.subr.bf16.mxu0 0
    %389 = vmatpush1.bf16.msra.mxu0 %v317
    %390 = vmatprep.subr.bf16.mxu0 0
    %391 = vmatpush1.bf16.msra.mxu0 %v318
    %392 = vmatprep.subr.bf16.mxu0 0
    %393 = vmatpush1.bf16.msra.mxu0 %v319
    %394 = vmatprep.subr.bf16.mxu0 0
    %395 = vmatpush1.bf16.msra.mxu0 %v320
    %396 = vmatprep.subr.bf16.mxu0 0
    %397 = vmatpush1.bf16.msra.mxu0 %v321
    %398 = vmatprep.subr.bf16.mxu0 0
    %399 = vmatpush1.bf16.msra.mxu0 %v322
    %400 = vmatprep.subr.bf16.mxu0 0
    %401 = vmatpush1.bf16.msra.mxu0 %v323
    %402 = vmatprep.subr.bf16.mxu0 0
    %403 = vmatpush1.bf16.msra.mxu0 %v324
    %404 = vmatprep.subr.bf16.mxu0 0
    %405 = vmatpush1.bf16.msra.mxu0 %v325
    %406 = vmatprep.mubr.bf16.mxu0 %v167
    %407 = vmatmul.mubr.bf16.gmra.mrb[0].mxu0 %v166
    %v408 = vpop.f32.mrb[0].mxu0
    %v409 = vadd.f32 0.0, %v408
    %v410 = vpop.f32.mrb[0].mxu0
    %v411 = vpop.f32.mrb[0].mxu0
    %v412 = vadd.f32 0.0, %v411
    %v413 = vpop.f32.mrb[0].mxu0
    %414 = vmatprep.mubr.bf16.mxu0 %v171
    %415 = vmatmul.mubr.bf16.gmra.mrb[0].mxu0 %v170
    %v416 = vpop.f32.mrb[0].mxu0
    %v417 = vadd.f32 0.0, %v416
    %v418 = vpop.f32.mrb[0].mxu0
    %v419 = vpop.f32.mrb[0].mxu0
    %v420 = vadd.f32 0.0, %v419
    %v421 = vpop.f32.mrb[0].mxu0
    %422 = vdwg.mxu0
    %423 = vmatprep.subr.bf16.mxu0 0
    %424 = vmatpush1.bf16.msra.mxu0 %v326
    %425 = vmatprep.subr.bf16.mxu0 0
    %426 = vmatpush1.bf16.msra.mxu0 %v327
    %427 = vmatprep.subr.bf16.mxu0 0
    %428 = vmatpush1.bf16.msra.mxu0 %v328
    %429 = vmatprep.subr.bf16.mxu0 0
    %430 = vmatpush1.bf16.msra.mxu0 %v329
    %431 = vmatprep.subr.bf16.mxu0 0
    %432 = vmatpush1.bf16.msra.mxu0 %v330
    %433 = vmatprep.subr.bf16.mxu0 0
    %434 = vmatpush1.bf16.msra.mxu0 %v331
    %435 = vmatprep.subr.bf16.mxu0 0
    %436 = vmatpush1.bf16.msra.mxu0 %v332
    %437 = vmatprep.subr.bf16.mxu0 0
    %438 = vmatpush1.bf16.msra.mxu0 %v333
    %439 = vmatprep.subr.bf16.mxu0 0
    %440 = vmatpush1.bf16.msra.mxu0 %v334
    %441 = vmatprep.subr.bf16.mxu0 0
    %442 = vmatpush1.bf16.msra.mxu0 %v335
    %443 = vmatprep.subr.bf16.mxu0 0
    %444 = vmatpush1.bf16.msra.mxu0 %v336
    %445 = vmatprep.subr.bf16.mxu0 0
    %446 = vmatpush1.bf16.msra.mxu0 %v337
    %447 = vmatprep.subr.bf16.mxu0 0
    %448 = vmatpush1.bf16.msra.mxu0 %v338
    %449 = vmatprep.subr.bf16.mxu0 0
    %450 = vmatpush1.bf16.msra.mxu0 %v339
    %451 = vmatprep.subr.bf16.mxu0 0
    %452 = vmatpush1.bf16.msra.mxu0 %v340
    %453 = vmatprep.subr.bf16.mxu0 0
    %454 = vmatpush1.bf16.msra.mxu0 %v341
    %455 = vmatprep.mubr.bf16.mxu0 %v169
    %456 = vmatmul.mubr.bf16.gmra.mrb[0].mxu0 %v168
    %v457 = vpop.f32.mrb[0].mxu0
    %v458 = vadd.f32 %v409, %v457
    %v459 = vpop.f32.mrb[0].mxu0
    %v460 = vpop.f32.mrb[0].mxu0
    %v461 = vadd.f32 %v412, %v460
    %v462 = vpop.f32.mrb[0].mxu0
    %463 = vmatprep.mubr.bf16.mxu0 %v173
    %464 = vmatmul.mubr.bf16.gmra.mrb[0].mxu0 %v172
    %v465 = vpop.f32.mrb[0].mxu0
    %v466 = vadd.f32 %v417, %v465
    %v467 = vpop.f32.mrb[0].mxu0
    %v468 = vpop.f32.mrb[0].mxu0
    %v469 = vadd.f32 %v420, %v468
    %v470 = vpop.f32.mrb[0].mxu0
    %471 = vdwg.mxu0
    %v472 = vadd.f32 %v458, %v461
    %v473 = vadd.f32 %v472, %v466
    %v474 = vadd.f32 %v473, %v469
    %v475 = vrot.slane %v474, 4
    %v476 = vadd.f32 %v474, %v475
    %v477 = vrot.slane %v476, 2
    %v478 = vadd.f32 %v476, %v477
    %v479 = vrot.slane %v478, 1
    %v480 = vadd.f32 %v478, %v479
    %v481 = vmul.f32 %v458, %v458
    %v482 = vmul.f32 %v461, %v461
    %v483 = vmul.f32 %v466, %v466
    %v484 = vmul.f32 %v469, %v469
    %v485 = vadd.f32 %v481, %v482
    %v486 = vadd.f32 %v485, %v483
    %v487 = vadd.f32 %v486, %v484
    %v488 = vrot.slane %v487, 4
    %v489 = vadd.f32 %v487, %v488
    %v490 = vrot.slane %v489, 2
    %v491 = vadd.f32 %v489, %v490
    %v492 = vrot.slane %v491, 1
    %v493 = vadd.f32 %v491, %v492
    %vm494 = vcmask 1040384
    %v495 = vsel %vm494, %v480, %v493
    %v496 = vld [vmem:[%s5] sm:$0xff]
    %v497 = vld [vmem:[%s5 + $0x8] sm:$0xff]
    %v498 = vld [vmem:[%s5 + $0x10] sm:$0xff]
    %v499 = vld [vmem:[%s5 + $0x18] sm:$0xff]
    %v500 = vld [vmem:[%s5 + $0x20] sm:$0xff]
    %v501 = vld [vmem:[%s5 + $0x28] sm:$0xff]
    %v502 = vld [vmem:[%s5 + $0x30] sm:$0xff]
    %v503 = vld [vmem:[%s5 + $0x38] sm:$0xff]
    %v504 = vld [vmem:[%s5 + $0x40] sm:$0xff]
    %v505 = vld [vmem:[%s5 + $0x48] sm:$0xff]
    %v506 = vld [vmem:[%s5 + $0x50] sm:$0xff]
    %v507 = vld [vmem:[%s5 + $0x58] sm:$0xff]
    %v508 = vld [vmem:[%s5 + $0x60] sm:$0xff]
    %v509 = vld [vmem:[%s5 + $0x68] sm:$0xff]
    %v510 = vld [vmem:[%s5 + $0x70] sm:$0xff]
    %v511 = vld [vmem:[%s5 + $0x78] sm:$0xff]
    %512 = vmatprep.subr.mxu0 0.0
    %513 = vmatpush1.msra.mxu0 %v496
    %514 = vmatprep.subr.mxu0 0.0
    %515 = vmatpush1.msra.mxu0 %v497
    %516 = vmatprep.subr.mxu0 0.0
    %517 = vmatpush1.msra.mxu0 %v498
    %518 = vmatprep.subr.mxu0 0.0
    %519 = vmatpush1.msra.mxu0 %v499
    %520 = vmatprep.subr.mxu0 0.0
    %521 = vmatpush1.msra.mxu0 %v500
    %522 = vmatprep.subr.mxu0 0.0
    %523 = vmatpush1.msra.mxu0 %v501
    %524 = vmatprep.subr.mxu0 0.0
    %525 = vmatpush1.msra.mxu0 %v502
    %526 = vmatprep.subr.mxu0 0.0
    %527 = vmatpush1.msra.mxu0 %v503
    %528 = vmatprep.subr.mxu0 0.0
    %529 = vmatpush1.msra.mxu0 %v504
    %530 = vmatprep.subr.mxu0 0.0
    %531 = vmatpush1.msra.mxu0 %v505
    %532 = vmatprep.subr.mxu0 0.0
    %533 = vmatpush1.msra.mxu0 %v506
    %534 = vmatprep.subr.mxu0 0.0
    %535 = vmatpush1.msra.mxu0 %v507
    %536 = vmatprep.subr.mxu0 0.0
    %537 = vmatpush1.msra.mxu0 %v508
    %538 = vmatprep.subr.mxu0 0.0
    %539 = vmatpush1.msra.mxu0 %v509
    %540 = vmatprep.subr.mxu0 0.0
    %541 = vmatpush1.msra.mxu0 %v510
    %542 = vmatprep.subr.mxu0 0.0
    %543 = vmatpush1.msra.mxu0 %v511
    %544 = vmatprep.subr.mxu0 0.0
    %545 = vmatpush1.msra.mxu0 0.0
    %546 = vmatprep.subr.mxu0 0.0
    %547 = vmatpush1.msra.mxu0 0.0
    %548 = vmatprep.subr.mxu0 0.0
    %549 = vmatpush1.msra.mxu0 0.0
    %550 = vmatprep.subr.mxu0 0.0
    %551 = vmatpush1.msra.mxu0 0.0
    %552 = vmatprep.subr.mxu0 0.0
    %553 = vmatpush1.msra.mxu0 0.0
    %554 = vmatprep.subr.mxu0 0.0
    %555 = vmatpush1.msra.mxu0 0.0
    %556 = vmatprep.subr.mxu0 0.0
    %557 = vmatpush1.msra.mxu0 0.0
    %558 = vmatprep.subr.mxu0 0.0
    %559 = vmatpush1.msra.mxu0 0.0
    %560 = vmatprep.subr.mxu0 0.0
    %561 = vmatpush1.msra.mxu0 0.0
    %562 = vmatprep.subr.mxu0 0.0
    %563 = vmatpush1.msra.mxu0 0.0
    %564 = vmatprep.subr.mxu0 0.0
    %565 = vmatpush1.msra.mxu0 0.0
    %566 = vmatprep.subr.mxu0 0.0
    %567 = vmatpush1.msra.mxu0 0.0
    %568 = vmatprep.subr.mxu0 0.0
    %569 = vmatpush1.msra.mxu0 0.0
    %570 = vmatprep.subr.mxu0 0.0
    %571 = vmatpush1.msra.mxu0 0.0
    %572 = vmatprep.subr.mxu0 0.0
    %573 = vmatpush1.msra.mxu0 0.0
    %574 = vmatprep.subr.mxu0 0.0
    %575 = vmatpush1.msra.mxu0 0.0
    %576 = vmatprep.mubr.f32.mxu0 0.0
    %577 = vmatmul.mubr.f32.gmra.mrb[0].mxu0 %v495
    %v578 = vpop.f32.mrb[0].mxu0
    %v579 = vadd.f32 0.0, %v578
    %v580 = vpop.f32.mrb[0].mxu0
    %581 = vdwg.mxu0
    %v582 = vmul.f32 %v579, 0.001953125
    %v583 = vmul.f32 %v582, %v582
    %v585 = vrot.slane %v583, 7
    %v587 = vsub.f32 %v582, %v585
    %v588 = vmax.f32 %v587, 0.0
    %v589 = vld [vmem:[%s11] sm:$0x1]
    %v590 = vadd.f32 %v588, 1e-05
    %v591 = vrsqrt.pop %v590
    %v594 = vunpack.c.l.s4 1966171168
    %v595 = vunpack.c.0.s8 %v594
    %v596 = vlaneseq
    %v597 = vshrl.u32 %v596, 7
    %v598 = vsub.s32 %v595, %v597
    %v599 = vrot.slane %v591, %v598
    %v600 = vcombine.high %v599, %v599
    %v602 = vunpack.c.l.s4 1966171168
    %v603 = vunpack.c.0.s8 %v602
    %v604 = vlaneseq
    %v605 = vshrl.u32 %v604, 7
    %v606 = vsub.s32 %v603, %v605
    %v607 = vrot.slane %v600, %v606
    %v609 = vmul.f32 %v589, %v607
    %v610 = vld [vmem:[%s12] sm:$0x1]
    %v611 = vmul.f32 %v582, %v609
    %v612 = vsub.f32 %v610, %v611
    %v614 = vlaneseq
    %v615 = vshrl.u32 %v614, 7
    %v616 = vsub.s32 0, %v615
    %v617 = vrot.slane %v612, %v616
    %v619 = vsel %vm494, %v609, %v617
    %v620 = vld [vmem:[%s6] sm:$0xff]
    %vm621 = vcmask 64512
    %v623 = vsel %vm621, %v619, 0
    %625 = vmatprep.subr.mxu0 0.0
    %626 = vmatpush1.msra.mxu0 %v620
    %627 = vmatprep.subr.mxu0 0.0
    %628 = vmatpush1.msra.mxu0 0.0
    %629 = vmatprep.subr.mxu0 0.0
    %630 = vmatpush1.msra.mxu0 0.0
    %631 = vmatprep.subr.mxu0 0.0
    %632 = vmatpush1.msra.mxu0 0.0
    %633 = vmatprep.subr.mxu0 0.0
    %634 = vmatpush1.msra.mxu0 0.0
    %635 = vmatprep.subr.mxu0 0.0
    %636 = vmatpush1.msra.mxu0 0.0
    %637 = vmatprep.subr.mxu0 0.0
    %638 = vmatpush1.msra.mxu0 0.0
    %639 = vmatprep.subr.mxu0 0.0
    %640 = vmatpush1.msra.mxu0 0.0
    %641 = vmatprep.subr.mxu0 0.0
    %642 = vmatpush1.msra.mxu0 0.0
    %643 = vmatprep.subr.mxu0 0.0
    %644 = vmatpush1.msra.mxu0 0.0
    %645 = vmatprep.subr.mxu0 0.0
    %646 = vmatpush1.msra.mxu0 0.0
    %647 = vmatprep.subr.mxu0 0.0
    %648 = vmatpush1.msra.mxu0 0.0
    %649 = vmatprep.subr.mxu0 0.0
    %650 = vmatpush1.msra.mxu0 0.0
    %651 = vmatprep.subr.mxu0 0.0
    %652 = vmatpush1.msra.mxu0 0.0
    %653 = vmatprep.subr.mxu0 0.0
    %654 = vmatpush1.msra.mxu0 0.0
    %655 = vmatprep.subr.mxu0 0.0
    %656 = vmatpush1.msra.mxu0 0.0
    %657 = vmatprep.subr.mxu0 0.0
    %658 = vmatpush1.msra.mxu0 0.0
    %659 = vmatprep.subr.mxu0 0.0
    %660 = vmatpush1.msra.mxu0 0.0
    %661 = vmatprep.subr.mxu0 0.0
    %662 = vmatpush1.msra.mxu0 0.0
    %663 = vmatprep.subr.mxu0 0.0
    %664 = vmatpush1.msra.mxu0 0.0
    %665 = vmatprep.subr.mxu0 0.0
    %666 = vmatpush1.msra.mxu0 0.0
    %667 = vmatprep.subr.mxu0 0.0
    %668 = vmatpush1.msra.mxu0 0.0
    %669 = vmatprep.subr.mxu0 0.0
    %670 = vmatpush1.msra.mxu0 0.0
    %671 = vmatprep.subr.mxu0 0.0
    %672 = vmatpush1.msra.mxu0 0.0
    %673 = vmatprep.subr.mxu0 0.0
    %674 = vmatpush1.msra.mxu0 0.0
    %675 = vmatprep.subr.mxu0 0.0
    %676 = vmatpush1.msra.mxu0 0.0
    %677 = vmatprep.subr.mxu0 0.0
    %678 = vmatpush1.msra.mxu0 0.0
    %679 = vmatprep.subr.mxu0 0.0
    %680 = vmatpush1.msra.mxu0 0.0
    %681 = vmatprep.subr.mxu0 0.0
    %682 = vmatpush1.msra.mxu0 0.0
    %683 = vmatprep.subr.mxu0 0.0
    %684 = vmatpush1.msra.mxu0 0.0
    %685 = vmatprep.subr.mxu0 0.0
    %686 = vmatpush1.msra.mxu0 0.0
    %687 = vmatprep.subr.mxu0 0.0
    %688 = vmatpush1.msra.mxu0 0.0
    %689 = vmatprep.mubr.f32.mxu0 0.0
    %690 = vmatmul.mubr.f32.gmra.mrb[0].mxu0 %v623
    %v691 = vpop.f32.mrb[0].mxu0
    %v692 = vadd.f32 0.0, %v691
    %v693 = vpop.f32.mrb[0].mxu0
    %694 = vdwg.mxu0
    %v695 = vlaneseq
    %v696 = vshrl.u32 %v695, 7
    %v697 = vsub.s32 0, %v696
    %v698 = vrot.slane %v692, %v697
    %v699 = vmul.f32 %v458, %v698
    %v700 = vmul.f32 %v461, %v698
    %v701 = vmul.f32 %v466, %v698
    %v702 = vmul.f32 %v469, %v698
    %v703 = vlaneseq
    %v704 = vshrl.u32 %v703, 7
    %v705 = vsub.s32 1, %v704
    %v706 = vrot.slane %v692, %v705
    %v707 = vadd.f32 %v699, %v706
    %v708 = vadd.f32 %v700, %v706
    %v709 = vadd.f32 %v701, %v706
    %v710 = vadd.f32 %v702, %v706
    %v711 = vmax.f32 %v707, 0.0
    %v712 = vmax.f32 %v708, 0.0
    %v713 = vmax.f32 %v709, 0.0
    %v714 = vmax.f32 %v710, 0.0
    %v715 = vpack.c.bf16 %v712, %v711
    %v716 = vpack.c.bf16 %v714, %v713
    %717 = vst [vmem:[#allocation2 + $0x1] sm:$0x1] %v715
    %v720 = vunpack.c.l.s4 1966171168
    %v721 = vunpack.c.0.s8 %v720
    %v722 = vlaneseq
    %v723 = vshrl.u32 %v722, 7
    %v724 = vsub.s32 %v721, %v723
    %v725 = vrot.slane %v715, %v724
    %v726 = vcombine.high %v725, %v725
    %v728 = vunpack.c.l.s4 1966171168
    %v729 = vunpack.c.0.s8 %v728
    %v730 = vlaneseq
    %v731 = vshrl.u32 %v730, 7
    %v732 = vsub.s32 %v729, %v731
    %v733 = vrot.slane %v725, %v732
    %v735 = vunpack.c.l.s4 1966171168
    %v736 = vunpack.c.0.s8 %v735
    %v737 = vlaneseq
    %v738 = vshrl.u32 %v737, 7
    %v739 = vsub.s32 %v736, %v738
    %v740 = vrot.slane %v726, %v739
    %742 = vst [vmem:[#allocation2 + $0x2] sm:$0x1] %v740
    %v743 = vcombine.high %v733, %v733
    %745 = vst [vmem:[#allocation2 + $0x3] sm:$0x1] %v743
    %v746 = vcombine.high %v740, %v740
    %748 = vst [vmem:[#allocation2 + $0x4] sm:$0x1] %v746
    %v749 = vcombine.high %v715, %v715
    %v751 = vunpack.c.l.s4 1966171168
    %v752 = vunpack.c.0.s8 %v751
    %v753 = vlaneseq
    %v754 = vshrl.u32 %v753, 7
    %v755 = vsub.s32 %v752, %v754
    %v756 = vrot.slane %v749, %v755
    %v758 = vunpack.c.l.s4 1966171168
    %v759 = vunpack.c.0.s8 %v758
    %v760 = vlaneseq
    %v761 = vshrl.u32 %v760, 7
    %v762 = vsub.s32 %v759, %v761
    %v763 = vrot.slane %v756, %v762
    %765 = vst [vmem:[#allocation2 + $0x5] sm:$0x1] %v763
    %v766 = vcombine.high %v756, %v756
    %v768 = vunpack.c.l.s4 1966171168
    %v769 = vunpack.c.0.s8 %v768
    %v770 = vlaneseq
    %v771 = vshrl.u32 %v770, 7
    %v772 = vsub.s32 %v769, %v771
    %v773 = vrot.slane %v766, %v772
    %775 = vst [vmem:[#allocation2 + $0x6] sm:$0x1] %v773
    %v776 = vcombine.high %v763, %v763
    %778 = vst [vmem:[#allocation2 + $0x7] sm:$0x1] %v776
    %v779 = vcombine.high %v773, %v773
    %781 = vst [vmem:[#allocation2 + $0x8] sm:$0x1] %v779
    %782 = vst [vmem:[#allocation2 + $0x9] sm:$0x1] %v716
    %v785 = vunpack.c.l.s4 1966171168
    %v786 = vunpack.c.0.s8 %v785
    %v787 = vlaneseq
    %v788 = vshrl.u32 %v787, 7
    %v789 = vsub.s32 %v786, %v788
    %v790 = vrot.slane %v716, %v789
    %v791 = vcombine.high %v790, %v790
    %v793 = vunpack.c.l.s4 1966171168
    %v794 = vunpack.c.0.s8 %v793
    %v795 = vlaneseq
    %v796 = vshrl.u32 %v795, 7
    %v797 = vsub.s32 %v794, %v796
    %v798 = vrot.slane %v790, %v797
    %v800 = vunpack.c.l.s4 1966171168
    %v801 = vunpack.c.0.s8 %v800
    %v802 = vlaneseq
    %v803 = vshrl.u32 %v802, 7
    %v804 = vsub.s32 %v801, %v803
    %v805 = vrot.slane %v791, %v804
    %807 = vst [vmem:[#allocation2 + $0xa] sm:$0x1] %v805
    %v808 = vcombine.high %v798, %v798
    %810 = vst [vmem:[#allocation2 + $0xb] sm:$0x1] %v808
    %v811 = vcombine.high %v805, %v805
    %813 = vst [vmem:[#allocation2 + $0xc] sm:$0x1] %v811
    %v814 = vcombine.high %v716, %v716
    %v816 = vunpack.c.l.s4 1966171168
    %v817 = vunpack.c.0.s8 %v816
    %v818 = vlaneseq
    %v819 = vshrl.u32 %v818, 7
    %v820 = vsub.s32 %v817, %v819
    %v821 = vrot.slane %v814, %v820
    %v823 = vunpack.c.l.s4 1966171168
    %v824 = vunpack.c.0.s8 %v823
    %v825 = vlaneseq
    %v826 = vshrl.u32 %v825, 7
    %v827 = vsub.s32 %v824, %v826
    %v828 = vrot.slane %v821, %v827
    %830 = vst [vmem:[#allocation2 + $0xd] sm:$0x1] %v828
    %v831 = vcombine.high %v821, %v821
    %v833 = vunpack.c.l.s4 1966171168
    %v834 = vunpack.c.0.s8 %v833
    %v835 = vlaneseq
    %v836 = vshrl.u32 %v835, 7
    %v837 = vsub.s32 %v834, %v836
    %v838 = vrot.slane %v831, %v837
    %840 = vst [vmem:[#allocation2 + $0xe] sm:$0x1] %v838
    %v841 = vcombine.high %v828, %v828
    %843 = vst [vmem:[#allocation2 + $0xf] sm:$0x1] %v841
    %v844 = vcombine.high %v838, %v838
    %846 = vst [vmem:[#allocation2 + $0x10] sm:$0x1] %v844
    %v847 = vld [vmem:[#allocation2] sm:$0xf]
    %v850 = vunpack.c.l.s4 1966171168
    %v851 = vunpack.c.0.s8 %v850
    %v852 = vlaneseq
    %v853 = vshrl.u32 %v852, 7
    %v854 = vsub.s32 %v851, %v853
    %v855 = vrot.slane %v847, %v854
    %v856 = vcombine.high %v855, %v855
    %v858 = vunpack.c.l.s4 1966171168
    %v859 = vunpack.c.0.s8 %v858
    %v860 = vlaneseq
    %v861 = vshrl.u32 %v860, 7
    %v862 = vsub.s32 %v859, %v861
    %v863 = vrot.slane %v855, %v862
    %v865 = vunpack.c.l.s4 1966171168
    %v866 = vunpack.c.0.s8 %v865
    %v867 = vlaneseq
    %v868 = vshrl.u32 %v867, 7
    %v869 = vsub.s32 %v866, %v868
    %v870 = vrot.slane %v856, %v869
    %v871 = vcombine.high %v863, %v863
    %v872 = vcombine.high %v870, %v870
    %877 = vst [vmem:[#allocation5] sm:$0x1] %v863
    %878 = vst [vmem:[#allocation5 + $0x8] sm:$0x1] %v870
    %879 = vst [vmem:[#allocation5 + $0x10] sm:$0x1] %v871
    %880 = vst [vmem:[#allocation5 + $0x18] sm:$0x1] %v872
    %v881 = vld [vmem:[#allocation2 + $0x2] sm:$0xf]
    %v883 = vcombine.low %v881, %v881
    %v885 = vunpack.c.l.s4 1966171168
    %v886 = vunpack.c.0.s8 %v885
    %v887 = vlaneseq
    %v888 = vshrl.u32 %v887, 7
    %v889 = vsub.s32 %v886, %v888
    %v890 = vrot.slane %v883, %v889
    %v891 = vcombine.high %v890, %v890
    %v893 = vunpack.c.l.s4 1966171168
    %v894 = vunpack.c.0.s8 %v893
    %v895 = vlaneseq
    %v896 = vshrl.u32 %v895, 7
    %v897 = vsub.s32 %v894, %v896
    %v898 = vrot.slane %v890, %v897
    %v900 = vunpack.c.l.s4 1966171168
    %v901 = vunpack.c.0.s8 %v900
    %v902 = vlaneseq
    %v903 = vshrl.u32 %v902, 7
    %v904 = vsub.s32 %v901, %v903
    %v905 = vrot.slane %v891, %v904
    %v906 = vcombine.high %v898, %v898
    %v907 = vcombine.high %v905, %v905
    %912 = vst [vmem:[#allocation5] sm:$0x2] %v898
    %913 = vst [vmem:[#allocation5 + $0x8] sm:$0x2] %v905
    %914 = vst [vmem:[#allocation5 + $0x10] sm:$0x2] %v906
    %915 = vst [vmem:[#allocation5 + $0x18] sm:$0x2] %v907
    %v916 = vld [vmem:[#allocation2 + $0x4] sm:$0xf]
    %v919 = vunpack.c.l.s4 1966171168
    %v920 = vunpack.c.0.s8 %v919
    %v921 = vlaneseq
    %v922 = vshrl.u32 %v921, 7
    %v923 = vsub.s32 %v920, %v922
    %v924 = vrot.slane %v916, %v923
    %v925 = vcombine.low %v924, %v924
    %v927 = vunpack.c.l.s4 1966171168
    %v928 = vunpack.c.0.s8 %v927
    %v929 = vlaneseq
    %v930 = vshrl.u32 %v929, 7
    %v931 = vsub.s32 %v928, %v930
    %v932 = vrot.slane %v925, %v931
    %v934 = vunpack.c.l.s4 1966171168
    %v935 = vunpack.c.0.s8 %v934
    %v936 = vlaneseq
    %v937 = vshrl.u32 %v936, 7
    %v938 = vsub.s32 %v935, %v937
    %v939 = vrot.slane %v924, %v938
    %v940 = vcombine.high %v932, %v932
    %v941 = vcombine.high %v939, %v939
    %946 = vst [vmem:[#allocation5] sm:$0x4] %v932
    %947 = vst [vmem:[#allocation5 + $0x8] sm:$0x4] %v939
    %948 = vst [vmem:[#allocation5 + $0x10] sm:$0x4] %v940
    %949 = vst [vmem:[#allocation5 + $0x18] sm:$0x4] %v941
    %v950 = vld [vmem:[#allocation2 + $0x6] sm:$0xf]
    %v952 = vcombine.low %v950, %v950
    %v954 = vunpack.c.l.s4 1966171168
    %v955 = vunpack.c.0.s8 %v954
    %v956 = vlaneseq
    %v957 = vshrl.u32 %v956, 7
    %v958 = vsub.s32 %v955, %v957
    %v959 = vrot.slane %v952, %v958
    %v960 = vcombine.low %v959, %v959
    %v962 = vunpack.c.l.s4 1966171168
    %v963 = vunpack.c.0.s8 %v962
    %v964 = vlaneseq
    %v965 = vshrl.u32 %v964, 7
    %v966 = vsub.s32 %v963, %v965
    %v967 = vrot.slane %v960, %v966
    %v969 = vunpack.c.l.s4 1966171168
    %v970 = vunpack.c.0.s8 %v969
    %v971 = vlaneseq
    %v972 = vshrl.u32 %v971, 7
    %v973 = vsub.s32 %v970, %v972
    %v974 = vrot.slane %v959, %v973
    %v975 = vcombine.high %v967, %v967
    %v976 = vcombine.high %v974, %v974
    %981 = vst [vmem:[#allocation5] sm:$0x8] %v967
    %982 = vst [vmem:[#allocation5 + $0x8] sm:$0x8] %v974
    %983 = vst [vmem:[#allocation5 + $0x10] sm:$0x8] %v975
    %984 = vst [vmem:[#allocation5 + $0x18] sm:$0x8] %v976
    %v985 = vld [vmem:[#allocation2 + $0x8] sm:$0xf]
    %v988 = vunpack.c.l.s4 1966171168
    %v989 = vunpack.c.0.s8 %v988
    %v990 = vlaneseq
    %v991 = vshrl.u32 %v990, 7
    %v992 = vsub.s32 %v989, %v991
    %v993 = vrot.slane %v985, %v992
    %v994 = vcombine.high %v993, %v993
    %v996 = vunpack.c.l.s4 1966171168
    %v997 = vunpack.c.0.s8 %v996
    %v998 = vlaneseq
    %v999 = vshrl.u32 %v998, 7
    %v1000 = vsub.s32 %v997, %v999
    %v1001 = vrot.slane %v993, %v1000
    %v1003 = vunpack.c.l.s4 1966171168
    %v1004 = vunpack.c.0.s8 %v1003
    %v1005 = vlaneseq
    %v1006 = vshrl.u32 %v1005, 7
    %v1007 = vsub.s32 %v1004, %v1006
    %v1008 = vrot.slane %v994, %v1007
    %v1009 = vcombine.low %v1001, %v1001
    %v1010 = vcombine.low %v1008, %v1008
    %1015 = vst [vmem:[#allocation5] sm:$0x10] %v1009
    %1016 = vst [vmem:[#allocation5 + $0x8] sm:$0x10] %v1010
    %1017 = vst [vmem:[#allocation5 + $0x10] sm:$0x10] %v1001
    %1018 = vst [vmem:[#allocation5 + $0x18] sm:$0x10] %v1008
    %v1019 = vld [vmem:[#allocation2 + $0xa] sm:$0xf]
    %v1021 = vcombine.low %v1019, %v1019
    %v1023 = vunpack.c.l.s4 1966171168
    %v1024 = vunpack.c.0.s8 %v1023
    %v1025 = vlaneseq
    %v1026 = vshrl.u32 %v1025, 7
    %v1027 = vsub.s32 %v1024, %v1026
    %v1028 = vrot.slane %v1021, %v1027
    %v1029 = vcombine.high %v1028, %v1028
    %v1031 = vunpack.c.l.s4 1966171168
    %v1032 = vunpack.c.0.s8 %v1031
    %v1033 = vlaneseq
    %v1034 = vshrl.u32 %v1033, 7
    %v1035 = vsub.s32 %v1032, %v1034
    %v1036 = vrot.slane %v1028, %v1035
    %v1038 = vunpack.c.l.s4 1966171168
    %v1039 = vunpack.c.0.s8 %v1038
    %v1040 = vlaneseq
    %v1041 = vshrl.u32 %v1040, 7
    %v1042 = vsub.s32 %v1039, %v1041
    %v1043 = vrot.slane %v1029, %v1042
    %v1044 = vcombine.low %v1036, %v1036
    %v1045 = vcombine.low %v1043, %v1043
    %1050 = vst [vmem:[#allocation5] sm:$0x20] %v1044
    %1051 = vst [vmem:[#allocation5 + $0x8] sm:$0x20] %v1045
    %1052 = vst [vmem:[#allocation5 + $0x10] sm:$0x20] %v1036
    %1053 = vst [vmem:[#allocation5 + $0x18] sm:$0x20] %v1043
    %v1054 = vld [vmem:[#allocation2 + $0xc] sm:$0xf]
    %v1057 = vunpack.c.l.s4 1966171168
    %v1058 = vunpack.c.0.s8 %v1057
    %v1059 = vlaneseq
    %v1060 = vshrl.u32 %v1059, 7
    %v1061 = vsub.s32 %v1058, %v1060
    %v1062 = vrot.slane %v1054, %v1061
    %v1063 = vcombine.low %v1062, %v1062
    %v1065 = vunpack.c.l.s4 1966171168
    %v1066 = vunpack.c.0.s8 %v1065
    %v1067 = vlaneseq
    %v1068 = vshrl.u32 %v1067, 7
    %v1069 = vsub.s32 %v1066, %v1068
    %v1070 = vrot.slane %v1063, %v1069
    %v1072 = vunpack.c.l.s4 1966171168
    %v1073 = vunpack.c.0.s8 %v1072
    %v1074 = vlaneseq
    %v1075 = vshrl.u32 %v1074, 7
    %v1076 = vsub.s32 %v1073, %v1075
    %v1077 = vrot.slane %v1062, %v1076
    %v1078 = vcombine.low %v1070, %v1070
    %v1079 = vcombine.low %v1077, %v1077
    %1084 = vst [vmem:[#allocation5] sm:$0x40] %v1078
    %1085 = vst [vmem:[#allocation5 + $0x8] sm:$0x40] %v1079
    %1086 = vst [vmem:[#allocation5 + $0x10] sm:$0x40] %v1070
    %1087 = vst [vmem:[#allocation5 + $0x18] sm:$0x40] %v1077
    %v1088 = vld [vmem:[#allocation2 + $0xe] sm:$0xf]
    %v1090 = vcombine.low %v1088, %v1088
    %v1092 = vunpack.c.l.s4 1966171168
    %v1093 = vunpack.c.0.s8 %v1092
    %v1094 = vlaneseq
    %v1095 = vshrl.u32 %v1094, 7
    %v1096 = vsub.s32 %v1093, %v1095
    %v1097 = vrot.slane %v1090, %v1096
    %v1098 = vcombine.low %v1097, %v1097
    %v1100 = vunpack.c.l.s4 1966171168
    %v1101 = vunpack.c.0.s8 %v1100
    %v1102 = vlaneseq
    %v1103 = vshrl.u32 %v1102, 7
    %v1104 = vsub.s32 %v1101, %v1103
    %v1105 = vrot.slane %v1098, %v1104
    %v1107 = vunpack.c.l.s4 1966171168
    %v1108 = vunpack.c.0.s8 %v1107
    %v1109 = vlaneseq
    %v1110 = vshrl.u32 %v1109, 7
    %v1111 = vsub.s32 %v1108, %v1110
    %v1112 = vrot.slane %v1097, %v1111
    %v1113 = vcombine.low %v1105, %v1105
    %v1114 = vcombine.low %v1112, %v1112
    %1119 = vst [vmem:[#allocation5] sm:$0x80] %v1113
    %1120 = vst [vmem:[#allocation5 + $0x8] sm:$0x80] %v1114
    %1121 = vst [vmem:[#allocation5 + $0x10] sm:$0x80] %v1105
    %1122 = vst [vmem:[#allocation5 + $0x18] sm:$0x80] %v1112
    %v1123 = vld [vmem:[#allocation5] sm:$0xff]
    %v1124 = vld [vmem:[#allocation5 + $0x8] sm:$0xff]
    %v1125 = vld [vmem:[#allocation5 + $0x10] sm:$0xff]
    %v1126 = vld [vmem:[#allocation5 + $0x18] sm:$0xff]
    %v1127 = vld [vmem:[%s2] sm:$0xf]
    %v1128 = vld [vmem:[%s2 + $0x4] sm:$0xf]
    %v1129 = vld [vmem:[%s2 + $0x8] sm:$0xf]
    %v1130 = vld [vmem:[%s2 + $0xc] sm:$0xf]
    %v1131 = vld [vmem:[%s2 + $0x10] sm:$0xf]
    %v1132 = vld [vmem:[%s2 + $0x14] sm:$0xf]
    %v1133 = vld [vmem:[%s2 + $0x18] sm:$0xf]
    %v1134 = vld [vmem:[%s2 + $0x1c] sm:$0xf]
    %v1135 = vld [vmem:[%s2 + $0x20] sm:$0xf]
    %v1136 = vld [vmem:[%s2 + $0x24] sm:$0xf]
    %v1137 = vld [vmem:[%s2 + $0x28] sm:$0xf]
    %v1138 = vld [vmem:[%s2 + $0x2c] sm:$0xf]
    %v1139 = vld [vmem:[%s2 + $0x30] sm:$0xf]
    %v1140 = vld [vmem:[%s2 + $0x34] sm:$0xf]
    %v1141 = vld [vmem:[%s2 + $0x38] sm:$0xf]
    %v1142 = vld [vmem:[%s2 + $0x3c] sm:$0xf]
    %v1143 = vld [vmem:[%s2 + $0x40] sm:$0xf]
    %v1144 = vld [vmem:[%s2 + $0x44] sm:$0xf]
    %v1145 = vld [vmem:[%s2 + $0x48] sm:$0xf]
    %v1146 = vld [vmem:[%s2 + $0x4c] sm:$0xf]
    %v1147 = vld [vmem:[%s2 + $0x50] sm:$0xf]
    %v1148 = vld [vmem:[%s2 + $0x54] sm:$0xf]
    %v1149 = vld [vmem:[%s2 + $0x58] sm:$0xf]
    %v1150 = vld [vmem:[%s2 + $0x5c] sm:$0xf]
    %v1151 = vld [vmem:[%s2 + $0x60] sm:$0xf]
    %v1152 = vld [vmem:[%s2 + $0x64] sm:$0xf]
    %v1153 = vld [vmem:[%s2 + $0x68] sm:$0xf]
    %v1154 = vld [vmem:[%s2 + $0x6c] sm:$0xf]
    %v1155 = vld [vmem:[%s2 + $0x70] sm:$0xf]
    %v1156 = vld [vmem:[%s2 + $0x74] sm:$0xf]
    %v1157 = vld [vmem:[%s2 + $0x78] sm:$0xf]
    %v1158 = vld [vmem:[%s2 + $0x7c] sm:$0xf]
    %v1159 = vld [vmem:[%s2 + $0x80] sm:$0xf]
    %v1160 = vld [vmem:[%s2 + $0x84] sm:$0xf]
    %v1161 = vld [vmem:[%s2 + $0x88] sm:$0xf]
    %v1162 = vld [vmem:[%s2 + $0x8c] sm:$0xf]
    %v1163 = vld [vmem:[%s2 + $0x90] sm:$0xf]
    %v1164 = vld [vmem:[%s2 + $0x94] sm:$0xf]
    %v1165 = vld [vmem:[%s2 + $0x98] sm:$0xf]
    %v1166 = vld [vmem:[%s2 + $0x9c] sm:$0xf]
    %v1167 = vld [vmem:[%s2 + $0xa0] sm:$0xf]
    %v1168 = vld [vmem:[%s2 + $0xa4] sm:$0xf]
    %v1169 = vld [vmem:[%s2 + $0xa8] sm:$0xf]
    %v1170 = vld [vmem:[%s2 + $0xac] sm:$0xf]
    %v1171 = vld [vmem:[%s2 + $0xb0] sm:$0xf]
    %v1172 = vld [vmem:[%s2 + $0xb4] sm:$0xf]
    %v1173 = vld [vmem:[%s2 + $0xb8] sm:$0xf]
    %v1174 = vld [vmem:[%s2 + $0xbc] sm:$0xf]
    %v1175 = vld [vmem:[%s2 + $0xc0] sm:$0xf]
    %v1176 = vld [vmem:[%s2 + $0xc4] sm:$0xf]
    %v1177 = vld [vmem:[%s2 + $0xc8] sm:$0xf]
    %v1178 = vld [vmem:[%s2 + $0xcc] sm:$0xf]
    %v1179 = vld [vmem:[%s2 + $0xd0] sm:$0xf]
    %v1180 = vld [vmem:[%s2 + $0xd4] sm:$0xf]
    %v1181 = vld [vmem:[%s2 + $0xd8] sm:$0xf]
    %v1182 = vld [vmem:[%s2 + $0xdc] sm:$0xf]
    %v1183 = vld [vmem:[%s2 + $0xe0] sm:$0xf]
    %v1184 = vld [vmem:[%s2 + $0xe4] sm:$0xf]
    %v1185 = vld [vmem:[%s2 + $0xe8] sm:$0xf]
    %v1186 = vld [vmem:[%s2 + $0xec] sm:$0xf]
    %v1187 = vld [vmem:[%s2 + $0xf0] sm:$0xf]
    %v1188 = vld [vmem:[%s2 + $0xf4] sm:$0xf]
    %v1189 = vld [vmem:[%s2 + $0xf8] sm:$0xf]
    %v1190 = vld [vmem:[%s2 + $0xfc] sm:$0xf]
    %v1255 = vunpack.c.l.b16 %v1127
    %v1256 = vunpack.c.l.b16 %v1128
    %v1257 = vunpack.c.l.b16 %v1129
    %v1258 = vunpack.c.l.b16 %v1130
    %v1259 = vunpack.c.l.b16 %v1131
    %v1260 = vunpack.c.l.b16 %v1132
    %v1261 = vunpack.c.l.b16 %v1133
    %v1262 = vunpack.c.l.b16 %v1134
    %v1263 = vunpack.c.l.b16 %v1135
    %v1264 = vunpack.c.l.b16 %v1136
    %v1265 = vunpack.c.l.b16 %v1137
    %v1266 = vunpack.c.l.b16 %v1138
    %v1267 = vunpack.c.l.b16 %v1139
    %v1268 = vunpack.c.l.b16 %v1140
    %v1269 = vunpack.c.l.b16 %v1141
    %v1270 = vunpack.c.l.b16 %v1142
    %v1271 = vunpack.c.l.b16 %v1143
    %v1272 = vunpack.c.l.b16 %v1144
    %v1273 = vunpack.c.l.b16 %v1145
    %v1274 = vunpack.c.l.b16 %v1146
    %v1275 = vunpack.c.l.b16 %v1147
    %v1276 = vunpack.c.l.b16 %v1148
    %v1277 = vunpack.c.l.b16 %v1149
    %v1278 = vunpack.c.l.b16 %v1150
    %v1279 = vunpack.c.l.b16 %v1151
    %v1280 = vunpack.c.l.b16 %v1152
    %v1281 = vunpack.c.l.b16 %v1153
    %v1282 = vunpack.c.l.b16 %v1154
    %v1283 = vunpack.c.l.b16 %v1155
    %v1284 = vunpack.c.l.b16 %v1156
    %v1285 = vunpack.c.l.b16 %v1157
    %v1286 = vunpack.c.l.b16 %v1158
    %v1287 = vunpack.c.l.b16 %v1159
    %v1288 = vunpack.c.l.b16 %v1160
    %v1289 = vunpack.c.l.b16 %v1161
    %v1290 = vunpack.c.l.b16 %v1162
    %v1291 = vunpack.c.l.b16 %v1163
    %v1292 = vunpack.c.l.b16 %v1164
    %v1293 = vunpack.c.l.b16 %v1165
    %v1294 = vunpack.c.l.b16 %v1166
    %v1295 = vunpack.c.l.b16 %v1167
    %v1296 = vunpack.c.l.b16 %v1168
    %v1297 = vunpack.c.l.b16 %v1169
    %v1298 = vunpack.c.l.b16 %v1170
    %v1299 = vunpack.c.l.b16 %v1171
    %v1300 = vunpack.c.l.b16 %v1172
    %v1301 = vunpack.c.l.b16 %v1173
    %v1302 = vunpack.c.l.b16 %v1174
    %v1303 = vunpack.c.l.b16 %v1175
    %v1304 = vunpack.c.l.b16 %v1176
    %v1305 = vunpack.c.l.b16 %v1177
    %v1306 = vunpack.c.l.b16 %v1178
    %v1307 = vunpack.c.l.b16 %v1179
    %v1308 = vunpack.c.l.b16 %v1180
    %v1309 = vunpack.c.l.b16 %v1181
    %v1310 = vunpack.c.l.b16 %v1182
    %v1311 = vunpack.c.l.b16 %v1183
    %v1312 = vunpack.c.l.b16 %v1184
    %v1313 = vunpack.c.l.b16 %v1185
    %v1314 = vunpack.c.l.b16 %v1186
    %v1315 = vunpack.c.l.b16 %v1187
    %v1316 = vunpack.c.l.b16 %v1188
    %v1317 = vunpack.c.l.b16 %v1189
    %v1318 = vunpack.c.l.b16 %v1190
    %v1319 = vpack.c.b16 %v1256, %v1255
    %v1320 = vpack.c.b16 %v1258, %v1257
    %v1321 = vpack.c.b16 %v1260, %v1259
    %v1322 = vpack.c.b16 %v1262, %v1261
    %v1323 = vpack.c.b16 %v1264, %v1263
    %v1324 = vpack.c.b16 %v1266, %v1265
    %v1325 = vpack.c.b16 %v1268, %v1267
    %v1326 = vpack.c.b16 %v1270, %v1269
    %v1327 = vpack.c.b16 %v1272, %v1271
    %v1328 = vpack.c.b16 %v1274, %v1273
    %v1329 = vpack.c.b16 %v1276, %v1275
    %v1330 = vpack.c.b16 %v1278, %v1277
    %v1331 = vpack.c.b16 %v1280, %v1279
    %v1332 = vpack.c.b16 %v1282, %v1281
    %v1333 = vpack.c.b16 %v1284, %v1283
    %v1334 = vpack.c.b16 %v1286, %v1285
    %v1335 = vpack.c.b16 %v1288, %v1287
    %v1336 = vpack.c.b16 %v1290, %v1289
    %v1337 = vpack.c.b16 %v1292, %v1291
    %v1338 = vpack.c.b16 %v1294, %v1293
    %v1339 = vpack.c.b16 %v1296, %v1295
    %v1340 = vpack.c.b16 %v1298, %v1297
    %v1341 = vpack.c.b16 %v1300, %v1299
    %v1342 = vpack.c.b16 %v1302, %v1301
    %v1343 = vpack.c.b16 %v1304, %v1303
    %v1344 = vpack.c.b16 %v1306, %v1305
    %v1345 = vpack.c.b16 %v1308, %v1307
    %v1346 = vpack.c.b16 %v1310, %v1309
    %v1347 = vpack.c.b16 %v1312, %v1311
    %v1348 = vpack.c.b16 %v1314, %v1313
    %v1349 = vpack.c.b16 %v1316, %v1315
    %v1350 = vpack.c.b16 %v1318, %v1317
    %1383 = vmatprep.subr.bf16.mxu0 0
    %1384 = vmatpush1.bf16.msra.mxu0 %v1319
    %1385 = vmatprep.subr.bf16.mxu0 0
    %1386 = vmatpush1.bf16.msra.mxu0 %v1320
    %1387 = vmatprep.subr.bf16.mxu0 0
    %1388 = vmatpush1.bf16.msra.mxu0 %v1321
    %1389 = vmatprep.subr.bf16.mxu0 0
    %1390 = vmatpush1.bf16.msra.mxu0 %v1322
    %1391 = vmatprep.subr.bf16.mxu0 0
    %1392 = vmatpush1.bf16.msra.mxu0 %v1323
    %1393 = vmatprep.subr.bf16.mxu0 0
    %1394 = vmatpush1.bf16.msra.mxu0 %v1324
    %1395 = vmatprep.subr.bf16.mxu0 0
    %1396 = vmatpush1.bf16.msra.mxu0 %v1325
    %1397 = vmatprep.subr.bf16.mxu0 0
    %1398 = vmatpush1.bf16.msra.mxu0 %v1326
    %1399 = vmatprep.subr.bf16.mxu0 0
    %1400 = vmatpush1.bf16.msra.mxu0 %v1327
    %1401 = vmatprep.subr.bf16.mxu0 0
    %1402 = vmatpush1.bf16.msra.mxu0 %v1328
    %1403 = vmatprep.subr.bf16.mxu0 0
    %1404 = vmatpush1.bf16.msra.mxu0 %v1329
    %1405 = vmatprep.subr.bf16.mxu0 0
    %1406 = vmatpush1.bf16.msra.mxu0 %v1330
    %1407 = vmatprep.subr.bf16.mxu0 0
    %1408 = vmatpush1.bf16.msra.mxu0 %v1331
    %1409 = vmatprep.subr.bf16.mxu0 0
    %1410 = vmatpush1.bf16.msra.mxu0 %v1332
    %1411 = vmatprep.subr.bf16.mxu0 0
    %1412 = vmatpush1.bf16.msra.mxu0 %v1333
    %1413 = vmatprep.subr.bf16.mxu0 0
    %1414 = vmatpush1.bf16.msra.mxu0 %v1334
    %1415 = vmatprep.mubr.bf16.mxu0 %v1124
    %1416 = vmatmul.mubr.bf16.gmra.mrb[0].mxu0 %v1123
    %v1417 = vpop.f32.mrb[0].mxu0
    %v1418 = vadd.f32 0.0, %v1417
    %v1419 = vpop.f32.mrb[0].mxu0
    %v1420 = vpop.f32.mrb[0].mxu0
    %v1421 = vadd.f32 0.0, %v1420
    %v1422 = vpop.f32.mrb[0].mxu0
    %1423 = vdwg.mxu0
    %1424 = vmatprep.subr.bf16.mxu0 0
    %1425 = vmatpush1.bf16.msra.mxu0 %v1335
    %1426 = vmatprep.subr.bf16.mxu0 0
    %1427 = vmatpush1.bf16.msra.mxu0 %v1336
    %1428 = vmatprep.subr.bf16.mxu0 0
    %1429 = vmatpush1.bf16.msra.mxu0 %v1337
    %1430 = vmatprep.subr.bf16.mxu0 0
    %1431 = vmatpush1.bf16.msra.mxu0 %v1338
    %1432 = vmatprep.subr.bf16.mxu0 0
    %1433 = vmatpush1.bf16.msra.mxu0 %v1339
    %1434 = vmatprep.subr.bf16.mxu0 0
    %1435 = vmatpush1.bf16.msra.mxu0 %v1340
    %1436 = vmatprep.subr.bf16.mxu0 0
    %1437 = vmatpush1.bf16.msra.mxu0 %v1341
    %1438 = vmatprep.subr.bf16.mxu0 0
    %1439 = vmatpush1.bf16.msra.mxu0 %v1342
    %1440 = vmatprep.subr.bf16.mxu0 0
    %1441 = vmatpush1.bf16.msra.mxu0 %v1343
    %1442 = vmatprep.subr.bf16.mxu0 0
    %1443 = vmatpush1.bf16.msra.mxu0 %v1344
    %1444 = vmatprep.subr.bf16.mxu0 0
    %1445 = vmatpush1.bf16.msra.mxu0 %v1345
    %1446 = vmatprep.subr.bf16.mxu0 0
    %1447 = vmatpush1.bf16.msra.mxu0 %v1346
    %1448 = vmatprep.subr.bf16.mxu0 0
    %1449 = vmatpush1.bf16.msra.mxu0 %v1347
    %1450 = vmatprep.subr.bf16.mxu0 0
    %1451 = vmatpush1.bf16.msra.mxu0 %v1348
    %1452 = vmatprep.subr.bf16.mxu0 0
    %1453 = vmatpush1.bf16.msra.mxu0 %v1349
    %1454 = vmatprep.subr.bf16.mxu0 0
    %1455 = vmatpush1.bf16.msra.mxu0 %v1350
    %1456 = vmatprep.mubr.bf16.mxu0 %v1126
    %1457 = vmatmul.mubr.bf16.gmra.mrb[0].mxu0 %v1125
    %v1458 = vpop.f32.mrb[0].mxu0
    %v1459 = vadd.f32 %v1418, %v1458
    %v1460 = vpop.f32.mrb[0].mxu0
    %v1461 = vpop.f32.mrb[0].mxu0
    %v1462 = vadd.f32 %v1421, %v1461
    %v1463 = vpop.f32.mrb[0].mxu0
    %1464 = vdwg.mxu0
    %v1465 = vadd.f32 %v1459, %v1462
    %v1466 = vrot.slane %v1465, 4
    %v1467 = vadd.f32 %v1465, %v1466
    %v1468 = vrot.slane %v1467, 2
    %v1469 = vadd.f32 %v1467, %v1468
    %v1470 = vrot.slane %v1469, 1
    %v1471 = vadd.f32 %v1469, %v1470
    %v1472 = vmul.f32 %v1459, %v1459
    %v1473 = vmul.f32 %v1462, %v1462
    %v1474 = vadd.f32 %v1472, %v1473
    %v1475 = vrot.slane %v1474, 4
    %v1476 = vadd.f32 %v1474, %v1475
    %v1477 = vrot.slane %v1476, 2
    %v1478 = vadd.f32 %v1476, %v1477
    %v1479 = vrot.slane %v1478, 1
    %v1480 = vadd.f32 %v1478, %v1479
    %v1481 = vsel %vm494, %v1471, %v1480
    %v1482 = vld [vmem:[%s7] sm:$0xff]
    %v1483 = vld [vmem:[%s7 + $0x8] sm:$0xff]
    %v1484 = vld [vmem:[%s7 + $0x10] sm:$0xff]
    %v1485 = vld [vmem:[%s7 + $0x18] sm:$0xff]
    %v1486 = vld [vmem:[%s7 + $0x20] sm:$0xff]
    %v1487 = vld [vmem:[%s7 + $0x28] sm:$0xff]
    %v1488 = vld [vmem:[%s7 + $0x30] sm:$0xff]
    %v1489 = vld [vmem:[%s7 + $0x38] sm:$0xff]
    %v1490 = vld [vmem:[%s7 + $0x40] sm:$0xff]
    %v1491 = vld [vmem:[%s7 + $0x48] sm:$0xff]
    %v1492 = vld [vmem:[%s7 + $0x50] sm:$0xff]
    %v1493 = vld [vmem:[%s7 + $0x58] sm:$0xff]
    %v1494 = vld [vmem:[%s7 + $0x60] sm:$0xff]
    %v1495 = vld [vmem:[%s7 + $0x68] sm:$0xff]
    %v1496 = vld [vmem:[%s7 + $0x70] sm:$0xff]
    %v1497 = vld [vmem:[%s7 + $0x78] sm:$0xff]
    %1498 = vmatprep.subr.mxu0 0.0
    %1499 = vmatpush1.msra.mxu0 %v1482
    %1500 = vmatprep.subr.mxu0 0.0
    %1501 = vmatpush1.msra.mxu0 %v1483
    %1502 = vmatprep.subr.mxu0 0.0
    %1503 = vmatpush1.msra.mxu0 %v1484
    %1504 = vmatprep.subr.mxu0 0.0
    %1505 = vmatpush1.msra.mxu0 %v1485
    %1506 = vmatprep.subr.mxu0 0.0
    %1507 = vmatpush1.msra.mxu0 %v1486
    %1508 = vmatprep.subr.mxu0 0.0
    %1509 = vmatpush1.msra.mxu0 %v1487
    %1510 = vmatprep.subr.mxu0 0.0
    %1511 = vmatpush1.msra.mxu0 %v1488
    %1512 = vmatprep.subr.mxu0 0.0
    %1513 = vmatpush1.msra.mxu0 %v1489
    %1514 = vmatprep.subr.mxu0 0.0
    %1515 = vmatpush1.msra.mxu0 %v1490
    %1516 = vmatprep.subr.mxu0 0.0
    %1517 = vmatpush1.msra.mxu0 %v1491
    %1518 = vmatprep.subr.mxu0 0.0
    %1519 = vmatpush1.msra.mxu0 %v1492
    %1520 = vmatprep.subr.mxu0 0.0
    %1521 = vmatpush1.msra.mxu0 %v1493
    %1522 = vmatprep.subr.mxu0 0.0
    %1523 = vmatpush1.msra.mxu0 %v1494
    %1524 = vmatprep.subr.mxu0 0.0
    %1525 = vmatpush1.msra.mxu0 %v1495
    %1526 = vmatprep.subr.mxu0 0.0
    %1527 = vmatpush1.msra.mxu0 %v1496
    %1528 = vmatprep.subr.mxu0 0.0
    %1529 = vmatpush1.msra.mxu0 %v1497
    %1530 = vmatprep.subr.mxu0 0.0
    %1531 = vmatpush1.msra.mxu0 0.0
    %1532 = vmatprep.subr.mxu0 0.0
    %1533 = vmatpush1.msra.mxu0 0.0
    %1534 = vmatprep.subr.mxu0 0.0
    %1535 = vmatpush1.msra.mxu0 0.0
    %1536 = vmatprep.subr.mxu0 0.0
    %1537 = vmatpush1.msra.mxu0 0.0
    %1538 = vmatprep.subr.mxu0 0.0
    %1539 = vmatpush1.msra.mxu0 0.0
    %1540 = vmatprep.subr.mxu0 0.0
    %1541 = vmatpush1.msra.mxu0 0.0
    %1542 = vmatprep.subr.mxu0 0.0
    %1543 = vmatpush1.msra.mxu0 0.0
    %1544 = vmatprep.subr.mxu0 0.0
    %1545 = vmatpush1.msra.mxu0 0.0
    %1546 = vmatprep.subr.mxu0 0.0
    %1547 = vmatpush1.msra.mxu0 0.0
    %1548 = vmatprep.subr.mxu0 0.0
    %1549 = vmatpush1.msra.mxu0 0.0
    %1550 = vmatprep.subr.mxu0 0.0
    %1551 = vmatpush1.msra.mxu0 0.0
    %1552 = vmatprep.subr.mxu0 0.0
    %1553 = vmatpush1.msra.mxu0 0.0
    %1554 = vmatprep.subr.mxu0 0.0
    %1555 = vmatpush1.msra.mxu0 0.0
    %1556 = vmatprep.subr.mxu0 0.0
    %1557 = vmatpush1.msra.mxu0 0.0
    %1558 = vmatprep.subr.mxu0 0.0
    %1559 = vmatpush1.msra.mxu0 0.0
    %1560 = vmatprep.subr.mxu0 0.0
    %1561 = vmatpush1.msra.mxu0 0.0
    %1562 = vmatprep.mubr.f32.mxu0 0.0
    %1563 = vmatmul.mubr.f32.gmra.mrb[0].mxu0 %v1481
    %v1564 = vpop.f32.mrb[0].mxu0
    %v1565 = vadd.f32 0.0, %v1564
    %v1566 = vpop.f32.mrb[0].mxu0
    %1567 = vdwg.mxu0
    %v1568 = vmul.f32 %v1565, 0.0078125
    %v1569 = vmul.f32 %v1568, %v1568
    %v1571 = vrot.slane %v1569, 7
    %v1573 = vsub.f32 %v1568, %v1571
    %v1574 = vmax.f32 %v1573, 0.0
    %v1575 = vld [vmem:[%s13] sm:$0x1]
    %v1576 = vadd.f32 %v1574, 1e-05
    %v1577 = vrsqrt.pop %v1576
    %v1580 = vunpack.c.l.s4 1966171168
    %v1581 = vunpack.c.0.s8 %v1580
    %v1582 = vlaneseq
    %v1583 = vshrl.u32 %v1582, 7
    %v1584 = vsub.s32 %v1581, %v1583
    %v1585 = vrot.slane %v1577, %v1584
    %v1586 = vcombine.high %v1585, %v1585
    %v1588 = vunpack.c.l.s4 1966171168
    %v1589 = vunpack.c.0.s8 %v1588
    %v1590 = vlaneseq
    %v1591 = vshrl.u32 %v1590, 7
    %v1592 = vsub.s32 %v1589, %v1591
    %v1593 = vrot.slane %v1586, %v1592
    %v1595 = vmul.f32 %v1575, %v1593
    %v1596 = vld [vmem:[%s14] sm:$0x1]
    %v1597 = vmul.f32 %v1568, %v1595
    %v1598 = vsub.f32 %v1596, %v1597
    %v1600 = vlaneseq
    %v1601 = vshrl.u32 %v1600, 7
    %v1602 = vsub.s32 0, %v1601
    %v1603 = vrot.slane %v1598, %v1602
    %v1605 = vsel %vm494, %v1595, %v1603
    %v1606 = vld [vmem:[%s8] sm:$0xff]
    %v1607 = vld [vmem:[%s8 + $0x8] sm:$0xff]
    %vm1608 = vcmask 130048
    %v1610 = vsel %vm1608, %v1605, 0
    %1612 = vmatprep.subr.mxu0 0.0
    %1613 = vmatpush1.msra.mxu0 %v1606
    %1614 = vmatprep.subr.mxu0 0.0
    %1615 = vmatpush1.msra.mxu0 %v1607
    %1616 = vmatprep.subr.mxu0 0.0
    %1617 = vmatpush1.msra.mxu0 0.0
    %1618 = vmatprep.subr.mxu0 0.0
    %1619 = vmatpush1.msra.mxu0 0.0
    %1620 = vmatprep.subr.mxu0 0.0
    %1621 = vmatpush1.msra.mxu0 0.0
    %1622 = vmatprep.subr.mxu0 0.0
    %1623 = vmatpush1.msra.mxu0 0.0
    %1624 = vmatprep.subr.mxu0 0.0
    %1625 = vmatpush1.msra.mxu0 0.0
    %1626 = vmatprep.subr.mxu0 0.0
    %1627 = vmatpush1.msra.mxu0 0.0
    %1628 = vmatprep.subr.mxu0 0.0
    %1629 = vmatpush1.msra.mxu0 0.0
    %1630 = vmatprep.subr.mxu0 0.0
    %1631 = vmatpush1.msra.mxu0 0.0
    %1632 = vmatprep.subr.mxu0 0.0
    %1633 = vmatpush1.msra.mxu0 0.0
    %1634 = vmatprep.subr.mxu0 0.0
    %1635 = vmatpush1.msra.mxu0 0.0
    %1636 = vmatprep.subr.mxu0 0.0
    %1637 = vmatpush1.msra.mxu0 0.0
    %1638 = vmatprep.subr.mxu0 0.0
    %1639 = vmatpush1.msra.mxu0 0.0
    %1640 = vmatprep.subr.mxu0 0.0
    %1641 = vmatpush1.msra.mxu0 0.0
    %1642 = vmatprep.subr.mxu0 0.0
    %1643 = vmatpush1.msra.mxu0 0.0
    %1644 = vmatprep.subr.mxu0 0.0
    %1645 = vmatpush1.msra.mxu0 0.0
    %1646 = vmatprep.subr.mxu0 0.0
    %1647 = vmatpush1.msra.mxu0 0.0
    %1648 = vmatprep.subr.mxu0 0.0
    %1649 = vmatpush1.msra.mxu0 0.0
    %1650 = vmatprep.subr.mxu0 0.0
    %1651 = vmatpush1.msra.mxu0 0.0
    %1652 = vmatprep.subr.mxu0 0.0
    %1653 = vmatpush1.msra.mxu0 0.0
    %1654 = vmatprep.subr.mxu0 0.0
    %1655 = vmatpush1.msra.mxu0 0.0
    %1656 = vmatprep.subr.mxu0 0.0
    %1657 = vmatpush1.msra.mxu0 0.0
    %1658 = vmatprep.subr.mxu0 0.0
    %1659 = vmatpush1.msra.mxu0 0.0
    %1660 = vmatprep.subr.mxu0 0.0
    %1661 = vmatpush1.msra.mxu0 0.0
    %1662 = vmatprep.subr.mxu0 0.0
    %1663 = vmatpush1.msra.mxu0 0.0
    %1664 = vmatprep.subr.mxu0 0.0
    %1665 = vmatpush1.msra.mxu0 0.0
    %1666 = vmatprep.subr.mxu0 0.0
    %1667 = vmatpush1.msra.mxu0 0.0
    %1668 = vmatprep.subr.mxu0 0.0
    %1669 = vmatpush1.msra.mxu0 0.0
    %1670 = vmatprep.subr.mxu0 0.0
    %1671 = vmatpush1.msra.mxu0 0.0
    %1672 = vmatprep.subr.mxu0 0.0
    %1673 = vmatpush1.msra.mxu0 0.0
    %1674 = vmatprep.subr.mxu0 0.0
    %1675 = vmatpush1.msra.mxu0 0.0
    %1676 = vmatprep.mubr.f32.mxu0 0.0
    %1677 = vmatmul.mubr.f32.gmra.mrb[0].mxu0 %v1610
    %v1678 = vpop.f32.mrb[0].mxu0
    %v1679 = vadd.f32 0.0, %v1678
    %v1680 = vpop.f32.mrb[0].mxu0
    %1681 = vdwg.mxu0
    %v1682 = vlaneseq
    %v1683 = vshrl.u32 %v1682, 7
    %v1684 = vsub.s32 0, %v1683
    %v1685 = vrot.slane %v1679, %v1684
    %v1686 = vmul.f32 %v1459, %v1685
    %v1687 = vmul.f32 %v1462, %v1685
    %v1688 = vlaneseq
    %v1689 = vshrl.u32 %v1688, 7
    %v1690 = vsub.s32 1, %v1689
    %v1691 = vrot.slane %v1679, %v1690
    %v1692 = vadd.f32 %v1686, %v1691
    %v1693 = vadd.f32 %v1687, %v1691
    %v1694 = vmax.f32 %v1692, 0.0
    %v1695 = vmax.f32 %v1693, 0.0
    %v1696 = vpack.c.bf16 %v1695, %v1694
    %1697 = vst [vmem:[#allocation3 + $0x1] sm:$0x1] %v1696
    %v1700 = vunpack.c.l.s4 1966171168
    %v1701 = vunpack.c.0.s8 %v1700
    %v1702 = vlaneseq
    %v1703 = vshrl.u32 %v1702, 7
    %v1704 = vsub.s32 %v1701, %v1703
    %v1705 = vrot.slane %v1696, %v1704
    %v1706 = vcombine.high %v1705, %v1705
    %v1708 = vunpack.c.l.s4 1966171168
    %v1709 = vunpack.c.0.s8 %v1708
    %v1710 = vlaneseq
    %v1711 = vshrl.u32 %v1710, 7
    %v1712 = vsub.s32 %v1709, %v1711
    %v1713 = vrot.slane %v1705, %v1712
    %v1715 = vunpack.c.l.s4 1966171168
    %v1716 = vunpack.c.0.s8 %v1715
    %v1717 = vlaneseq
    %v1718 = vshrl.u32 %v1717, 7
    %v1719 = vsub.s32 %v1716, %v1718
    %v1720 = vrot.slane %v1706, %v1719
    %1722 = vst [vmem:[#allocation3 + $0x2] sm:$0x1] %v1720
    %v1723 = vcombine.high %v1713, %v1713
    %1725 = vst [vmem:[#allocation3 + $0x3] sm:$0x1] %v1723
    %v1726 = vcombine.high %v1720, %v1720
    %1728 = vst [vmem:[#allocation3 + $0x4] sm:$0x1] %v1726
    %v1729 = vcombine.high %v1696, %v1696
    %v1731 = vunpack.c.l.s4 1966171168
    %v1732 = vunpack.c.0.s8 %v1731
    %v1733 = vlaneseq
    %v1734 = vshrl.u32 %v1733, 7
    %v1735 = vsub.s32 %v1732, %v1734
    %v1736 = vrot.slane %v1729, %v1735
    %v1738 = vunpack.c.l.s4 1966171168
    %v1739 = vunpack.c.0.s8 %v1738
    %v1740 = vlaneseq
    %v1741 = vshrl.u32 %v1740, 7
    %v1742 = vsub.s32 %v1739, %v1741
    %v1743 = vrot.slane %v1736, %v1742
    %1745 = vst [vmem:[#allocation3 + $0x5] sm:$0x1] %v1743
    %v1746 = vcombine.high %v1736, %v1736
    %v1748 = vunpack.c.l.s4 1966171168
    %v1749 = vunpack.c.0.s8 %v1748
    %v1750 = vlaneseq
    %v1751 = vshrl.u32 %v1750, 7
    %v1752 = vsub.s32 %v1749, %v1751
    %v1753 = vrot.slane %v1746, %v1752
    %1755 = vst [vmem:[#allocation3 + $0x6] sm:$0x1] %v1753
    %v1756 = vcombine.high %v1743, %v1743
    %1758 = vst [vmem:[#allocation3 + $0x7] sm:$0x1] %v1756
    %v1759 = vcombine.high %v1753, %v1753
    %1761 = vst [vmem:[#allocation3 + $0x8] sm:$0x1] %v1759
    %v1762 = vld [vmem:[#allocation3] sm:$0xf]
    %v1765 = vunpack.c.l.s4 1966171168
    %v1766 = vunpack.c.0.s8 %v1765
    %v1767 = vlaneseq
    %v1768 = vshrl.u32 %v1767, 7
    %v1769 = vsub.s32 %v1766, %v1768
    %v1770 = vrot.slane %v1762, %v1769
    %v1771 = vcombine.high %v1770, %v1770
    %v1773 = vunpack.c.l.s4 1966171168
    %v1774 = vunpack.c.0.s8 %v1773
    %v1775 = vlaneseq
    %v1776 = vshrl.u32 %v1775, 7
    %v1777 = vsub.s32 %v1774, %v1776
    %v1778 = vrot.slane %v1770, %v1777
    %v1780 = vunpack.c.l.s4 1966171168
    %v1781 = vunpack.c.0.s8 %v1780
    %v1782 = vlaneseq
    %v1783 = vshrl.u32 %v1782, 7
    %v1784 = vsub.s32 %v1781, %v1783
    %v1785 = vrot.slane %v1771, %v1784
    %v1786 = vcombine.high %v1778, %v1778
    %v1787 = vcombine.high %v1785, %v1785
    %1792 = vst [vmem:[#allocation5] sm:$0x1] %v1778
    %1793 = vst [vmem:[#allocation5 + $0x8] sm:$0x1] %v1785
    %1794 = vst [vmem:[#allocation5 + $0x10] sm:$0x1] %v1786
    %1795 = vst [vmem:[#allocation5 + $0x18] sm:$0x1] %v1787
    %v1796 = vld [vmem:[#allocation3 + $0x2] sm:$0xf]
    %v1798 = vcombine.low %v1796, %v1796
    %v1800 = vunpack.c.l.s4 1966171168
    %v1801 = vunpack.c.0.s8 %v1800
    %v1802 = vlaneseq
    %v1803 = vshrl.u32 %v1802, 7
    %v1804 = vsub.s32 %v1801, %v1803
    %v1805 = vrot.slane %v1798, %v1804
    %v1806 = vcombine.high %v1805, %v1805
    %v1808 = vunpack.c.l.s4 1966171168
    %v1809 = vunpack.c.0.s8 %v1808
    %v1810 = vlaneseq
    %v1811 = vshrl.u32 %v1810, 7
    %v1812 = vsub.s32 %v1809, %v1811
    %v1813 = vrot.slane %v1805, %v1812
    %v1815 = vunpack.c.l.s4 1966171168
    %v1816 = vunpack.c.0.s8 %v1815
    %v1817 = vlaneseq
    %v1818 = vshrl.u32 %v1817, 7
    %v1819 = vsub.s32 %v1816, %v1818
    %v1820 = vrot.slane %v1806, %v1819
    %v1821 = vcombine.high %v1813, %v1813
    %v1822 = vcombine.high %v1820, %v1820
    %1827 = vst [vmem:[#allocation5] sm:$0x2] %v1813
    %1828 = vst [vmem:[#allocation5 + $0x8] sm:$0x2] %v1820
    %1829 = vst [vmem:[#allocation5 + $0x10] sm:$0x2] %v1821
    %1830 = vst [vmem:[#allocation5 + $0x18] sm:$0x2] %v1822
    %v1831 = vld [vmem:[#allocation3 + $0x4] sm:$0xf]
    %v1834 = vunpack.c.l.s4 1966171168
    %v1835 = vunpack.c.0.s8 %v1834
    %v1836 = vlaneseq
    %v1837 = vshrl.u32 %v1836, 7
    %v1838 = vsub.s32 %v1835, %v1837
    %v1839 = vrot.slane %v1831, %v1838
    %v1840 = vcombine.low %v1839, %v1839
    %v1842 = vunpack.c.l.s4 1966171168
    %v1843 = vunpack.c.0.s8 %v1842
    %v1844 = vlaneseq
    %v1845 = vshrl.u32 %v1844, 7
    %v1846 = vsub.s32 %v1843, %v1845
    %v1847 = vrot.slane %v1840, %v1846
    %v1849 = vunpack.c.l.s4 1966171168
    %v1850 = vunpack.c.0.s8 %v1849
    %v1851 = vlaneseq
    %v1852 = vshrl.u32 %v1851, 7
    %v1853 = vsub.s32 %v1850, %v1852
    %v1854 = vrot.slane %v1839, %v1853
    %v1855 = vcombine.high %v1847, %v1847
    %v1856 = vcombine.high %v1854, %v1854
    %1861 = vst [vmem:[#allocation5] sm:$0x4] %v1847
    %1862 = vst [vmem:[#allocation5 + $0x8] sm:$0x4] %v1854
    %1863 = vst [vmem:[#allocation5 + $0x10] sm:$0x4] %v1855
    %1864 = vst [vmem:[#allocation5 + $0x18] sm:$0x4] %v1856
    %v1865 = vld [vmem:[#allocation3 + $0x6] sm:$0xf]
    %v1867 = vcombine.low %v1865, %v1865
    %v1869 = vunpack.c.l.s4 1966171168
    %v1870 = vunpack.c.0.s8 %v1869
    %v1871 = vlaneseq
    %v1872 = vshrl.u32 %v1871, 7
    %v1873 = vsub.s32 %v1870, %v1872
    %v1874 = vrot.slane %v1867, %v1873
    %v1875 = vcombine.low %v1874, %v1874
    %v1877 = vunpack.c.l.s4 1966171168
    %v1878 = vunpack.c.0.s8 %v1877
    %v1879 = vlaneseq
    %v1880 = vshrl.u32 %v1879, 7
    %v1881 = vsub.s32 %v1878, %v1880
    %v1882 = vrot.slane %v1875, %v1881
    %v1884 = vunpack.c.l.s4 1966171168
    %v1885 = vunpack.c.0.s8 %v1884
    %v1886 = vlaneseq
    %v1887 = vshrl.u32 %v1886, 7
    %v1888 = vsub.s32 %v1885, %v1887
    %v1889 = vrot.slane %v1874, %v1888
    %v1890 = vcombine.high %v1882, %v1882
    %v1891 = vcombine.high %v1889, %v1889
    %1896 = vst [vmem:[#allocation5] sm:$0x8] %v1882
    %1897 = vst [vmem:[#allocation5 + $0x8] sm:$0x8] %v1889
    %1898 = vst [vmem:[#allocation5 + $0x10] sm:$0x8] %v1890
    %1899 = vst [vmem:[#allocation5 + $0x18] sm:$0x8] %v1891
    %v1900 = vld [vmem:[#allocation5] sm:$0xf]
    %v1901 = vld [vmem:[#allocation5 + $0x8] sm:$0xf]
    %v1902 = vld [vmem:[#allocation5 + $0x10] sm:$0xf]
    %v1903 = vld [vmem:[#allocation5 + $0x18] sm:$0xf]
    %v1904 = vld [vmem:[%s3] sm:$0xf]
    %v1905 = vld [vmem:[%s3 + $0x4] sm:$0xf]
    %v1906 = vld [vmem:[%s3 + $0x8] sm:$0xf]
    %v1907 = vld [vmem:[%s3 + $0xc] sm:$0xf]
    %v1908 = vld [vmem:[%s3 + $0x10] sm:$0xf]
    %v1909 = vld [vmem:[%s3 + $0x14] sm:$0xf]
    %v1910 = vld [vmem:[%s3 + $0x18] sm:$0xf]
    %v1911 = vld [vmem:[%s3 + $0x1c] sm:$0xf]
    %v1912 = vld [vmem:[%s3 + $0x20] sm:$0xf]
    %v1913 = vld [vmem:[%s3 + $0x24] sm:$0xf]
    %v1914 = vld [vmem:[%s3 + $0x28] sm:$0xf]
    %v1915 = vld [vmem:[%s3 + $0x2c] sm:$0xf]
    %v1916 = vld [vmem:[%s3 + $0x30] sm:$0xf]
    %v1917 = vld [vmem:[%s3 + $0x34] sm:$0xf]
    %v1918 = vld [vmem:[%s3 + $0x38] sm:$0xf]
    %v1919 = vld [vmem:[%s3 + $0x3c] sm:$0xf]
    %v1920 = vld [vmem:[%s3 + $0x40] sm:$0xf]
    %v1921 = vld [vmem:[%s3 + $0x44] sm:$0xf]
    %v1922 = vld [vmem:[%s3 + $0x48] sm:$0xf]
    %v1923 = vld [vmem:[%s3 + $0x4c] sm:$0xf]
    %v1924 = vld [vmem:[%s3 + $0x50] sm:$0xf]
    %v1925 = vld [vmem:[%s3 + $0x54] sm:$0xf]
    %v1926 = vld [vmem:[%s3 + $0x58] sm:$0xf]
    %v1927 = vld [vmem:[%s3 + $0x5c] sm:$0xf]
    %v1928 = vld [vmem:[%s3 + $0x60] sm:$0xf]
    %v1929 = vld [vmem:[%s3 + $0x64] sm:$0xf]
    %v1930 = vld [vmem:[%s3 + $0x68] sm:$0xf]
    %v1931 = vld [vmem:[%s3 + $0x6c] sm:$0xf]
    %v1932 = vld [vmem:[%s3 + $0x70] sm:$0xf]
    %v1933 = vld [vmem:[%s3 + $0x74] sm:$0xf]
    %v1934 = vld [vmem:[%s3 + $0x78] sm:$0xf]
    %v1935 = vld [vmem:[%s3 + $0x7c] sm:$0xf]
    %v1936 = vld [vmem:[%s3 + $0x80] sm:$0xf]
    %v1937 = vld [vmem:[%s3 + $0x84] sm:$0xf]
    %v1938 = vld [vmem:[%s3 + $0x88] sm:$0xf]
    %v1939 = vld [vmem:[%s3 + $0x8c] sm:$0xf]
    %v1940 = vld [vmem:[%s3 + $0x90] sm:$0xf]
    %v1941 = vld [vmem:[%s3 + $0x94] sm:$0xf]
    %v1942 = vld [vmem:[%s3 + $0x98] sm:$0xf]
    %v1943 = vld [vmem:[%s3 + $0x9c] sm:$0xf]
    %v1944 = vld [vmem:[%s3 + $0xa0] sm:$0xf]
    %v1945 = vld [vmem:[%s3 + $0xa4] sm:$0xf]
    %v1946 = vld [vmem:[%s3 + $0xa8] sm:$0xf]
    %v1947 = vld [vmem:[%s3 + $0xac] sm:$0xf]
    %v1948 = vld [vmem:[%s3 + $0xb0] sm:$0xf]
    %v1949 = vld [vmem:[%s3 + $0xb4] sm:$0xf]
    %v1950 = vld [vmem:[%s3 + $0xb8] sm:$0xf]
    %v1951 = vld [vmem:[%s3 + $0xbc] sm:$0xf]
    %v1952 = vld [vmem:[%s3 + $0xc0] sm:$0xf]
    %v1953 = vld [vmem:[%s3 + $0xc4] sm:$0xf]
    %v1954 = vld [vmem:[%s3 + $0xc8] sm:$0xf]
    %v1955 = vld [vmem:[%s3 + $0xcc] sm:$0xf]
    %v1956 = vld [vmem:[%s3 + $0xd0] sm:$0xf]
    %v1957 = vld [vmem:[%s3 + $0xd4] sm:$0xf]
    %v1958 = vld [vmem:[%s3 + $0xd8] sm:$0xf]
    %v1959 = vld [vmem:[%s3 + $0xdc] sm:$0xf]
    %v1960 = vld [vmem:[%s3 + $0xe0] sm:$0xf]
    %v1961 = vld [vmem:[%s3 + $0xe4] sm:$0xf]
    %v1962 = vld [vmem:[%s3 + $0xe8] sm:$0xf]
    %v1963 = vld [vmem:[%s3 + $0xec] sm:$0xf]
    %v1964 = vld [vmem:[%s3 + $0xf0] sm:$0xf]
    %v1965 = vld [vmem:[%s3 + $0xf4] sm:$0xf]
    %v1966 = vld [vmem:[%s3 + $0xf8] sm:$0xf]
    %v1967 = vld [vmem:[%s3 + $0xfc] sm:$0xf]
    %v2032 = vunpack.c.l.b16 %v1904
    %v2033 = vunpack.c.l.b16 %v1905
    %v2034 = vunpack.c.l.b16 %v1906
    %v2035 = vunpack.c.l.b16 %v1907
    %v2036 = vunpack.c.l.b16 %v1908
    %v2037 = vunpack.c.l.b16 %v1909
    %v2038 = vunpack.c.l.b16 %v1910
    %v2039 = vunpack.c.l.b16 %v1911
    %v2040 = vunpack.c.l.b16 %v1912
    %v2041 = vunpack.c.l.b16 %v1913
    %v2042 = vunpack.c.l.b16 %v1914
    %v2043 = vunpack.c.l.b16 %v1915
    %v2044 = vunpack.c.l.b16 %v1916
    %v2045 = vunpack.c.l.b16 %v1917
    %v2046 = vunpack.c.l.b16 %v1918
    %v2047 = vunpack.c.l.b16 %v1919
    %v2048 = vunpack.c.l.b16 %v1920
    %v2049 = vunpack.c.l.b16 %v1921
    %v2050 = vunpack.c.l.b16 %v1922
    %v2051 = vunpack.c.l.b16 %v1923
    %v2052 = vunpack.c.l.b16 %v1924
    %v2053 = vunpack.c.l.b16 %v1925
    %v2054 = vunpack.c.l.b16 %v1926
    %v2055 = vunpack.c.l.b16 %v1927
    %v2056 = vunpack.c.l.b16 %v1928
    %v2057 = vunpack.c.l.b16 %v1929
    %v2058 = vunpack.c.l.b16 %v1930
    %v2059 = vunpack.c.l.b16 %v1931
    %v2060 = vunpack.c.l.b16 %v1932
    %v2061 = vunpack.c.l.b16 %v1933
    %v2062 = vunpack.c.l.b16 %v1934
    %v2063 = vunpack.c.l.b16 %v1935
    %v2064 = vunpack.c.l.b16 %v1936
    %v2065 = vunpack.c.l.b16 %v1937
    %v2066 = vunpack.c.l.b16 %v1938
    %v2067 = vunpack.c.l.b16 %v1939
    %v2068 = vunpack.c.l.b16 %v1940
    %v2069 = vunpack.c.l.b16 %v1941
    %v2070 = vunpack.c.l.b16 %v1942
    %v2071 = vunpack.c.l.b16 %v1943
    %v2072 = vunpack.c.l.b16 %v1944
    %v2073 = vunpack.c.l.b16 %v1945
    %v2074 = vunpack.c.l.b16 %v1946
    %v2075 = vunpack.c.l.b16 %v1947
    %v2076 = vunpack.c.l.b16 %v1948
    %v2077 = vunpack.c.l.b16 %v1949
    %v2078 = vunpack.c.l.b16 %v1950
    %v2079 = vunpack.c.l.b16 %v1951
    %v2080 = vunpack.c.l.b16 %v1952
    %v2081 = vunpack.c.l.b16 %v1953
    %v2082 = vunpack.c.l.b16 %v1954
    %v2083 = vunpack.c.l.b16 %v1955
    %v2084 = vunpack.c.l.b16 %v1956
    %v2085 = vunpack.c.l.b16 %v1957
    %v2086 = vunpack.c.l.b16 %v1958
    %v2087 = vunpack.c.l.b16 %v1959
    %v2088 = vunpack.c.l.b16 %v1960
    %v2089 = vunpack.c.l.b16 %v1961
    %v2090 = vunpack.c.l.b16 %v1962
    %v2091 = vunpack.c.l.b16 %v1963
    %v2092 = vunpack.c.l.b16 %v1964
    %v2093 = vunpack.c.l.b16 %v1965
    %v2094 = vunpack.c.l.b16 %v1966
    %v2095 = vunpack.c.l.b16 %v1967
    %v2096 = vpack.c.b16 %v2033, %v2032
    %v2097 = vpack.c.b16 %v2035, %v2034
    %v2098 = vpack.c.b16 %v2037, %v2036
    %v2099 = vpack.c.b16 %v2039, %v2038
    %v2100 = vpack.c.b16 %v2041, %v2040
    %v2101 = vpack.c.b16 %v2043, %v2042
    %v2102 = vpack.c.b16 %v2045, %v2044
    %v2103 = vpack.c.b16 %v2047, %v2046
    %v2104 = vpack.c.b16 %v2049, %v2048
    %v2105 = vpack.c.b16 %v2051, %v2050
    %v2106 = vpack.c.b16 %v2053, %v2052
    %v2107 = vpack.c.b16 %v2055, %v2054
    %v2108 = vpack.c.b16 %v2057, %v2056
    %v2109 = vpack.c.b16 %v2059, %v2058
    %v2110 = vpack.c.b16 %v2061, %v2060
    %v2111 = vpack.c.b16 %v2063, %v2062
    %v2112 = vpack.c.b16 %v2065, %v2064
    %v2113 = vpack.c.b16 %v2067, %v2066
    %v2114 = vpack.c.b16 %v2069, %v2068
    %v2115 = vpack.c.b16 %v2071, %v2070
    %v2116 = vpack.c.b16 %v2073, %v2072
    %v2117 = vpack.c.b16 %v2075, %v2074
    %v2118 = vpack.c.b16 %v2077, %v2076
    %v2119 = vpack.c.b16 %v2079, %v2078
    %v2120 = vpack.c.b16 %v2081, %v2080
    %v2121 = vpack.c.b16 %v2083, %v2082
    %v2122 = vpack.c.b16 %v2085, %v2084
    %v2123 = vpack.c.b16 %v2087, %v2086
    %v2124 = vpack.c.b16 %v2089, %v2088
    %v2125 = vpack.c.b16 %v2091, %v2090
    %v2126 = vpack.c.b16 %v2093, %v2092
    %v2127 = vpack.c.b16 %v2095, %v2094
    %2160 = vmatprep.subr.bf16.mxu0 0
    %2161 = vmatpush1.bf16.msra.mxu0 %v2096
    %2162 = vmatprep.subr.bf16.mxu0 0
    %2163 = vmatpush1.bf16.msra.mxu0 %v2097
    %2164 = vmatprep.subr.bf16.mxu0 0
    %2165 = vmatpush1.bf16.msra.mxu0 %v2098
    %2166 = vmatprep.subr.bf16.mxu0 0
    %2167 = vmatpush1.bf16.msra.mxu0 %v2099
    %2168 = vmatprep.subr.bf16.mxu0 0
    %2169 = vmatpush1.bf16.msra.mxu0 %v2100
    %2170 = vmatprep.subr.bf16.mxu0 0
    %2171 = vmatpush1.bf16.msra.mxu0 %v2101
    %2172 = vmatprep.subr.bf16.mxu0 0
    %2173 = vmatpush1.bf16.msra.mxu0 %v2102
    %2174 = vmatprep.subr.bf16.mxu0 0
    %2175 = vmatpush1.bf16.msra.mxu0 %v2103
    %2176 = vmatprep.subr.bf16.mxu0 0
    %2177 = vmatpush1.bf16.msra.mxu0 %v2104
    %2178 = vmatprep.subr.bf16.mxu0 0
    %2179 = vmatpush1.bf16.msra.mxu0 %v2105
    %2180 = vmatprep.subr.bf16.mxu0 0
    %2181 = vmatpush1.bf16.msra.mxu0 %v2106
    %2182 = vmatprep.subr.bf16.mxu0 0
    %2183 = vmatpush1.bf16.msra.mxu0 %v2107
    %2184 = vmatprep.subr.bf16.mxu0 0
    %2185 = vmatpush1.bf16.msra.mxu0 %v2108
    %2186 = vmatprep.subr.bf16.mxu0 0
    %2187 = vmatpush1.bf16.msra.mxu0 %v2109
    %2188 = vmatprep.subr.bf16.mxu0 0
    %2189 = vmatpush1.bf16.msra.mxu0 %v2110
    %2190 = vmatprep.subr.bf16.mxu0 0
    %2191 = vmatpush1.bf16.msra.mxu0 %v2111
    %2192 = vmatprep.mubr.bf16.mxu0 %v1901
    %2193 = vmatmul.mubr.bf16.gmra.mrb[0].mxu0 %v1900
    %v2194 = vpop.f32.mrb[0].mxu0
    %v2195 = vadd.f32 0.0, %v2194
    %v2196 = vpop.f32.mrb[0].mxu0
    %v2197 = vpop.f32.mrb[0].mxu0
    %v2198 = vpop.f32.mrb[0].mxu0
    %2199 = vdwg.mxu0
    %2200 = vmatprep.subr.bf16.mxu0 0
    %2201 = vmatpush1.bf16.msra.mxu0 %v2112
    %2202 = vmatprep.subr.bf16.mxu0 0
    %2203 = vmatpush1.bf16.msra.mxu0 %v2113
    %2204 = vmatprep.subr.bf16.mxu0 0
    %2205 = vmatpush1.bf16.msra.mxu0 %v2114
    %2206 = vmatprep.subr.bf16.mxu0 0
    %2207 = vmatpush1.bf16.msra.mxu0 %v2115
    %2208 = vmatprep.subr.bf16.mxu0 0
    %2209 = vmatpush1.bf16.msra.mxu0 %v2116
    %2210 = vmatprep.subr.bf16.mxu0 0
    %2211 = vmatpush1.bf16.msra.mxu0 %v2117
    %2212 = vmatprep.subr.bf16.mxu0 0
    %2213 = vmatpush1.bf16.msra.mxu0 %v2118
    %2214 = vmatprep.subr.bf16.mxu0 0
    %2215 = vmatpush1.bf16.msra.mxu0 %v2119
    %2216 = vmatprep.subr.bf16.mxu0 0
    %2217 = vmatpush1.bf16.msra.mxu0 %v2120
    %2218 = vmatprep.subr.bf16.mxu0 0
    %2219 = vmatpush1.bf16.msra.mxu0 %v2121
    %2220 = vmatprep.subr.bf16.mxu0 0
    %2221 = vmatpush1.bf16.msra.mxu0 %v2122
    %2222 = vmatprep.subr.bf16.mxu0 0
    %2223 = vmatpush1.bf16.msra.mxu0 %v2123
    %2224 = vmatprep.subr.bf16.mxu0 0
    %2225 = vmatpush1.bf16.msra.mxu0 %v2124
    %2226 = vmatprep.subr.bf16.mxu0 0
    %2227 = vmatpush1.bf16.msra.mxu0 %v2125
    %2228 = vmatprep.subr.bf16.mxu0 0
    %2229 = vmatpush1.bf16.msra.mxu0 %v2126
    %2230 = vmatprep.subr.bf16.mxu0 0
    %2231 = vmatpush1.bf16.msra.mxu0 %v2127
    %2232 = vmatprep.mubr.bf16.mxu0 %v1903
    %2233 = vmatmul.mubr.bf16.gmra.mrb[0].mxu0 %v1902
    %v2234 = vpop.f32.mrb[0].mxu0
    %v2235 = vadd.f32 %v2195, %v2234
    %v2236 = vpop.f32.mrb[0].mxu0
    %v2237 = vpop.f32.mrb[0].mxu0
    %v2238 = vpop.f32.mrb[0].mxu0
    %2239 = vdwg.mxu0
    %v2240 = vrot.slane %v2235, 4
    %v2241 = vadd.f32 %v2235, %v2240
    %v2242 = vrot.slane %v2241, 2
    %v2243 = vadd.f32 %v2241, %v2242
    %v2244 = vrot.slane %v2243, 1
    %v2245 = vadd.f32 %v2243, %v2244
    %v2246 = vmul.f32 %v2235, %v2235
    %v2247 = vrot.slane %v2246, 4
    %v2248 = vadd.f32 %v2246, %v2247
    %v2249 = vrot.slane %v2248, 2
    %v2250 = vadd.f32 %v2248, %v2249
    %v2251 = vrot.slane %v2250, 1
    %v2252 = vadd.f32 %v2250, %v2251
    %v2253 = vsel %vm494, %v2245, %v2252
    %v2254 = vld [vmem:[%s9] sm:$0xff]
    %v2255 = vld [vmem:[%s9 + $0x8] sm:$0xff]
    %v2256 = vld [vmem:[%s9 + $0x10] sm:$0xff]
    %v2257 = vld [vmem:[%s9 + $0x18] sm:$0xff]
    %v2258 = vld [vmem:[%s9 + $0x20] sm:$0xff]
    %v2259 = vld [vmem:[%s9 + $0x28] sm:$0xff]
    %v2260 = vld [vmem:[%s9 + $0x30] sm:$0xff]
    %v2261 = vld [vmem:[%s9 + $0x38] sm:$0xff]
    %v2262 = vld [vmem:[%s9 + $0x40] sm:$0xff]
    %v2263 = vld [vmem:[%s9 + $0x48] sm:$0xff]
    %v2264 = vld [vmem:[%s9 + $0x50] sm:$0xff]
    %v2265 = vld [vmem:[%s9 + $0x58] sm:$0xff]
    %v2266 = vld [vmem:[%s9 + $0x60] sm:$0xff]
    %v2267 = vld [vmem:[%s9 + $0x68] sm:$0xff]
    %v2268 = vld [vmem:[%s9 + $0x70] sm:$0xff]
    %v2269 = vld [vmem:[%s9 + $0x78] sm:$0xff]
    %2270 = vmatprep.subr.mxu0 0.0
    %2271 = vmatpush1.msra.mxu0 %v2254
    %2272 = vmatprep.subr.mxu0 0.0
    %2273 = vmatpush1.msra.mxu0 %v2255
    %2274 = vmatprep.subr.mxu0 0.0
    %2275 = vmatpush1.msra.mxu0 %v2256
    %2276 = vmatprep.subr.mxu0 0.0
    %2277 = vmatpush1.msra.mxu0 %v2257
    %2278 = vmatprep.subr.mxu0 0.0
    %2279 = vmatpush1.msra.mxu0 %v2258
    %2280 = vmatprep.subr.mxu0 0.0
    %2281 = vmatpush1.msra.mxu0 %v2259
    %2282 = vmatprep.subr.mxu0 0.0
    %2283 = vmatpush1.msra.mxu0 %v2260
    %2284 = vmatprep.subr.mxu0 0.0
    %2285 = vmatpush1.msra.mxu0 %v2261
    %2286 = vmatprep.subr.mxu0 0.0
    %2287 = vmatpush1.msra.mxu0 %v2262
    %2288 = vmatprep.subr.mxu0 0.0
    %2289 = vmatpush1.msra.mxu0 %v2263
    %2290 = vmatprep.subr.mxu0 0.0
    %2291 = vmatpush1.msra.mxu0 %v2264
    %2292 = vmatprep.subr.mxu0 0.0
    %2293 = vmatpush1.msra.mxu0 %v2265
    %2294 = vmatprep.subr.mxu0 0.0
    %2295 = vmatpush1.msra.mxu0 %v2266
    %2296 = vmatprep.subr.mxu0 0.0
    %2297 = vmatpush1.msra.mxu0 %v2267
    %2298 = vmatprep.subr.mxu0 0.0
    %2299 = vmatpush1.msra.mxu0 %v2268
    %2300 = vmatprep.subr.mxu0 0.0
    %2301 = vmatpush1.msra.mxu0 %v2269
    %2302 = vmatprep.subr.mxu0 0.0
    %2303 = vmatpush1.msra.mxu0 0.0
    %2304 = vmatprep.subr.mxu0 0.0
    %2305 = vmatpush1.msra.mxu0 0.0
    %2306 = vmatprep.subr.mxu0 0.0
    %2307 = vmatpush1.msra.mxu0 0.0
    %2308 = vmatprep.subr.mxu0 0.0
    %2309 = vmatpush1.msra.mxu0 0.0
    %2310 = vmatprep.subr.mxu0 0.0
    %2311 = vmatpush1.msra.mxu0 0.0
    %2312 = vmatprep.subr.mxu0 0.0
    %2313 = vmatpush1.msra.mxu0 0.0
    %2314 = vmatprep.subr.mxu0 0.0
    %2315 = vmatpush1.msra.mxu0 0.0
    %2316 = vmatprep.subr.mxu0 0.0
    %2317 = vmatpush1.msra.mxu0 0.0
    %2318 = vmatprep.subr.mxu0 0.0
    %2319 = vmatpush1.msra.mxu0 0.0
    %2320 = vmatprep.subr.mxu0 0.0
    %2321 = vmatpush1.msra.mxu0 0.0
    %2322 = vmatprep.subr.mxu0 0.0
    %2323 = vmatpush1.msra.mxu0 0.0
    %2324 = vmatprep.subr.mxu0 0.0
    %2325 = vmatpush1.msra.mxu0 0.0
    %2326 = vmatprep.subr.mxu0 0.0
    %2327 = vmatpush1.msra.mxu0 0.0
    %2328 = vmatprep.subr.mxu0 0.0
    %2329 = vmatpush1.msra.mxu0 0.0
    %2330 = vmatprep.subr.mxu0 0.0
    %2331 = vmatpush1.msra.mxu0 0.0
    %2332 = vmatprep.subr.mxu0 0.0
    %2333 = vmatpush1.msra.mxu0 0.0
    %2334 = vmatprep.mubr.f32.mxu0 0.0
    %2335 = vmatmul.mubr.f32.gmra.mrb[0].mxu0 %v2253
    %v2336 = vpop.f32.mrb[0].mxu0
    %v2337 = vadd.f32 0.0, %v2336
    %v2338 = vpop.f32.mrb[0].mxu0
    %2339 = vdwg.mxu0
    %v2340 = vmul.f32 %v2337, 0.03125
    %v2341 = vmul.f32 %v2340, %v2340
    %v2343 = vrot.slane %v2341, 7
    %v2345 = vsub.f32 %v2340, %v2343
    %v2346 = vmax.f32 %v2345, 0.0
    %v2347 = vld [vmem:[%s15] sm:$0x1]
    %v2348 = vadd.f32 %v2346, 1e-05
    %v2349 = vrsqrt.pop %v2348
    %v2352 = vunpack.c.l.s4 1966171168
    %v2353 = vunpack.c.0.s8 %v2352
    %v2354 = vlaneseq
    %v2355 = vshrl.u32 %v2354, 7
    %v2356 = vsub.s32 %v2353, %v2355
    %v2357 = vrot.slane %v2349, %v2356
    %v2358 = vcombine.high %v2357, %v2357
    %v2360 = vunpack.c.l.s4 1966171168
    %v2361 = vunpack.c.0.s8 %v2360
    %v2362 = vlaneseq
    %v2363 = vshrl.u32 %v2362, 7
    %v2364 = vsub.s32 %v2361, %v2363
    %v2365 = vrot.slane %v2358, %v2364
    %v2367 = vmul.f32 %v2347, %v2365
    %v2368 = vld [vmem:[%s16] sm:$0x1]
    %v2369 = vmul.f32 %v2340, %v2367
    %v2370 = vsub.f32 %v2368, %v2369
    %v2372 = vlaneseq
    %v2373 = vshrl.u32 %v2372, 7
    %v2374 = vsub.s32 0, %v2373
    %v2375 = vrot.slane %v2370, %v2374
    %v2377 = vsel %vm494, %v2367, %v2375
    %v2378 = vld [vmem:[%s10] sm:$0xff]
    %v2379 = vld [vmem:[%s10 + $0x8] sm:$0xff]
    %v2380 = vld [vmem:[%s10 + $0x10] sm:$0xff]
    %v2381 = vld [vmem:[%s10 + $0x18] sm:$0xff]
    %vm2382 = vcmask 261120
    %v2384 = vsel %vm2382, %v2377, 0
    %2386 = vmatprep.subr.mxu0 0.0
    %2387 = vmatpush1.msra.mxu0 %v2378
    %2388 = vmatprep.subr.mxu0 0.0
    %2389 = vmatpush1.msra.mxu0 %v2379
    %2390 = vmatprep.subr.mxu0 0.0
    %2391 = vmatpush1.msra.mxu0 %v2380
    %2392 = vmatprep.subr.mxu0 0.0
    %2393 = vmatpush1.msra.mxu0 %v2381
    %2394 = vmatprep.subr.mxu0 0.0
    %2395 = vmatpush1.msra.mxu0 0.0
    %2396 = vmatprep.subr.mxu0 0.0
    %2397 = vmatpush1.msra.mxu0 0.0
    %2398 = vmatprep.subr.mxu0 0.0
    %2399 = vmatpush1.msra.mxu0 0.0
    %2400 = vmatprep.subr.mxu0 0.0
    %2401 = vmatpush1.msra.mxu0 0.0
    %2402 = vmatprep.subr.mxu0 0.0
    %2403 = vmatpush1.msra.mxu0 0.0
    %2404 = vmatprep.subr.mxu0 0.0
    %2405 = vmatpush1.msra.mxu0 0.0
    %2406 = vmatprep.subr.mxu0 0.0
    %2407 = vmatpush1.msra.mxu0 0.0
    %2408 = vmatprep.subr.mxu0 0.0
    %2409 = vmatpush1.msra.mxu0 0.0
    %2410 = vmatprep.subr.mxu0 0.0
    %2411 = vmatpush1.msra.mxu0 0.0
    %2412 = vmatprep.subr.mxu0 0.0
    %2413 = vmatpush1.msra.mxu0 0.0
    %2414 = vmatprep.subr.mxu0 0.0
    %2415 = vmatpush1.msra.mxu0 0.0
    %2416 = vmatprep.subr.mxu0 0.0
    %2417 = vmatpush1.msra.mxu0 0.0
    %2418 = vmatprep.subr.mxu0 0.0
    %2419 = vmatpush1.msra.mxu0 0.0
    %2420 = vmatprep.subr.mxu0 0.0
    %2421 = vmatpush1.msra.mxu0 0.0
    %2422 = vmatprep.subr.mxu0 0.0
    %2423 = vmatpush1.msra.mxu0 0.0
    %2424 = vmatprep.subr.mxu0 0.0
    %2425 = vmatpush1.msra.mxu0 0.0
    %2426 = vmatprep.subr.mxu0 0.0
    %2427 = vmatpush1.msra.mxu0 0.0
    %2428 = vmatprep.subr.mxu0 0.0
    %2429 = vmatpush1.msra.mxu0 0.0
    %2430 = vmatprep.subr.mxu0 0.0
    %2431 = vmatpush1.msra.mxu0 0.0
    %2432 = vmatprep.subr.mxu0 0.0
    %2433 = vmatpush1.msra.mxu0 0.0
    %2434 = vmatprep.subr.mxu0 0.0
    %2435 = vmatpush1.msra.mxu0 0.0
    %2436 = vmatprep.subr.mxu0 0.0
    %2437 = vmatpush1.msra.mxu0 0.0
    %2438 = vmatprep.subr.mxu0 0.0
    %2439 = vmatpush1.msra.mxu0 0.0
    %2440 = vmatprep.subr.mxu0 0.0
    %2441 = vmatpush1.msra.mxu0 0.0
    %2442 = vmatprep.subr.mxu0 0.0
    %2443 = vmatpush1.msra.mxu0 0.0
    %2444 = vmatprep.subr.mxu0 0.0
    %2445 = vmatpush1.msra.mxu0 0.0
    %2446 = vmatprep.subr.mxu0 0.0
    %2447 = vmatpush1.msra.mxu0 0.0
    %2448 = vmatprep.subr.mxu0 0.0
    %2449 = vmatpush1.msra.mxu0 0.0
    %2450 = vmatprep.mubr.f32.mxu0 0.0
    %2451 = vmatmul.mubr.f32.gmra.mrb[0].mxu0 %v2384
    %v2452 = vpop.f32.mrb[0].mxu0
    %v2453 = vadd.f32 0.0, %v2452
    %v2454 = vpop.f32.mrb[0].mxu0
    %2455 = vdwg.mxu0
    %v2456 = vlaneseq
    %v2457 = vshrl.u32 %v2456, 7
    %v2458 = vsub.s32 0, %v2457
    %v2459 = vrot.slane %v2453, %v2458
    %v2460 = vmul.f32 %v2235, %v2459
    %v2461 = vlaneseq
    %v2462 = vshrl.u32 %v2461, 7
    %v2463 = vsub.s32 1, %v2462
    %v2464 = vrot.slane %v2453, %v2463
    %v2465 = vadd.f32 %v2460, %v2464
    %v2466 = vmax.f32 %v2465, 0.0
    %v2467 = vpack.c.bf16 %v2466, %v2466
    %2468 = vst [vmem:[#allocation4] sm:$0x1] %v2467
    %v2471 = vunpack.c.l.s4 1966171168
    %v2472 = vunpack.c.0.s8 %v2471
    %v2473 = vlaneseq
    %v2474 = vshrl.u32 %v2473, 7
    %v2475 = vsub.s32 %v2472, %v2474
    %v2476 = vrot.slane %v2467, %v2475
    %v2477 = vcombine.high %v2476, %v2476
    %v2479 = vunpack.c.l.s4 1966171168
    %v2480 = vunpack.c.0.s8 %v2479
    %v2481 = vlaneseq
    %v2482 = vshrl.u32 %v2481, 7
    %v2483 = vsub.s32 %v2480, %v2482
    %v2484 = vrot.slane %v2476, %v2483
    %v2486 = vunpack.c.l.s4 1966171168
    %v2487 = vunpack.c.0.s8 %v2486
    %v2488 = vlaneseq
    %v2489 = vshrl.u32 %v2488, 7
    %v2490 = vsub.s32 %v2487, %v2489
    %v2491 = vrot.slane %v2477, %v2490
    %2493 = vst [vmem:[#allocation4 + $0x1] sm:$0x1] %v2491
    %v2494 = vcombine.high %v2484, %v2484
    %2496 = vst [vmem:[#allocation4 + $0x2] sm:$0x1] %v2494
    %v2497 = vcombine.high %v2491, %v2491
    %2499 = vst [vmem:[#allocation4 + $0x3] sm:$0x1] %v2497
    %v2500 = vld [vmem:[#allocation4] sm:$0xf]
    %v2501 = vld [vmem:[%s4] sm:$0xf]
    %v2502 = vld [vmem:[%s4 + $0x4] sm:$0xf]
    %v2503 = vld [vmem:[%s4 + $0x8] sm:$0xf]
    %v2504 = vld [vmem:[%s4 + $0xc] sm:$0xf]
    %v2505 = vld [vmem:[%s4 + $0x10] sm:$0xf]
    %v2506 = vld [vmem:[%s4 + $0x14] sm:$0xf]
    %v2507 = vld [vmem:[%s4 + $0x18] sm:$0xf]
    %v2508 = vld [vmem:[%s4 + $0x1c] sm:$0xf]
    %v2509 = vld [vmem:[%s4 + $0x20] sm:$0xf]
    %v2510 = vld [vmem:[%s4 + $0x24] sm:$0xf]
    %v2511 = vld [vmem:[%s4 + $0x28] sm:$0xf]
    %v2512 = vld [vmem:[%s4 + $0x2c] sm:$0xf]
    %v2513 = vld [vmem:[%s4 + $0x30] sm:$0xf]
    %v2514 = vld [vmem:[%s4 + $0x34] sm:$0xf]
    %v2515 = vld [vmem:[%s4 + $0x38] sm:$0xf]
    %v2516 = vld [vmem:[%s4 + $0x3c] sm:$0xf]
    %v2517 = vld [vmem:[%s4 + $0x40] sm:$0xf]
    %v2518 = vld [vmem:[%s4 + $0x44] sm:$0xf]
    %v2519 = vld [vmem:[%s4 + $0x48] sm:$0xf]
    %v2520 = vld [vmem:[%s4 + $0x4c] sm:$0xf]
    %v2521 = vld [vmem:[%s4 + $0x50] sm:$0xf]
    %v2522 = vld [vmem:[%s4 + $0x54] sm:$0xf]
    %v2523 = vld [vmem:[%s4 + $0x58] sm:$0xf]
    %v2524 = vld [vmem:[%s4 + $0x5c] sm:$0xf]
    %v2525 = vld [vmem:[%s4 + $0x60] sm:$0xf]
    %v2526 = vld [vmem:[%s4 + $0x64] sm:$0xf]
    %v2527 = vld [vmem:[%s4 + $0x68] sm:$0xf]
    %v2528 = vld [vmem:[%s4 + $0x6c] sm:$0xf]
    %v2529 = vld [vmem:[%s4 + $0x70] sm:$0xf]
    %v2530 = vld [vmem:[%s4 + $0x74] sm:$0xf]
    %v2531 = vld [vmem:[%s4 + $0x78] sm:$0xf]
    %v2532 = vld [vmem:[%s4 + $0x7c] sm:$0xf]
    %v2533 = vld [vmem:[%s4 + $0x80] sm:$0xf]
    %v2534 = vld [vmem:[%s4 + $0x84] sm:$0xf]
    %v2535 = vld [vmem:[%s4 + $0x88] sm:$0xf]
    %v2536 = vld [vmem:[%s4 + $0x8c] sm:$0xf]
    %v2537 = vld [vmem:[%s4 + $0x90] sm:$0xf]
    %v2538 = vld [vmem:[%s4 + $0x94] sm:$0xf]
    %v2539 = vld [vmem:[%s4 + $0x98] sm:$0xf]
    %v2540 = vld [vmem:[%s4 + $0x9c] sm:$0xf]
    %v2541 = vld [vmem:[%s4 + $0xa0] sm:$0xf]
    %v2542 = vld [vmem:[%s4 + $0xa4] sm:$0xf]
    %v2543 = vld [vmem:[%s4 + $0xa8] sm:$0xf]
    %v2544 = vld [vmem:[%s4 + $0xac] sm:$0xf]
    %v2545 = vld [vmem:[%s4 + $0xb0] sm:$0xf]
    %v2546 = vld [vmem:[%s4 + $0xb4] sm:$0xf]
    %v2547 = vld [vmem:[%s4 + $0xb8] sm:$0xf]
    %v2548 = vld [vmem:[%s4 + $0xbc] sm:$0xf]
    %v2549 = vld [vmem:[%s4 + $0xc0] sm:$0xf]
    %v2550 = vld [vmem:[%s4 + $0xc4] sm:$0xf]
    %v2551 = vld [vmem:[%s4 + $0xc8] sm:$0xf]
    %v2552 = vld [vmem:[%s4 + $0xcc] sm:$0xf]
    %v2553 = vld [vmem:[%s4 + $0xd0] sm:$0xf]
    %v2554 = vld [vmem:[%s4 + $0xd4] sm:$0xf]
    %v2555 = vld [vmem:[%s4 + $0xd8] sm:$0xf]
    %v2556 = vld [vmem:[%s4 + $0xdc] sm:$0xf]
    %v2557 = vld [vmem:[%s4 + $0xe0] sm:$0xf]
    %v2558 = vld [vmem:[%s4 + $0xe4] sm:$0xf]
    %v2559 = vld [vmem:[%s4 + $0xe8] sm:$0xf]
    %v2560 = vld [vmem:[%s4 + $0xec] sm:$0xf]
    %v2561 = vld [vmem:[%s4 + $0xf0] sm:$0xf]
    %v2562 = vld [vmem:[%s4 + $0xf4] sm:$0xf]
    %v2563 = vld [vmem:[%s4 + $0xf8] sm:$0xf]
    %v2564 = vld [vmem:[%s4 + $0xfc] sm:$0xf]
    %v2567 = vunpack.c.l.s4 1966171168
    %v2568 = vunpack.c.0.s8 %v2567
    %v2569 = vlaneseq
    %v2570 = vshrl.u32 %v2569, 7
    %v2571 = vsub.s32 %v2568, %v2570
    %v2572 = vrot.slane %v2500, %v2571
    %v2573 = vcombine.high %v2572, %v2572
    %v2575 = vunpack.c.l.s4 1966171168
    %v2576 = vunpack.c.0.s8 %v2575
    %v2577 = vlaneseq
    %v2578 = vshrl.u32 %v2577, 7
    %v2579 = vsub.s32 %v2576, %v2578
    %v2580 = vrot.slane %v2572, %v2579
    %v2582 = vunpack.c.l.s4 1966171168
    %v2583 = vunpack.c.0.s8 %v2582
    %v2584 = vlaneseq
    %v2585 = vshrl.u32 %v2584, 7
    %v2586 = vsub.s32 %v2583, %v2585
    %v2587 = vrot.slane %v2573, %v2586
    %v2588 = vcombine.high %v2580, %v2580
    %v2589 = vcombine.high %v2587, %v2587
    %v2658 = vunpack.c.l.b16 %v2501
    %v2659 = vunpack.c.l.b16 %v2502
    %v2660 = vunpack.c.l.b16 %v2503
    %v2661 = vunpack.c.l.b16 %v2504
    %v2662 = vunpack.c.l.b16 %v2505
    %v2663 = vunpack.c.l.b16 %v2506
    %v2664 = vunpack.c.l.b16 %v2507
    %v2665 = vunpack.c.l.b16 %v2508
    %v2666 = vunpack.c.l.b16 %v2509
    %v2667 = vunpack.c.l.b16 %v2510
    %v2668 = vunpack.c.l.b16 %v2511
    %v2669 = vunpack.c.l.b16 %v2512
    %v2670 = vunpack.c.l.b16 %v2513
    %v2671 = vunpack.c.l.b16 %v2514
    %v2672 = vunpack.c.l.b16 %v2515
    %v2673 = vunpack.c.l.b16 %v2516
    %v2674 = vunpack.c.l.b16 %v2517
    %v2675 = vunpack.c.l.b16 %v2518
    %v2676 = vunpack.c.l.b16 %v2519
    %v2677 = vunpack.c.l.b16 %v2520
    %v2678 = vunpack.c.l.b16 %v2521
    %v2679 = vunpack.c.l.b16 %v2522
    %v2680 = vunpack.c.l.b16 %v2523
    %v2681 = vunpack.c.l.b16 %v2524
    %v2682 = vunpack.c.l.b16 %v2525
    %v2683 = vunpack.c.l.b16 %v2526
    %v2684 = vunpack.c.l.b16 %v2527
    %v2685 = vunpack.c.l.b16 %v2528
    %v2686 = vunpack.c.l.b16 %v2529
    %v2687 = vunpack.c.l.b16 %v2530
    %v2688 = vunpack.c.l.b16 %v2531
    %v2689 = vunpack.c.l.b16 %v2532
    %v2690 = vunpack.c.l.b16 %v2533
    %v2691 = vunpack.c.l.b16 %v2534
    %v2692 = vunpack.c.l.b16 %v2535
    %v2693 = vunpack.c.l.b16 %v2536
    %v2694 = vunpack.c.l.b16 %v2537
    %v2695 = vunpack.c.l.b16 %v2538
    %v2696 = vunpack.c.l.b16 %v2539
    %v2697 = vunpack.c.l.b16 %v2540
    %v2698 = vunpack.c.l.b16 %v2541
    %v2699 = vunpack.c.l.b16 %v2542
    %v2700 = vunpack.c.l.b16 %v2543
    %v2701 = vunpack.c.l.b16 %v2544
    %v2702 = vunpack.c.l.b16 %v2545
    %v2703 = vunpack.c.l.b16 %v2546
    %v2704 = vunpack.c.l.b16 %v2547
    %v2705 = vunpack.c.l.b16 %v2548
    %v2706 = vunpack.c.l.b16 %v2549
    %v2707 = vunpack.c.l.b16 %v2550
    %v2708 = vunpack.c.l.b16 %v2551
    %v2709 = vunpack.c.l.b16 %v2552
    %v2710 = vunpack.c.l.b16 %v2553
    %v2711 = vunpack.c.l.b16 %v2554
    %v2712 = vunpack.c.l.b16 %v2555
    %v2713 = vunpack.c.l.b16 %v2556
    %v2714 = vunpack.c.l.b16 %v2557
    %v2715 = vunpack.c.l.b16 %v2558
    %v2716 = vunpack.c.l.b16 %v2559
    %v2717 = vunpack.c.l.b16 %v2560
    %v2718 = vunpack.c.l.b16 %v2561
    %v2719 = vunpack.c.l.b16 %v2562
    %v2720 = vunpack.c.l.b16 %v2563
    %v2721 = vunpack.c.l.b16 %v2564
    %v2722 = vpack.c.b16 %v2659, %v2658
    %v2723 = vpack.c.b16 %v2661, %v2660
    %v2724 = vpack.c.b16 %v2663, %v2662
    %v2725 = vpack.c.b16 %v2665, %v2664
    %v2726 = vpack.c.b16 %v2667, %v2666
    %v2727 = vpack.c.b16 %v2669, %v2668
    %v2728 = vpack.c.b16 %v2671, %v2670
    %v2729 = vpack.c.b16 %v2673, %v2672
    %v2730 = vpack.c.b16 %v2675, %v2674
    %v2731 = vpack.c.b16 %v2677, %v2676
    %v2732 = vpack.c.b16 %v2679, %v2678
    %v2733 = vpack.c.b16 %v2681, %v2680
    %v2734 = vpack.c.b16 %v2683, %v2682
    %v2735 = vpack.c.b16 %v2685, %v2684
    %v2736 = vpack.c.b16 %v2687, %v2686
    %v2737 = vpack.c.b16 %v2689, %v2688
    %v2738 = vpack.c.b16 %v2691, %v2690
    %v2739 = vpack.c.b16 %v2693, %v2692
    %v2740 = vpack.c.b16 %v2695, %v2694
    %v2741 = vpack.c.b16 %v2697, %v2696
    %v2742 = vpack.c.b16 %v2699, %v2698
    %v2743 = vpack.c.b16 %v2701, %v2700
    %v2744 = vpack.c.b16 %v2703, %v2702
    %v2745 = vpack.c.b16 %v2705, %v2704
    %v2746 = vpack.c.b16 %v2707, %v2706
    %v2747 = vpack.c.b16 %v2709, %v2708
    %v2748 = vpack.c.b16 %v2711, %v2710
    %v2749 = vpack.c.b16 %v2713, %v2712
    %v2750 = vpack.c.b16 %v2715, %v2714
    %v2751 = vpack.c.b16 %v2717, %v2716
    %v2752 = vpack.c.b16 %v2719, %v2718
    %v2753 = vpack.c.b16 %v2721, %v2720
    %2786 = vmatprep.subr.bf16.mxu0 0
    %2787 = vmatpush1.bf16.msra.mxu0 %v2722
    %2788 = vmatprep.subr.bf16.mxu0 0
    %2789 = vmatpush1.bf16.msra.mxu0 %v2723
    %2790 = vmatprep.subr.bf16.mxu0 0
    %2791 = vmatpush1.bf16.msra.mxu0 %v2724
    %2792 = vmatprep.subr.bf16.mxu0 0
    %2793 = vmatpush1.bf16.msra.mxu0 %v2725
    %2794 = vmatprep.subr.bf16.mxu0 0
    %2795 = vmatpush1.bf16.msra.mxu0 %v2726
    %2796 = vmatprep.subr.bf16.mxu0 0
    %2797 = vmatpush1.bf16.msra.mxu0 %v2727
    %2798 = vmatprep.subr.bf16.mxu0 0
    %2799 = vmatpush1.bf16.msra.mxu0 %v2728
    %2800 = vmatprep.subr.bf16.mxu0 0
    %2801 = vmatpush1.bf16.msra.mxu0 %v2729
    %2802 = vmatprep.subr.bf16.mxu0 0
    %2803 = vmatpush1.bf16.msra.mxu0 %v2730
    %2804 = vmatprep.subr.bf16.mxu0 0
    %2805 = vmatpush1.bf16.msra.mxu0 %v2731
    %2806 = vmatprep.subr.bf16.mxu0 0
    %2807 = vmatpush1.bf16.msra.mxu0 %v2732
    %2808 = vmatprep.subr.bf16.mxu0 0
    %2809 = vmatpush1.bf16.msra.mxu0 %v2733
    %2810 = vmatprep.subr.bf16.mxu0 0
    %2811 = vmatpush1.bf16.msra.mxu0 %v2734
    %2812 = vmatprep.subr.bf16.mxu0 0
    %2813 = vmatpush1.bf16.msra.mxu0 %v2735
    %2814 = vmatprep.subr.bf16.mxu0 0
    %2815 = vmatpush1.bf16.msra.mxu0 %v2736
    %2816 = vmatprep.subr.bf16.mxu0 0
    %2817 = vmatpush1.bf16.msra.mxu0 %v2737
    %2818 = vmatprep.mubr.bf16.mxu0 %v2587
    %2819 = vmatmul.mubr.bf16.gmra.mrb[0].mxu0 %v2580
    %v2820 = vpop.f32.mrb[0].mxu0
    %v2821 = vadd.f32 0.0, %v2820
    %v2822 = vpop.f32.mrb[0].mxu0
    %v2823 = vpop.f32.mrb[0].mxu0
    %v2824 = vpop.f32.mrb[0].mxu0
    %2825 = vdwg.mxu0
    %2826 = vmatprep.subr.bf16.mxu0 0
    %2827 = vmatpush1.bf16.msra.mxu0 %v2738
    %2828 = vmatprep.subr.bf16.mxu0 0
    %2829 = vmatpush1.bf16.msra.mxu0 %v2739
    %2830 = vmatprep.subr.bf16.mxu0 0
    %2831 = vmatpush1.bf16.msra.mxu0 %v2740
    %2832 = vmatprep.subr.bf16.mxu0 0
    %2833 = vmatpush1.bf16.msra.mxu0 %v2741
    %2834 = vmatprep.subr.bf16.mxu0 0
    %2835 = vmatpush1.bf16.msra.mxu0 %v2742
    %2836 = vmatprep.subr.bf16.mxu0 0
    %2837 = vmatpush1.bf16.msra.mxu0 %v2743
    %2838 = vmatprep.subr.bf16.mxu0 0
    %2839 = vmatpush1.bf16.msra.mxu0 %v2744
    %2840 = vmatprep.subr.bf16.mxu0 0
    %2841 = vmatpush1.bf16.msra.mxu0 %v2745
    %2842 = vmatprep.subr.bf16.mxu0 0
    %2843 = vmatpush1.bf16.msra.mxu0 %v2746
    %2844 = vmatprep.subr.bf16.mxu0 0
    %2845 = vmatpush1.bf16.msra.mxu0 %v2747
    %2846 = vmatprep.subr.bf16.mxu0 0
    %2847 = vmatpush1.bf16.msra.mxu0 %v2748
    %2848 = vmatprep.subr.bf16.mxu0 0
    %2849 = vmatpush1.bf16.msra.mxu0 %v2749
    %2850 = vmatprep.subr.bf16.mxu0 0
    %2851 = vmatpush1.bf16.msra.mxu0 %v2750
    %2852 = vmatprep.subr.bf16.mxu0 0
    %2853 = vmatpush1.bf16.msra.mxu0 %v2751
    %2854 = vmatprep.subr.bf16.mxu0 0
    %2855 = vmatpush1.bf16.msra.mxu0 %v2752
    %2856 = vmatprep.subr.bf16.mxu0 0
    %2857 = vmatpush1.bf16.msra.mxu0 %v2753
    %2858 = vmatprep.mubr.bf16.mxu0 %v2589
    %2859 = vmatmul.mubr.bf16.gmra.mrb[0].mxu0 %v2588
    %v2860 = vpop.f32.mrb[0].mxu0
    %v2861 = vadd.f32 %v2821, %v2860
    %v2862 = vpop.f32.mrb[0].mxu0
    %v2863 = vpop.f32.mrb[0].mxu0
    %v2864 = vpop.f32.mrb[0].mxu0
    %2865 = vdwg.mxu0
    %vm2866 = vcmask 254976
    %v2867 = vsel %vm2866, %v2861, 0.0
    %v2868 = vrot.slane %v2867, 4
    %v2869 = vadd.f32 %v2867, %v2868
    %v2870 = vrot.slane %v2869, 2
    %v2871 = vadd.f32 %v2869, %v2870
    %v2872 = vrot.slane %v2871, 1
    %v2873 = vadd.f32 %v2871, %v2872
    %v2874 = vmul.f32 %v2861, %v2861
    %v2875 = vsel %vm2866, %v2874, 0.0
    %v2876 = vrot.slane %v2875, 4
    %v2877 = vadd.f32 %v2875, %v2876
    %v2878 = vrot.slane %v2877, 2
    %v2879 = vadd.f32 %v2877, %v2878
    %v2880 = vrot.slane %v2879, 1
    %v2881 = vadd.f32 %v2879, %v2880
    %v2882 = vsel %vm494, %v2873, %v2881
    %v2883 = vmul.f32 %v2882, 0.5
    %v2884 = vmul.f32 %v2883, %v2883
    %v2886 = vrot.slane %v2884, 7
    %v2888 = vsub.f32 %v2883, %v2886
    %v2889 = vmax.f32 %v2888, 0.0
    %v2890 = vld [vmem:[%s17] sm:$0x1]
    %v2891 = vadd.f32 %v2889, 1e-05
    %v2892 = vrsqrt.pop %v2891
    %v2895 = vunpack.c.l.s4 1966171168
    %v2896 = vunpack.c.0.s8 %v2895
    %v2897 = vlaneseq
    %v2898 = vshrl.u32 %v2897, 7
    %v2899 = vsub.s32 %v2896, %v2898
    %v2900 = vrot.slane %v2892, %v2899
    %v2901 = vcombine.high %v2900, %v2900
    %v2903 = vunpack.c.l.s4 1966171168
    %v2904 = vunpack.c.0.s8 %v2903
    %v2905 = vlaneseq
    %v2906 = vshrl.u32 %v2905, 7
    %v2907 = vsub.s32 %v2904, %v2906
    %v2908 = vrot.slane %v2901, %v2907
    %v2910 = vmul.f32 %v2890, %v2908
    %v2911 = vld [vmem:[%s18] sm:$0x1]
    %v2912 = vmul.f32 %v2883, %v2910
    %v2913 = vsub.f32 %v2911, %v2912
    %v2915 = vlaneseq
    %v2916 = vshrl.u32 %v2915, 7
    %v2917 = vsub.s32 0, %v2916
    %v2918 = vrot.slane %v2913, %v2917
    %v2920 = vsel %vm494, %v2910, %v2918
    %v2921 = vlaneseq
    %v2922 = vshrl.u32 %v2921, 7
    %v2923 = vsub.s32 0, %v2922
    %v2924 = vrot.slane %v2920, %v2923
    %v2925 = vmul.f32 %v2861, %v2924
    %v2926 = vlaneseq
    %v2927 = vshrl.u32 %v2926, 7
    %v2928 = vsub.s32 1, %v2927
    %v2929 = vrot.slane %v2920, %v2928
    %v2930 = vadd.f32 %v2925, %v2929
    %v2931 = vmax.f32 %v2930, 0.0
    %2932 = vst.msk [vmem:[#allocation6] sm:$0x3] %vm2866, %v2931
    // Predicated region
    $region78: #{encoder_forward.1} parent=1 // pred_check
      _
    $region79: #{encoder_forward.1} parent=1 // pred_check_branch
      %2934 = sbr.rel (0) target = $region81
    $region80: #{encoder_forward.1} parent=1 // pred_region
      %s2936 = ssub.s32 32, 32
      %2937 = vsyncadd [#allocation7], %s2936
      %s2939 = sshll.u32 [#allocation6], 4
      %s2940 = int_to_ptr.vmem [resolvable:$true] %s2939
      %2942 = dma.vmem_to_hbm [thread:$0]  %s2940, 32, %s19, [#allocation7]
    $region81: #{encoder_forward.1} parent=1 // pred_fallthru
      _
    // Predicated region
    $region82: #{encoder_forward.1} parent=1 // pred_check
      _
    $region83: #{encoder_forward.1} parent=1 // pred_check_branch
      %2944 = sbr.rel (0) target = $region85
    $region84: #{encoder_forward.1} parent=1 // pred_region
      %2945 = dma.done [#allocation7], 32
    $region85: #{encoder_forward.1} parent=1 // pred_fallthru
      _
    %2946 = vsyncpa [#allocation7], 1

</llo_original>
